<compile_context>
chip_gen: v5e
topology: v5e:2x2
jax: 0.10.0
libtpu: 0.0.40
codegen_flags: <defaults>
</compile_context>

<pallas_src>
import functools

import jax
import jax.numpy as jnp
from jax.experimental import pallas as pl
from jax.experimental.pallas import tpu as pltpu


# ----------------------------------------------------------------------------
# Fused kernel
# ----------------------------------------------------------------------------
def _bspline_activation(h, grid, coef, k):
    """Per-feature B-spline activation (coef2curve / B_batch math).

    h:    (tb, dout)  pre-activations (f32)
    grid: (Gext, dout) extended knot grid, Gext = grid_num + 1 + 2k
    coef: (grid_num + k, dout)
    """
    n0 = grid.shape[0] - 1  # number of order-0 intervals
    # Knot rows, loaded once; (1, dout) broadcasts implicitly over batch.
    g = [grid[i][None, :] for i in range(grid.shape[0])]

    # Order-0 indicator basis, then Cox–de Boor recursion up to order k.
    basis = [((h >= g[i]) & (h < g[i + 1])).astype(jnp.float32) for i in range(n0)]
    for order in range(1, k + 1):
        new_basis = []
        for i in range(n0 - order):
            # Denominators are h-independent: precompute reciprocals on
            # (1, dout) rows instead of dividing (tb, dout) tensors.
            inv_lo = pl.reciprocal(g[i + order] - g[i], approx=False)
            inv_hi = pl.reciprocal(g[i + order + 1] - g[i + 1], approx=False)
            new_basis.append(
                (h - g[i]) * inv_lo * basis[i]
                + (g[i + order + 1] - h) * inv_hi * basis[i + 1]
            )
        basis = new_basis

    # y[b, d] = sum_j coef[j, d] * B_j(h[b, d])
    acc = coef[0][None, :] * basis[0]
    for j in range(1, len(basis)):
        acc = acc + coef[j][None, :] * basis[j]
    return acc


def _fused_mlp_kernel(*refs, k, n_hidden):
    """refs = (x, [w, b, grid, coef] * n_hidden, w_final, b_final, out)."""
    x_ref = refs[0]
    o_ref = refs[-1]
    p = refs[1:-1]

    h = x_ref[...].astype(jnp.float32)
    idx = 0
    for _ in range(n_hidden):
        w = p[idx][...]
        b = p[idx + 1][...]
        grid = p[idx + 2][...]
        coef = p[idx + 3][...]
        idx += 4
        h = jnp.dot(h, w, preferred_element_type=jnp.float32) + b
        h = _bspline_activation(h, grid, coef, k)

    w = p[idx][...]
    b = p[idx + 1][...]
    out = jnp.dot(h, w, preferred_element_type=jnp.float32) + b
    o_ref[...] = out.astype(o_ref.dtype)


# ----------------------------------------------------------------------------
# Wrapper: single fused pallas_call, tiled over the batch axis
# ----------------------------------------------------------------------------
def bspline_mlp_forward(params, x, k, tb=256):
    batch, din = x.shape
    dout = params[-1]["w"].shape[1]
    n_hidden = len(params) - 1

    # Batch tile: full batch if small, else a multiple of 8 rows so the block
    # satisfies the sublane constraint and the grid gets multiple steps
    # (pipelining + megacore on v7x).
    tb = min(tb, batch)
    if tb != batch:
        tb = max(8, (tb // 8) * 8)
    padded_batch = pl.cdiv(batch, tb) * tb
    if padded_batch != batch:
        x = jnp.pad(x, ((0, padded_batch - batch), (0, 0)))

    # Assemble flat inputs + grid-invariant BlockSpecs for all parameters.
    in_specs = [pl.BlockSpec((tb, din), lambda i: (i, 0))]
    args = [x]
    for layer in params[:-1]:
        for name in ("w", "b", "grid", "coef"):
            a = layer[name]
            in_specs.append(pl.BlockSpec(a.shape, lambda i: (0, 0)))
            args.append(a)
    for name in ("w", "b"):
        a = params[-1][name]
        in_specs.append(pl.BlockSpec(a.shape, lambda i: (0, 0)))
        args.append(a)

    kern = functools.partial(_fused_mlp_kernel, k=k, n_hidden=n_hidden)
    out = pl.pallas_call(
        kern,
        out_shape=jax.ShapeDtypeStruct((padded_batch, dout), x.dtype),
        grid=(padded_batch // tb,),
        in_specs=in_specs,
        out_specs=pl.BlockSpec((tb, dout), lambda i: (i, 0)),
        compiler_params=pltpu.CompilerParams(
            dimension_semantics=("parallel",),
        ),
    )(*args)
    return out[:batch]


# ----------------------------------------------------------------------------
# Deterministic parameter init (shapes per BSpline_MLP.__init__)
# ----------------------------------------------------------------------------
def init_params(key, input_size, layers_width, output_size, grid_num, grid_range, k):
    widths = [input_size] + list(layers_width) + [output_size]
    params = []
    for i in range(len(widths) - 1):
        din, dout = widths[i], widths[i + 1]
        key, k_w, k_b, k_c = jax.random.split(key, 4)
        bound = 1.0 / float(din) ** 0.5
        w = jax.random.uniform(k_w, (din, dout), jnp.float32, -bound, bound)
        b = jax.random.uniform(k_b, (1, dout), jnp.float32, -bound, bound)
        layer = {"w": w, "b": b}
        if i < len(widths) - 2:
            # Extended B-spline grid: linspace(grid_range, grid_num+1) padded by
            # k uniform steps on each side (as in KAN's B_batch extend_grid).
            pts = jnp.linspace(grid_range[0], grid_range[1], grid_num + 1)
            h = (grid_range[1] - grid_range[0]) / grid_num
            ext = jnp.concatenate(
                [pts[0] + h * jnp.arange(-k, 0), pts, pts[-1] + h * jnp.arange(1, k + 1)]
            ).astype(jnp.float32)
            layer["grid"] = jnp.broadcast_to(ext[:, None], (grid_num + 1 + 2 * k, dout))
            # coef shape (grid_num + k, dout); synthetic small init (the PyTorch
            # module fits small noise via curve2coef -> same order of magnitude).
            layer["coef"] = (
                jax.random.uniform(k_c, (grid_num + k, dout), jnp.float32) - 0.5
            ) * (0.1 / grid_num)
        params.append(layer)
    return params


# ----------------------------------------------------------------------------
# Pure-JAX reference (mirrors coef2curve / B_batch math) for verification.
# ----------------------------------------------------------------------------
def ref_forward(params, x, k):
    for layer in params:
        x = x @ layer["w"] + layer["b"]
        if "grid" in layer:
            grid, coef = layer["grid"], layer["coef"]
            n0 = grid.shape[0] - 1
            g = lambda i: grid[i][None, :]
            basis = [((x >= g(i)) & (x < g(i + 1))).astype(jnp.float32) for i in range(n0)]
            for order in range(1, k + 1):
                basis = [
                    (x - g(i)) / (g(i + order) - g(i)) * basis[i]
                    + (g(i + order + 1) - x) / (g(i + order + 1) - g(i + 1)) * basis[i + 1]
                    for i in range(n0 - order)
                ]
            x = sum(coef[j][None, :] * basis[j] for j in range(len(basis)))
    return x


if __name__ == "__main__":
    # args (small, consistent with the module): input_size=16, layers_width=[32, 32],
    # output_size=8, kan_bspline_grid=5, kan_grid_range=[-1, 1], kan_bspline_order=3,
    # batch_norm=False.
    input_size, layers_width, output_size = 16, [32, 32], 8
    grid_num, grid_range, k = 5, (-1.0, 1.0), 3
    batch = 48  # not a multiple of the 32-row tile -> exercises padding + 2-step grid

    key = jax.random.PRNGKey(0)
    k_params, k_x = jax.random.split(key)
    params = init_params(k_params, input_size, layers_width, output_size, grid_num, grid_range, k)
    x = jax.random.uniform(k_x, (batch, input_size), jnp.float32, -1.0, 1.0)

    out = bspline_mlp_forward(params, x, k, tb=32)
    out = jax.block_until_ready(out)

    assert out.shape == (batch, output_size)
    ref = ref_forward(params, x, k)
    assert jnp.allclose(out, ref, atol=1e-4), "Pallas output mismatch vs JAX reference"

    print("KERNEL_OK")
</pallas_src>

<mosaic_0001>
module attributes {stable_mosaic.version = 11 : i64} {
  func.func @_fused_mlp_kernel(%arg0: i32, %arg1: memref<32x16xf32, #tpu.memory_space<vmem>>, %arg2: memref<16x32xf32, #tpu.memory_space<vmem>>, %arg3: memref<1x32xf32, #tpu.memory_space<vmem>>, %arg4: memref<12x32xf32, #tpu.memory_space<vmem>>, %arg5: memref<8x32xf32, #tpu.memory_space<vmem>>, %arg6: memref<32x32xf32, #tpu.memory_space<vmem>>, %arg7: memref<1x32xf32, #tpu.memory_space<vmem>>, %arg8: memref<12x32xf32, #tpu.memory_space<vmem>>, %arg9: memref<8x32xf32, #tpu.memory_space<vmem>>, %arg10: memref<32x8xf32, #tpu.memory_space<vmem>>, %arg11: memref<1x8xf32, #tpu.memory_space<vmem>>, %arg12: memref<32x8xf32, #tpu.memory_space<vmem>>) attributes {dimension_semantics = [#tpu.dimension_semantics<parallel>], iteration_bounds = array<i64: 2>, scalar_prefetch = 0 : i64, scratch_operands = 0 : i64, tpu.core_type = #tpu.core_type<tc>, window_params = [{transform_indices = @transform_0, window_bounds = array<i64: 32, 16>}, {pipeline_mode = #tpu.pipeline_mode<synchronous>, transform_indices = @transform_1, window_bounds = array<i64: 16, 32>}, {pipeline_mode = #tpu.pipeline_mode<synchronous>, transform_indices = @transform_2, window_bounds = array<i64: 1, 32>}, {pipeline_mode = #tpu.pipeline_mode<synchronous>, transform_indices = @transform_3, window_bounds = array<i64: 12, 32>}, {pipeline_mode = #tpu.pipeline_mode<synchronous>, transform_indices = @transform_4, window_bounds = array<i64: 8, 32>}, {pipeline_mode = #tpu.pipeline_mode<synchronous>, transform_indices = @transform_5, window_bounds = array<i64: 32, 32>}, {pipeline_mode = #tpu.pipeline_mode<synchronous>, transform_indices = @transform_6, window_bounds = array<i64: 1, 32>}, {pipeline_mode = #tpu.pipeline_mode<synchronous>, transform_indices = @transform_7, window_bounds = array<i64: 12, 32>}, {pipeline_mode = #tpu.pipeline_mode<synchronous>, transform_indices = @transform_8, window_bounds = array<i64: 8, 32>}, {pipeline_mode = #tpu.pipeline_mode<synchronous>, transform_indices = @transform_9, window_bounds = array<i64: 32, 8>}, {pipeline_mode = #tpu.pipeline_mode<synchronous>, transform_indices = @transform_10, window_bounds = array<i64: 1, 8>}, {transform_indices = @transform_11, window_bounds = array<i64: 32, 8>}]} {
    %c0 = arith.constant 0 : index
    %c0_0 = arith.constant 0 : index
    %0 = vector.load %arg1[%c0, %c0_0] : memref<32x16xf32, #tpu.memory_space<vmem>>, vector<32x16xf32>
    %c0_1 = arith.constant 0 : index
    %c0_2 = arith.constant 0 : index
    %1 = vector.load %arg2[%c0_1, %c0_2] : memref<16x32xf32, #tpu.memory_space<vmem>>, vector<16x32xf32>
    %c0_3 = arith.constant 0 : index
    %c0_4 = arith.constant 0 : index
    %2 = vector.load %arg3[%c0_3, %c0_4] : memref<1x32xf32, #tpu.memory_space<vmem>>, vector<1x32xf32>
    %c0_5 = arith.constant 0 : index
    %c0_6 = arith.constant 0 : index
    %3 = vector.load %arg4[%c0_5, %c0_6] : memref<12x32xf32, #tpu.memory_space<vmem>>, vector<12x32xf32>
    %c0_7 = arith.constant 0 : index
    %c0_8 = arith.constant 0 : index
    %4 = vector.load %arg5[%c0_7, %c0_8] : memref<8x32xf32, #tpu.memory_space<vmem>>, vector<8x32xf32>
    %cst = arith.constant dense<0.000000e+00> : vector<32x32xf32>
    %5 = tpu.matmul %0, %1, %cst {dimension_numbers = #tpu.dot_dimension_numbers<[1], [0], [0], [1], [0, 0, 1, 1], [], []>} : vector<32x16xf32>, vector<16x32xf32>, vector<32x32xf32> -> vector<32x32xf32>
    %6 = vector.broadcast %2 : vector<1x32xf32> to vector<32x32xf32>
    %7 = arith.addf %5, %6 : vector<32x32xf32>
    %8 = vector.extract_strided_slice %3 {offsets = [0, 0], sizes = [1, 32], strides = [1, 1]} : vector<12x32xf32> to vector<1x32xf32>
    %9 = vector.shape_cast %8 : vector<1x32xf32> to vector<32xf32>
    %10 = vector.shape_cast %9 : vector<32xf32> to vector<1x32xf32>
    %11 = vector.extract_strided_slice %3 {offsets = [1, 0], sizes = [1, 32], strides = [1, 1]} : vector<12x32xf32> to vector<1x32xf32>
    %12 = vector.shape_cast %11 : vector<1x32xf32> to vector<32xf32>
    %13 = vector.shape_cast %12 : vector<32xf32> to vector<1x32xf32>
    %14 = vector.extract_strided_slice %3 {offsets = [2, 0], sizes = [1, 32], strides = [1, 1]} : vector<12x32xf32> to vector<1x32xf32>
    %15 = vector.shape_cast %14 : vector<1x32xf32> to vector<32xf32>
    %16 = vector.shape_cast %15 : vector<32xf32> to vector<1x32xf32>
    %17 = vector.extract_strided_slice %3 {offsets = [3, 0], sizes = [1, 32], strides = [1, 1]} : vector<12x32xf32> to vector<1x32xf32>
    %18 = vector.shape_cast %17 : vector<1x32xf32> to vector<32xf32>
    %19 = vector.shape_cast %18 : vector<32xf32> to vector<1x32xf32>
    %20 = vector.extract_strided_slice %3 {offsets = [4, 0], sizes = [1, 32], strides = [1, 1]} : vector<12x32xf32> to vector<1x32xf32>
    %21 = vector.shape_cast %20 : vector<1x32xf32> to vector<32xf32>
    %22 = vector.shape_cast %21 : vector<32xf32> to vector<1x32xf32>
    %23 = vector.extract_strided_slice %3 {offsets = [5, 0], sizes = [1, 32], strides = [1, 1]} : vector<12x32xf32> to vector<1x32xf32>
    %24 = vector.shape_cast %23 : vector<1x32xf32> to vector<32xf32>
    %25 = vector.shape_cast %24 : vector<32xf32> to vector<1x32xf32>
    %26 = vector.extract_strided_slice %3 {offsets = [6, 0], sizes = [1, 32], strides = [1, 1]} : vector<12x32xf32> to vector<1x32xf32>
    %27 = vector.shape_cast %26 : vector<1x32xf32> to vector<32xf32>
    %28 = vector.shape_cast %27 : vector<32xf32> to vector<1x32xf32>
    %29 = vector.extract_strided_slice %3 {offsets = [7, 0], sizes = [1, 32], strides = [1, 1]} : vector<12x32xf32> to vector<1x32xf32>
    %30 = vector.shape_cast %29 : vector<1x32xf32> to vector<32xf32>
    %31 = vector.shape_cast %30 : vector<32xf32> to vector<1x32xf32>
    %32 = vector.extract_strided_slice %3 {offsets = [8, 0], sizes = [1, 32], strides = [1, 1]} : vector<12x32xf32> to vector<1x32xf32>
    %33 = vector.shape_cast %32 : vector<1x32xf32> to vector<32xf32>
    %34 = vector.shape_cast %33 : vector<32xf32> to vector<1x32xf32>
    %35 = vector.extract_strided_slice %3 {offsets = [9, 0], sizes = [1, 32], strides = [1, 1]} : vector<12x32xf32> to vector<1x32xf32>
    %36 = vector.shape_cast %35 : vector<1x32xf32> to vector<32xf32>
    %37 = vector.shape_cast %36 : vector<32xf32> to vector<1x32xf32>
    %38 = vector.extract_strided_slice %3 {offsets = [10, 0], sizes = [1, 32], strides = [1, 1]} : vector<12x32xf32> to vector<1x32xf32>
    %39 = vector.shape_cast %38 : vector<1x32xf32> to vector<32xf32>
    %40 = vector.shape_cast %39 : vector<32xf32> to vector<1x32xf32>
    %41 = vector.extract_strided_slice %3 {offsets = [11, 0], sizes = [1, 32], strides = [1, 1]} : vector<12x32xf32> to vector<1x32xf32>
    %42 = vector.shape_cast %41 : vector<1x32xf32> to vector<32xf32>
    %43 = vector.shape_cast %42 : vector<32xf32> to vector<1x32xf32>
    %44 = vector.broadcast %10 : vector<1x32xf32> to vector<32x32xf32>
    %45 = arith.cmpf oge, %7, %44 : vector<32x32xf32>
    %46 = vector.broadcast %13 : vector<1x32xf32> to vector<32x32xf32>
    %47 = arith.cmpf olt, %7, %46 : vector<32x32xf32>
    %48 = arith.andi %45, %47 : vector<32x32xi1>
    %49 = arith.extui %48 : vector<32x32xi1> to vector<32x32xi32>
    %50 = arith.sitofp %49 : vector<32x32xi32> to vector<32x32xf32>
    %51 = vector.broadcast %13 : vector<1x32xf32> to vector<32x32xf32>
    %52 = arith.cmpf oge, %7, %51 : vector<32x32xf32>
    %53 = vector.broadcast %16 : vector<1x32xf32> to vector<32x32xf32>
    %54 = arith.cmpf olt, %7, %53 : vector<32x32xf32>
    %55 = arith.andi %52, %54 : vector<32x32xi1>
    %56 = arith.extui %55 : vector<32x32xi1> to vector<32x32xi32>
    %57 = arith.sitofp %56 : vector<32x32xi32> to vector<32x32xf32>
    %58 = vector.broadcast %16 : vector<1x32xf32> to vector<32x32xf32>
    %59 = arith.cmpf oge, %7, %58 : vector<32x32xf32>
    %60 = vector.broadcast %19 : vector<1x32xf32> to vector<32x32xf32>
    %61 = arith.cmpf olt, %7, %60 : vector<32x32xf32>
    %62 = arith.andi %59, %61 : vector<32x32xi1>
    %63 = arith.extui %62 : vector<32x32xi1> to vector<32x32xi32>
    %64 = arith.sitofp %63 : vector<32x32xi32> to vector<32x32xf32>
    %65 = vector.broadcast %19 : vector<1x32xf32> to vector<32x32xf32>
    %66 = arith.cmpf oge, %7, %65 : vector<32x32xf32>
    %67 = vector.broadcast %22 : vector<1x32xf32> to vector<32x32xf32>
    %68 = arith.cmpf olt, %7, %67 : vector<32x32xf32>
    %69 = arith.andi %66, %68 : vector<32x32xi1>
    %70 = arith.extui %69 : vector<32x32xi1> to vector<32x32xi32>
    %71 = arith.sitofp %70 : vector<32x32xi32> to vector<32x32xf32>
    %72 = vector.broadcast %22 : vector<1x32xf32> to vector<32x32xf32>
    %73 = arith.cmpf oge, %7, %72 : vector<32x32xf32>
    %74 = vector.broadcast %25 : vector<1x32xf32> to vector<32x32xf32>
    %75 = arith.cmpf olt, %7, %74 : vector<32x32xf32>
    %76 = arith.andi %73, %75 : vector<32x32xi1>
    %77 = arith.extui %76 : vector<32x32xi1> to vector<32x32xi32>
    %78 = arith.sitofp %77 : vector<32x32xi32> to vector<32x32xf32>
    %79 = vector.broadcast %25 : vector<1x32xf32> to vector<32x32xf32>
    %80 = arith.cmpf oge, %7, %79 : vector<32x32xf32>
    %81 = vector.broadcast %28 : vector<1x32xf32> to vector<32x32xf32>
    %82 = arith.cmpf olt, %7, %81 : vector<32x32xf32>
    %83 = arith.andi %80, %82 : vector<32x32xi1>
    %84 = arith.extui %83 : vector<32x32xi1> to vector<32x32xi32>
    %85 = arith.sitofp %84 : vector<32x32xi32> to vector<32x32xf32>
    %86 = vector.broadcast %28 : vector<1x32xf32> to vector<32x32xf32>
    %87 = arith.cmpf oge, %7, %86 : vector<32x32xf32>
    %88 = vector.broadcast %31 : vector<1x32xf32> to vector<32x32xf32>
    %89 = arith.cmpf olt, %7, %88 : vector<32x32xf32>
    %90 = arith.andi %87, %89 : vector<32x32xi1>
    %91 = arith.extui %90 : vector<32x32xi1> to vector<32x32xi32>
    %92 = arith.sitofp %91 : vector<32x32xi32> to vector<32x32xf32>
    %93 = vector.broadcast %31 : vector<1x32xf32> to vector<32x32xf32>
    %94 = arith.cmpf oge, %7, %93 : vector<32x32xf32>
    %95 = vector.broadcast %34 : vector<1x32xf32> to vector<32x32xf32>
    %96 = arith.cmpf olt, %7, %95 : vector<32x32xf32>
    %97 = arith.andi %94, %96 : vector<32x32xi1>
    %98 = arith.extui %97 : vector<32x32xi1> to vector<32x32xi32>
    %99 = arith.sitofp %98 : vector<32x32xi32> to vector<32x32xf32>
    %100 = vector.broadcast %34 : vector<1x32xf32> to vector<32x32xf32>
    %101 = arith.cmpf oge, %7, %100 : vector<32x32xf32>
    %102 = vector.broadcast %37 : vector<1x32xf32> to vector<32x32xf32>
    %103 = arith.cmpf olt, %7, %102 : vector<32x32xf32>
    %104 = arith.andi %101, %103 : vector<32x32xi1>
    %105 = arith.extui %104 : vector<32x32xi1> to vector<32x32xi32>
    %106 = arith.sitofp %105 : vector<32x32xi32> to vector<32x32xf32>
    %107 = vector.broadcast %37 : vector<1x32xf32> to vector<32x32xf32>
    %108 = arith.cmpf oge, %7, %107 : vector<32x32xf32>
    %109 = vector.broadcast %40 : vector<1x32xf32> to vector<32x32xf32>
    %110 = arith.cmpf olt, %7, %109 : vector<32x32xf32>
    %111 = arith.andi %108, %110 : vector<32x32xi1>
    %112 = arith.extui %111 : vector<32x32xi1> to vector<32x32xi32>
    %113 = arith.sitofp %112 : vector<32x32xi32> to vector<32x32xf32>
    %114 = vector.broadcast %40 : vector<1x32xf32> to vector<32x32xf32>
    %115 = arith.cmpf oge, %7, %114 : vector<32x32xf32>
    %116 = vector.broadcast %43 : vector<1x32xf32> to vector<32x32xf32>
    %117 = arith.cmpf olt, %7, %116 : vector<32x32xf32>
    %118 = arith.andi %115, %117 : vector<32x32xi1>
    %119 = arith.extui %118 : vector<32x32xi1> to vector<32x32xi32>
    %120 = arith.sitofp %119 : vector<32x32xi32> to vector<32x32xf32>
    %121 = arith.subf %13, %10 : vector<1x32xf32>
    %122 = tpu.reciprocal %121 : vector<1x32xf32> -> vector<1x32xf32>
    %123 = arith.subf %16, %13 : vector<1x32xf32>
    %124 = tpu.reciprocal %123 : vector<1x32xf32> -> vector<1x32xf32>
    %125 = vector.broadcast %10 : vector<1x32xf32> to vector<32x32xf32>
    %126 = arith.subf %7, %125 : vector<32x32xf32>
    %127 = vector.broadcast %122 : vector<1x32xf32> to vector<32x32xf32>
    %128 = arith.mulf %126, %127 : vector<32x32xf32>
    %129 = arith.mulf %128, %50 : vector<32x32xf32>
    %130 = vector.broadcast %16 : vector<1x32xf32> to vector<32x32xf32>
    %131 = arith.subf %130, %7 : vector<32x32xf32>
    %132 = vector.broadcast %124 : vector<1x32xf32> to vector<32x32xf32>
    %133 = arith.mulf %131, %132 : vector<32x32xf32>
    %134 = arith.mulf %133, %57 : vector<32x32xf32>
    %135 = arith.addf %129, %134 : vector<32x32xf32>
    %136 = arith.subf %16, %13 : vector<1x32xf32>
    %137 = tpu.reciprocal %136 : vector<1x32xf32> -> vector<1x32xf32>
    %138 = arith.subf %19, %16 : vector<1x32xf32>
    %139 = tpu.reciprocal %138 : vector<1x32xf32> -> vector<1x32xf32>
    %140 = vector.broadcast %13 : vector<1x32xf32> to vector<32x32xf32>
    %141 = arith.subf %7, %140 : vector<32x32xf32>
    %142 = vector.broadcast %137 : vector<1x32xf32> to vector<32x32xf32>
    %143 = arith.mulf %141, %142 : vector<32x32xf32>
    %144 = arith.mulf %143, %57 : vector<32x32xf32>
    %145 = vector.broadcast %19 : vector<1x32xf32> to vector<32x32xf32>
    %146 = arith.subf %145, %7 : vector<32x32xf32>
    %147 = vector.broadcast %139 : vector<1x32xf32> to vector<32x32xf32>
    %148 = arith.mulf %146, %147 : vector<32x32xf32>
    %149 = arith.mulf %148, %64 : vector<32x32xf32>
    %150 = arith.addf %144, %149 : vector<32x32xf32>
    %151 = arith.subf %19, %16 : vector<1x32xf32>
    %152 = tpu.reciprocal %151 : vector<1x32xf32> -> vector<1x32xf32>
    %153 = arith.subf %22, %19 : vector<1x32xf32>
    %154 = tpu.reciprocal %153 : vector<1x32xf32> -> vector<1x32xf32>
    %155 = vector.broadcast %16 : vector<1x32xf32> to vector<32x32xf32>
    %156 = arith.subf %7, %155 : vector<32x32xf32>
    %157 = vector.broadcast %152 : vector<1x32xf32> to vector<32x32xf32>
    %158 = arith.mulf %156, %157 : vector<32x32xf32>
    %159 = arith.mulf %158, %64 : vector<32x32xf32>
    %160 = vector.broadcast %22 : vector<1x32xf32> to vector<32x32xf32>
    %161 = arith.subf %160, %7 : vector<32x32xf32>
    %162 = vector.broadcast %154 : vector<1x32xf32> to vector<32x32xf32>
    %163 = arith.mulf %161, %162 : vector<32x32xf32>
    %164 = arith.mulf %163, %71 : vector<32x32xf32>
    %165 = arith.addf %159, %164 : vector<32x32xf32>
    %166 = arith.subf %22, %19 : vector<1x32xf32>
    %167 = tpu.reciprocal %166 : vector<1x32xf32> -> vector<1x32xf32>
    %168 = arith.subf %25, %22 : vector<1x32xf32>
    %169 = tpu.reciprocal %168 : vector<1x32xf32> -> vector<1x32xf32>
    %170 = vector.broadcast %19 : vector<1x32xf32> to vector<32x32xf32>
    %171 = arith.subf %7, %170 : vector<32x32xf32>
    %172 = vector.broadcast %167 : vector<1x32xf32> to vector<32x32xf32>
    %173 = arith.mulf %171, %172 : vector<32x32xf32>
    %174 = arith.mulf %173, %71 : vector<32x32xf32>
    %175 = vector.broadcast %25 : vector<1x32xf32> to vector<32x32xf32>
    %176 = arith.subf %175, %7 : vector<32x32xf32>
    %177 = vector.broadcast %169 : vector<1x32xf32> to vector<32x32xf32>
    %178 = arith.mulf %176, %177 : vector<32x32xf32>
    %179 = arith.mulf %178, %78 : vector<32x32xf32>
    %180 = arith.addf %174, %179 : vector<32x32xf32>
    %181 = arith.subf %25, %22 : vector<1x32xf32>
    %182 = tpu.reciprocal %181 : vector<1x32xf32> -> vector<1x32xf32>
    %183 = arith.subf %28, %25 : vector<1x32xf32>
    %184 = tpu.reciprocal %183 : vector<1x32xf32> -> vector<1x32xf32>
    %185 = vector.broadcast %22 : vector<1x32xf32> to vector<32x32xf32>
    %186 = arith.subf %7, %185 : vector<32x32xf32>
    %187 = vector.broadcast %182 : vector<1x32xf32> to vector<32x32xf32>
    %188 = arith.mulf %186, %187 : vector<32x32xf32>
    %189 = arith.mulf %188, %78 : vector<32x32xf32>
    %190 = vector.broadcast %28 : vector<1x32xf32> to vector<32x32xf32>
    %191 = arith.subf %190, %7 : vector<32x32xf32>
    %192 = vector.broadcast %184 : vector<1x32xf32> to vector<32x32xf32>
    %193 = arith.mulf %191, %192 : vector<32x32xf32>
    %194 = arith.mulf %193, %85 : vector<32x32xf32>
    %195 = arith.addf %189, %194 : vector<32x32xf32>
    %196 = arith.subf %28, %25 : vector<1x32xf32>
    %197 = tpu.reciprocal %196 : vector<1x32xf32> -> vector<1x32xf32>
    %198 = arith.subf %31, %28 : vector<1x32xf32>
    %199 = tpu.reciprocal %198 : vector<1x32xf32> -> vector<1x32xf32>
    %200 = vector.broadcast %25 : vector<1x32xf32> to vector<32x32xf32>
    %201 = arith.subf %7, %200 : vector<32x32xf32>
    %202 = vector.broadcast %197 : vector<1x32xf32> to vector<32x32xf32>
    %203 = arith.mulf %201, %202 : vector<32x32xf32>
    %204 = arith.mulf %203, %85 : vector<32x32xf32>
    %205 = vector.broadcast %31 : vector<1x32xf32> to vector<32x32xf32>
    %206 = arith.subf %205, %7 : vector<32x32xf32>
    %207 = vector.broadcast %199 : vector<1x32xf32> to vector<32x32xf32>
    %208 = arith.mulf %206, %207 : vector<32x32xf32>
    %209 = arith.mulf %208, %92 : vector<32x32xf32>
    %210 = arith.addf %204, %209 : vector<32x32xf32>
    %211 = arith.subf %31, %28 : vector<1x32xf32>
    %212 = tpu.reciprocal %211 : vector<1x32xf32> -> vector<1x32xf32>
    %213 = arith.subf %34, %31 : vector<1x32xf32>
    %214 = tpu.reciprocal %213 : vector<1x32xf32> -> vector<1x32xf32>
    %215 = vector.broadcast %28 : vector<1x32xf32> to vector<32x32xf32>
    %216 = arith.subf %7, %215 : vector<32x32xf32>
    %217 = vector.broadcast %212 : vector<1x32xf32> to vector<32x32xf32>
    %218 = arith.mulf %216, %217 : vector<32x32xf32>
    %219 = arith.mulf %218, %92 : vector<32x32xf32>
    %220 = vector.broadcast %34 : vector<1x32xf32> to vector<32x32xf32>
    %221 = arith.subf %220, %7 : vector<32x32xf32>
    %222 = vector.broadcast %214 : vector<1x32xf32> to vector<32x32xf32>
    %223 = arith.mulf %221, %222 : vector<32x32xf32>
    %224 = arith.mulf %223, %99 : vector<32x32xf32>
    %225 = arith.addf %219, %224 : vector<32x32xf32>
    %226 = arith.subf %34, %31 : vector<1x32xf32>
    %227 = tpu.reciprocal %226 : vector<1x32xf32> -> vector<1x32xf32>
    %228 = arith.subf %37, %34 : vector<1x32xf32>
    %229 = tpu.reciprocal %228 : vector<1x32xf32> -> vector<1x32xf32>
    %230 = vector.broadcast %31 : vector<1x32xf32> to vector<32x32xf32>
    %231 = arith.subf %7, %230 : vector<32x32xf32>
    %232 = vector.broadcast %227 : vector<1x32xf32> to vector<32x32xf32>
    %233 = arith.mulf %231, %232 : vector<32x32xf32>
    %234 = arith.mulf %233, %99 : vector<32x32xf32>
    %235 = vector.broadcast %37 : vector<1x32xf32> to vector<32x32xf32>
    %236 = arith.subf %235, %7 : vector<32x32xf32>
    %237 = vector.broadcast %229 : vector<1x32xf32> to vector<32x32xf32>
    %238 = arith.mulf %236, %237 : vector<32x32xf32>
    %239 = arith.mulf %238, %106 : vector<32x32xf32>
    %240 = arith.addf %234, %239 : vector<32x32xf32>
    %241 = arith.subf %37, %34 : vector<1x32xf32>
    %242 = tpu.reciprocal %241 : vector<1x32xf32> -> vector<1x32xf32>
    %243 = arith.subf %40, %37 : vector<1x32xf32>
    %244 = tpu.reciprocal %243 : vector<1x32xf32> -> vector<1x32xf32>
    %245 = vector.broadcast %34 : vector<1x32xf32> to vector<32x32xf32>
    %246 = arith.subf %7, %245 : vector<32x32xf32>
    %247 = vector.broadcast %242 : vector<1x32xf32> to vector<32x32xf32>
    %248 = arith.mulf %246, %247 : vector<32x32xf32>
    %249 = arith.mulf %248, %106 : vector<32x32xf32>
    %250 = vector.broadcast %40 : vector<1x32xf32> to vector<32x32xf32>
    %251 = arith.subf %250, %7 : vector<32x32xf32>
    %252 = vector.broadcast %244 : vector<1x32xf32> to vector<32x32xf32>
    %253 = arith.mulf %251, %252 : vector<32x32xf32>
    %254 = arith.mulf %253, %113 : vector<32x32xf32>
    %255 = arith.addf %249, %254 : vector<32x32xf32>
    %256 = arith.subf %40, %37 : vector<1x32xf32>
    %257 = tpu.reciprocal %256 : vector<1x32xf32> -> vector<1x32xf32>
    %258 = arith.subf %43, %40 : vector<1x32xf32>
    %259 = tpu.reciprocal %258 : vector<1x32xf32> -> vector<1x32xf32>
    %260 = vector.broadcast %37 : vector<1x32xf32> to vector<32x32xf32>
    %261 = arith.subf %7, %260 : vector<32x32xf32>
    %262 = vector.broadcast %257 : vector<1x32xf32> to vector<32x32xf32>
    %263 = arith.mulf %261, %262 : vector<32x32xf32>
    %264 = arith.mulf %263, %113 : vector<32x32xf32>
    %265 = vector.broadcast %43 : vector<1x32xf32> to vector<32x32xf32>
    %266 = arith.subf %265, %7 : vector<32x32xf32>
    %267 = vector.broadcast %259 : vector<1x32xf32> to vector<32x32xf32>
    %268 = arith.mulf %266, %267 : vector<32x32xf32>
    %269 = arith.mulf %268, %120 : vector<32x32xf32>
    %270 = arith.addf %264, %269 : vector<32x32xf32>
    %271 = arith.subf %16, %10 : vector<1x32xf32>
    %272 = tpu.reciprocal %271 : vector<1x32xf32> -> vector<1x32xf32>
    %273 = arith.subf %19, %13 : vector<1x32xf32>
    %274 = tpu.reciprocal %273 : vector<1x32xf32> -> vector<1x32xf32>
    %275 = vector.broadcast %10 : vector<1x32xf32> to vector<32x32xf32>
    %276 = arith.subf %7, %275 : vector<32x32xf32>
    %277 = vector.broadcast %272 : vector<1x32xf32> to vector<32x32xf32>
    %278 = arith.mulf %276, %277 : vector<32x32xf32>
    %279 = arith.mulf %278, %135 : vector<32x32xf32>
    %280 = vector.broadcast %19 : vector<1x32xf32> to vector<32x32xf32>
    %281 = arith.subf %280, %7 : vector<32x32xf32>
    %282 = vector.broadcast %274 : vector<1x32xf32> to vector<32x32xf32>
    %283 = arith.mulf %281, %282 : vector<32x32xf32>
    %284 = arith.mulf %283, %150 : vector<32x32xf32>
    %285 = arith.addf %279, %284 : vector<32x32xf32>
    %286 = arith.subf %19, %13 : vector<1x32xf32>
    %287 = tpu.reciprocal %286 : vector<1x32xf32> -> vector<1x32xf32>
    %288 = arith.subf %22, %16 : vector<1x32xf32>
    %289 = tpu.reciprocal %288 : vector<1x32xf32> -> vector<1x32xf32>
    %290 = vector.broadcast %13 : vector<1x32xf32> to vector<32x32xf32>
    %291 = arith.subf %7, %290 : vector<32x32xf32>
    %292 = vector.broadcast %287 : vector<1x32xf32> to vector<32x32xf32>
    %293 = arith.mulf %291, %292 : vector<32x32xf32>
    %294 = arith.mulf %293, %150 : vector<32x32xf32>
    %295 = vector.broadcast %22 : vector<1x32xf32> to vector<32x32xf32>
    %296 = arith.subf %295, %7 : vector<32x32xf32>
    %297 = vector.broadcast %289 : vector<1x32xf32> to vector<32x32xf32>
    %298 = arith.mulf %296, %297 : vector<32x32xf32>
    %299 = arith.mulf %298, %165 : vector<32x32xf32>
    %300 = arith.addf %294, %299 : vector<32x32xf32>
    %301 = arith.subf %22, %16 : vector<1x32xf32>
    %302 = tpu.reciprocal %301 : vector<1x32xf32> -> vector<1x32xf32>
    %303 = arith.subf %25, %19 : vector<1x32xf32>
    %304 = tpu.reciprocal %303 : vector<1x32xf32> -> vector<1x32xf32>
    %305 = vector.broadcast %16 : vector<1x32xf32> to vector<32x32xf32>
    %306 = arith.subf %7, %305 : vector<32x32xf32>
    %307 = vector.broadcast %302 : vector<1x32xf32> to vector<32x32xf32>
    %308 = arith.mulf %306, %307 : vector<32x32xf32>
    %309 = arith.mulf %308, %165 : vector<32x32xf32>
    %310 = vector.broadcast %25 : vector<1x32xf32> to vector<32x32xf32>
    %311 = arith.subf %310, %7 : vector<32x32xf32>
    %312 = vector.broadcast %304 : vector<1x32xf32> to vector<32x32xf32>
    %313 = arith.mulf %311, %312 : vector<32x32xf32>
    %314 = arith.mulf %313, %180 : vector<32x32xf32>
    %315 = arith.addf %309, %314 : vector<32x32xf32>
    %316 = arith.subf %25, %19 : vector<1x32xf32>
    %317 = tpu.reciprocal %316 : vector<1x32xf32> -> vector<1x32xf32>
    %318 = arith.subf %28, %22 : vector<1x32xf32>
    %319 = tpu.reciprocal %318 : vector<1x32xf32> -> vector<1x32xf32>
    %320 = vector.broadcast %19 : vector<1x32xf32> to vector<32x32xf32>
    %321 = arith.subf %7, %320 : vector<32x32xf32>
    %322 = vector.broadcast %317 : vector<1x32xf32> to vector<32x32xf32>
    %323 = arith.mulf %321, %322 : vector<32x32xf32>
    %324 = arith.mulf %323, %180 : vector<32x32xf32>
    %325 = vector.broadcast %28 : vector<1x32xf32> to vector<32x32xf32>
    %326 = arith.subf %325, %7 : vector<32x32xf32>
    %327 = vector.broadcast %319 : vector<1x32xf32> to vector<32x32xf32>
    %328 = arith.mulf %326, %327 : vector<32x32xf32>
    %329 = arith.mulf %328, %195 : vector<32x32xf32>
    %330 = arith.addf %324, %329 : vector<32x32xf32>
    %331 = arith.subf %28, %22 : vector<1x32xf32>
    %332 = tpu.reciprocal %331 : vector<1x32xf32> -> vector<1x32xf32>
    %333 = arith.subf %31, %25 : vector<1x32xf32>
    %334 = tpu.reciprocal %333 : vector<1x32xf32> -> vector<1x32xf32>
    %335 = vector.broadcast %22 : vector<1x32xf32> to vector<32x32xf32>
    %336 = arith.subf %7, %335 : vector<32x32xf32>
    %337 = vector.broadcast %332 : vector<1x32xf32> to vector<32x32xf32>
    %338 = arith.mulf %336, %337 : vector<32x32xf32>
    %339 = arith.mulf %338, %195 : vector<32x32xf32>
    %340 = vector.broadcast %31 : vector<1x32xf32> to vector<32x32xf32>
    %341 = arith.subf %340, %7 : vector<32x32xf32>
    %342 = vector.broadcast %334 : vector<1x32xf32> to vector<32x32xf32>
    %343 = arith.mulf %341, %342 : vector<32x32xf32>
    %344 = arith.mulf %343, %210 : vector<32x32xf32>
    %345 = arith.addf %339, %344 : vector<32x32xf32>
    %346 = arith.subf %31, %25 : vector<1x32xf32>
    %347 = tpu.reciprocal %346 : vector<1x32xf32> -> vector<1x32xf32>
    %348 = arith.subf %34, %28 : vector<1x32xf32>
    %349 = tpu.reciprocal %348 : vector<1x32xf32> -> vector<1x32xf32>
    %350 = vector.broadcast %25 : vector<1x32xf32> to vector<32x32xf32>
    %351 = arith.subf %7, %350 : vector<32x32xf32>
    %352 = vector.broadcast %347 : vector<1x32xf32> to vector<32x32xf32>
    %353 = arith.mulf %351, %352 : vector<32x32xf32>
    %354 = arith.mulf %353, %210 : vector<32x32xf32>
    %355 = vector.broadcast %34 : vector<1x32xf32> to vector<32x32xf32>
    %356 = arith.subf %355, %7 : vector<32x32xf32>
    %357 = vector.broadcast %349 : vector<1x32xf32> to vector<32x32xf32>
    %358 = arith.mulf %356, %357 : vector<32x32xf32>
    %359 = arith.mulf %358, %225 : vector<32x32xf32>
    %360 = arith.addf %354, %359 : vector<32x32xf32>
    %361 = arith.subf %34, %28 : vector<1x32xf32>
    %362 = tpu.reciprocal %361 : vector<1x32xf32> -> vector<1x32xf32>
    %363 = arith.subf %37, %31 : vector<1x32xf32>
    %364 = tpu.reciprocal %363 : vector<1x32xf32> -> vector<1x32xf32>
    %365 = vector.broadcast %28 : vector<1x32xf32> to vector<32x32xf32>
    %366 = arith.subf %7, %365 : vector<32x32xf32>
    %367 = vector.broadcast %362 : vector<1x32xf32> to vector<32x32xf32>
    %368 = arith.mulf %366, %367 : vector<32x32xf32>
    %369 = arith.mulf %368, %225 : vector<32x32xf32>
    %370 = vector.broadcast %37 : vector<1x32xf32> to vector<32x32xf32>
    %371 = arith.subf %370, %7 : vector<32x32xf32>
    %372 = vector.broadcast %364 : vector<1x32xf32> to vector<32x32xf32>
    %373 = arith.mulf %371, %372 : vector<32x32xf32>
    %374 = arith.mulf %373, %240 : vector<32x32xf32>
    %375 = arith.addf %369, %374 : vector<32x32xf32>
    %376 = arith.subf %37, %31 : vector<1x32xf32>
    %377 = tpu.reciprocal %376 : vector<1x32xf32> -> vector<1x32xf32>
    %378 = arith.subf %40, %34 : vector<1x32xf32>
    %379 = tpu.reciprocal %378 : vector<1x32xf32> -> vector<1x32xf32>
    %380 = vector.broadcast %31 : vector<1x32xf32> to vector<32x32xf32>
    %381 = arith.subf %7, %380 : vector<32x32xf32>
    %382 = vector.broadcast %377 : vector<1x32xf32> to vector<32x32xf32>
    %383 = arith.mulf %381, %382 : vector<32x32xf32>
    %384 = arith.mulf %383, %240 : vector<32x32xf32>
    %385 = vector.broadcast %40 : vector<1x32xf32> to vector<32x32xf32>
    %386 = arith.subf %385, %7 : vector<32x32xf32>
    %387 = vector.broadcast %379 : vector<1x32xf32> to vector<32x32xf32>
    %388 = arith.mulf %386, %387 : vector<32x32xf32>
    %389 = arith.mulf %388, %255 : vector<32x32xf32>
    %390 = arith.addf %384, %389 : vector<32x32xf32>
    %391 = arith.subf %40, %34 : vector<1x32xf32>
    %392 = tpu.reciprocal %391 : vector<1x32xf32> -> vector<1x32xf32>
    %393 = arith.subf %43, %37 : vector<1x32xf32>
    %394 = tpu.reciprocal %393 : vector<1x32xf32> -> vector<1x32xf32>
    %395 = vector.broadcast %34 : vector<1x32xf32> to vector<32x32xf32>
    %396 = arith.subf %7, %395 : vector<32x32xf32>
    %397 = vector.broadcast %392 : vector<1x32xf32> to vector<32x32xf32>
    %398 = arith.mulf %396, %397 : vector<32x32xf32>
    %399 = arith.mulf %398, %255 : vector<32x32xf32>
    %400 = vector.broadcast %43 : vector<1x32xf32> to vector<32x32xf32>
    %401 = arith.subf %400, %7 : vector<32x32xf32>
    %402 = vector.broadcast %394 : vector<1x32xf32> to vector<32x32xf32>
    %403 = arith.mulf %401, %402 : vector<32x32xf32>
    %404 = arith.mulf %403, %270 : vector<32x32xf32>
    %405 = arith.addf %399, %404 : vector<32x32xf32>
    %406 = arith.subf %19, %10 : vector<1x32xf32>
    %407 = tpu.reciprocal %406 : vector<1x32xf32> -> vector<1x32xf32>
    %408 = arith.subf %22, %13 : vector<1x32xf32>
    %409 = tpu.reciprocal %408 : vector<1x32xf32> -> vector<1x32xf32>
    %410 = vector.broadcast %10 : vector<1x32xf32> to vector<32x32xf32>
    %411 = arith.subf %7, %410 : vector<32x32xf32>
    %412 = vector.broadcast %407 : vector<1x32xf32> to vector<32x32xf32>
    %413 = arith.mulf %411, %412 : vector<32x32xf32>
    %414 = arith.mulf %413, %285 : vector<32x32xf32>
    %415 = vector.broadcast %22 : vector<1x32xf32> to vector<32x32xf32>
    %416 = arith.subf %415, %7 : vector<32x32xf32>
    %417 = vector.broadcast %409 : vector<1x32xf32> to vector<32x32xf32>
    %418 = arith.mulf %416, %417 : vector<32x32xf32>
    %419 = arith.mulf %418, %300 : vector<32x32xf32>
    %420 = arith.addf %414, %419 : vector<32x32xf32>
    %421 = arith.subf %22, %13 : vector<1x32xf32>
    %422 = tpu.reciprocal %421 : vector<1x32xf32> -> vector<1x32xf32>
    %423 = arith.subf %25, %16 : vector<1x32xf32>
    %424 = tpu.reciprocal %423 : vector<1x32xf32> -> vector<1x32xf32>
    %425 = vector.broadcast %13 : vector<1x32xf32> to vector<32x32xf32>
    %426 = arith.subf %7, %425 : vector<32x32xf32>
    %427 = vector.broadcast %422 : vector<1x32xf32> to vector<32x32xf32>
    %428 = arith.mulf %426, %427 : vector<32x32xf32>
    %429 = arith.mulf %428, %300 : vector<32x32xf32>
    %430 = vector.broadcast %25 : vector<1x32xf32> to vector<32x32xf32>
    %431 = arith.subf %430, %7 : vector<32x32xf32>
    %432 = vector.broadcast %424 : vector<1x32xf32> to vector<32x32xf32>
    %433 = arith.mulf %431, %432 : vector<32x32xf32>
    %434 = arith.mulf %433, %315 : vector<32x32xf32>
    %435 = arith.addf %429, %434 : vector<32x32xf32>
    %436 = arith.subf %25, %16 : vector<1x32xf32>
    %437 = tpu.reciprocal %436 : vector<1x32xf32> -> vector<1x32xf32>
    %438 = arith.subf %28, %19 : vector<1x32xf32>
    %439 = tpu.reciprocal %438 : vector<1x32xf32> -> vector<1x32xf32>
    %440 = vector.broadcast %16 : vector<1x32xf32> to vector<32x32xf32>
    %441 = arith.subf %7, %440 : vector<32x32xf32>
    %442 = vector.broadcast %437 : vector<1x32xf32> to vector<32x32xf32>
    %443 = arith.mulf %441, %442 : vector<32x32xf32>
    %444 = arith.mulf %443, %315 : vector<32x32xf32>
    %445 = vector.broadcast %28 : vector<1x32xf32> to vector<32x32xf32>
    %446 = arith.subf %445, %7 : vector<32x32xf32>
    %447 = vector.broadcast %439 : vector<1x32xf32> to vector<32x32xf32>
    %448 = arith.mulf %446, %447 : vector<32x32xf32>
    %449 = arith.mulf %448, %330 : vector<32x32xf32>
    %450 = arith.addf %444, %449 : vector<32x32xf32>
    %451 = arith.subf %28, %19 : vector<1x32xf32>
    %452 = tpu.reciprocal %451 : vector<1x32xf32> -> vector<1x32xf32>
    %453 = arith.subf %31, %22 : vector<1x32xf32>
    %454 = tpu.reciprocal %453 : vector<1x32xf32> -> vector<1x32xf32>
    %455 = vector.broadcast %19 : vector<1x32xf32> to vector<32x32xf32>
    %456 = arith.subf %7, %455 : vector<32x32xf32>
    %457 = vector.broadcast %452 : vector<1x32xf32> to vector<32x32xf32>
    %458 = arith.mulf %456, %457 : vector<32x32xf32>
    %459 = arith.mulf %458, %330 : vector<32x32xf32>
    %460 = vector.broadcast %31 : vector<1x32xf32> to vector<32x32xf32>
    %461 = arith.subf %460, %7 : vector<32x32xf32>
    %462 = vector.broadcast %454 : vector<1x32xf32> to vector<32x32xf32>
    %463 = arith.mulf %461, %462 : vector<32x32xf32>
    %464 = arith.mulf %463, %345 : vector<32x32xf32>
    %465 = arith.addf %459, %464 : vector<32x32xf32>
    %466 = arith.subf %31, %22 : vector<1x32xf32>
    %467 = tpu.reciprocal %466 : vector<1x32xf32> -> vector<1x32xf32>
    %468 = arith.subf %34, %25 : vector<1x32xf32>
    %469 = tpu.reciprocal %468 : vector<1x32xf32> -> vector<1x32xf32>
    %470 = vector.broadcast %22 : vector<1x32xf32> to vector<32x32xf32>
    %471 = arith.subf %7, %470 : vector<32x32xf32>
    %472 = vector.broadcast %467 : vector<1x32xf32> to vector<32x32xf32>
    %473 = arith.mulf %471, %472 : vector<32x32xf32>
    %474 = arith.mulf %473, %345 : vector<32x32xf32>
    %475 = vector.broadcast %34 : vector<1x32xf32> to vector<32x32xf32>
    %476 = arith.subf %475, %7 : vector<32x32xf32>
    %477 = vector.broadcast %469 : vector<1x32xf32> to vector<32x32xf32>
    %478 = arith.mulf %476, %477 : vector<32x32xf32>
    %479 = arith.mulf %478, %360 : vector<32x32xf32>
    %480 = arith.addf %474, %479 : vector<32x32xf32>
    %481 = arith.subf %34, %25 : vector<1x32xf32>
    %482 = tpu.reciprocal %481 : vector<1x32xf32> -> vector<1x32xf32>
    %483 = arith.subf %37, %28 : vector<1x32xf32>
    %484 = tpu.reciprocal %483 : vector<1x32xf32> -> vector<1x32xf32>
    %485 = vector.broadcast %25 : vector<1x32xf32> to vector<32x32xf32>
    %486 = arith.subf %7, %485 : vector<32x32xf32>
    %487 = vector.broadcast %482 : vector<1x32xf32> to vector<32x32xf32>
    %488 = arith.mulf %486, %487 : vector<32x32xf32>
    %489 = arith.mulf %488, %360 : vector<32x32xf32>
    %490 = vector.broadcast %37 : vector<1x32xf32> to vector<32x32xf32>
    %491 = arith.subf %490, %7 : vector<32x32xf32>
    %492 = vector.broadcast %484 : vector<1x32xf32> to vector<32x32xf32>
    %493 = arith.mulf %491, %492 : vector<32x32xf32>
    %494 = arith.mulf %493, %375 : vector<32x32xf32>
    %495 = arith.addf %489, %494 : vector<32x32xf32>
    %496 = arith.subf %37, %28 : vector<1x32xf32>
    %497 = tpu.reciprocal %496 : vector<1x32xf32> -> vector<1x32xf32>
    %498 = arith.subf %40, %31 : vector<1x32xf32>
    %499 = tpu.reciprocal %498 : vector<1x32xf32> -> vector<1x32xf32>
    %500 = vector.broadcast %28 : vector<1x32xf32> to vector<32x32xf32>
    %501 = arith.subf %7, %500 : vector<32x32xf32>
    %502 = vector.broadcast %497 : vector<1x32xf32> to vector<32x32xf32>
    %503 = arith.mulf %501, %502 : vector<32x32xf32>
    %504 = arith.mulf %503, %375 : vector<32x32xf32>
    %505 = vector.broadcast %40 : vector<1x32xf32> to vector<32x32xf32>
    %506 = arith.subf %505, %7 : vector<32x32xf32>
    %507 = vector.broadcast %499 : vector<1x32xf32> to vector<32x32xf32>
    %508 = arith.mulf %506, %507 : vector<32x32xf32>
    %509 = arith.mulf %508, %390 : vector<32x32xf32>
    %510 = arith.addf %504, %509 : vector<32x32xf32>
    %511 = arith.subf %40, %31 : vector<1x32xf32>
    %512 = tpu.reciprocal %511 : vector<1x32xf32> -> vector<1x32xf32>
    %513 = arith.subf %43, %34 : vector<1x32xf32>
    %514 = tpu.reciprocal %513 : vector<1x32xf32> -> vector<1x32xf32>
    %515 = vector.broadcast %31 : vector<1x32xf32> to vector<32x32xf32>
    %516 = arith.subf %7, %515 : vector<32x32xf32>
    %517 = vector.broadcast %512 : vector<1x32xf32> to vector<32x32xf32>
    %518 = arith.mulf %516, %517 : vector<32x32xf32>
    %519 = arith.mulf %518, %390 : vector<32x32xf32>
    %520 = vector.broadcast %43 : vector<1x32xf32> to vector<32x32xf32>
    %521 = arith.subf %520, %7 : vector<32x32xf32>
    %522 = vector.broadcast %514 : vector<1x32xf32> to vector<32x32xf32>
    %523 = arith.mulf %521, %522 : vector<32x32xf32>
    %524 = arith.mulf %523, %405 : vector<32x32xf32>
    %525 = arith.addf %519, %524 : vector<32x32xf32>
    %526 = vector.extract_strided_slice %4 {offsets = [0, 0], sizes = [1, 32], strides = [1, 1]} : vector<8x32xf32> to vector<1x32xf32>
    %527 = vector.shape_cast %526 : vector<1x32xf32> to vector<32xf32>
    %528 = vector.shape_cast %527 : vector<32xf32> to vector<1x32xf32>
    %529 = vector.broadcast %528 : vector<1x32xf32> to vector<32x32xf32>
    %530 = arith.mulf %529, %420 : vector<32x32xf32>
    %531 = vector.extract_strided_slice %4 {offsets = [1, 0], sizes = [1, 32], strides = [1, 1]} : vector<8x32xf32> to vector<1x32xf32>
    %532 = vector.shape_cast %531 : vector<1x32xf32> to vector<32xf32>
    %533 = vector.shape_cast %532 : vector<32xf32> to vector<1x32xf32>
    %534 = vector.broadcast %533 : vector<1x32xf32> to vector<32x32xf32>
    %535 = arith.mulf %534, %435 : vector<32x32xf32>
    %536 = arith.addf %530, %535 : vector<32x32xf32>
    %537 = vector.extract_strided_slice %4 {offsets = [2, 0], sizes = [1, 32], strides = [1, 1]} : vector<8x32xf32> to vector<1x32xf32>
    %538 = vector.shape_cast %537 : vector<1x32xf32> to vector<32xf32>
    %539 = vector.shape_cast %538 : vector<32xf32> to vector<1x32xf32>
    %540 = vector.broadcast %539 : vector<1x32xf32> to vector<32x32xf32>
    %541 = arith.mulf %540, %450 : vector<32x32xf32>
    %542 = arith.addf %536, %541 : vector<32x32xf32>
    %543 = vector.extract_strided_slice %4 {offsets = [3, 0], sizes = [1, 32], strides = [1, 1]} : vector<8x32xf32> to vector<1x32xf32>
    %544 = vector.shape_cast %543 : vector<1x32xf32> to vector<32xf32>
    %545 = vector.shape_cast %544 : vector<32xf32> to vector<1x32xf32>
    %546 = vector.broadcast %545 : vector<1x32xf32> to vector<32x32xf32>
    %547 = arith.mulf %546, %465 : vector<32x32xf32>
    %548 = arith.addf %542, %547 : vector<32x32xf32>
    %549 = vector.extract_strided_slice %4 {offsets = [4, 0], sizes = [1, 32], strides = [1, 1]} : vector<8x32xf32> to vector<1x32xf32>
    %550 = vector.shape_cast %549 : vector<1x32xf32> to vector<32xf32>
    %551 = vector.shape_cast %550 : vector<32xf32> to vector<1x32xf32>
    %552 = vector.broadcast %551 : vector<1x32xf32> to vector<32x32xf32>
    %553 = arith.mulf %552, %480 : vector<32x32xf32>
    %554 = arith.addf %548, %553 : vector<32x32xf32>
    %555 = vector.extract_strided_slice %4 {offsets = [5, 0], sizes = [1, 32], strides = [1, 1]} : vector<8x32xf32> to vector<1x32xf32>
    %556 = vector.shape_cast %555 : vector<1x32xf32> to vector<32xf32>
    %557 = vector.shape_cast %556 : vector<32xf32> to vector<1x32xf32>
    %558 = vector.broadcast %557 : vector<1x32xf32> to vector<32x32xf32>
    %559 = arith.mulf %558, %495 : vector<32x32xf32>
    %560 = arith.addf %554, %559 : vector<32x32xf32>
    %561 = vector.extract_strided_slice %4 {offsets = [6, 0], sizes = [1, 32], strides = [1, 1]} : vector<8x32xf32> to vector<1x32xf32>
    %562 = vector.shape_cast %561 : vector<1x32xf32> to vector<32xf32>
    %563 = vector.shape_cast %562 : vector<32xf32> to vector<1x32xf32>
    %564 = vector.broadcast %563 : vector<1x32xf32> to vector<32x32xf32>
    %565 = arith.mulf %564, %510 : vector<32x32xf32>
    %566 = arith.addf %560, %565 : vector<32x32xf32>
    %567 = vector.extract_strided_slice %4 {offsets = [7, 0], sizes = [1, 32], strides = [1, 1]} : vector<8x32xf32> to vector<1x32xf32>
    %568 = vector.shape_cast %567 : vector<1x32xf32> to vector<32xf32>
    %569 = vector.shape_cast %568 : vector<32xf32> to vector<1x32xf32>
    %570 = vector.broadcast %569 : vector<1x32xf32> to vector<32x32xf32>
    %571 = arith.mulf %570, %525 : vector<32x32xf32>
    %572 = arith.addf %566, %571 : vector<32x32xf32>
    %c0_9 = arith.constant 0 : index
    %c0_10 = arith.constant 0 : index
    %573 = vector.load %arg6[%c0_9, %c0_10] : memref<32x32xf32, #tpu.memory_space<vmem>>, vector<32x32xf32>
    %c0_11 = arith.constant 0 : index
    %c0_12 = arith.constant 0 : index
    %574 = vector.load %arg7[%c0_11, %c0_12] : memref<1x32xf32, #tpu.memory_space<vmem>>, vector<1x32xf32>
    %c0_13 = arith.constant 0 : index
    %c0_14 = arith.constant 0 : index
    %575 = vector.load %arg8[%c0_13, %c0_14] : memref<12x32xf32, #tpu.memory_space<vmem>>, vector<12x32xf32>
    %c0_15 = arith.constant 0 : index
    %c0_16 = arith.constant 0 : index
    %576 = vector.load %arg9[%c0_15, %c0_16] : memref<8x32xf32, #tpu.memory_space<vmem>>, vector<8x32xf32>
    %cst_17 = arith.constant dense<0.000000e+00> : vector<32x32xf32>
    %577 = tpu.matmul %572, %573, %cst_17 {dimension_numbers = #tpu.dot_dimension_numbers<[1], [0], [0], [1], [0, 0, 1, 1], [], []>} : vector<32x32xf32>, vector<32x32xf32>, vector<32x32xf32> -> vector<32x32xf32>
    %578 = vector.broadcast %574 : vector<1x32xf32> to vector<32x32xf32>
    %579 = arith.addf %577, %578 : vector<32x32xf32>
    %580 = vector.extract_strided_slice %575 {offsets = [0, 0], sizes = [1, 32], strides = [1, 1]} : vector<12x32xf32> to vector<1x32xf32>
    %581 = vector.shape_cast %580 : vector<1x32xf32> to vector<32xf32>
    %582 = vector.shape_cast %581 : vector<32xf32> to vector<1x32xf32>
    %583 = vector.extract_strided_slice %575 {offsets = [1, 0], sizes = [1, 32], strides = [1, 1]} : vector<12x32xf32> to vector<1x32xf32>
    %584 = vector.shape_cast %583 : vector<1x32xf32> to vector<32xf32>
    %585 = vector.shape_cast %584 : vector<32xf32> to vector<1x32xf32>
    %586 = vector.extract_strided_slice %575 {offsets = [2, 0], sizes = [1, 32], strides = [1, 1]} : vector<12x32xf32> to vector<1x32xf32>
    %587 = vector.shape_cast %586 : vector<1x32xf32> to vector<32xf32>
    %588 = vector.shape_cast %587 : vector<32xf32> to vector<1x32xf32>
    %589 = vector.extract_strided_slice %575 {offsets = [3, 0], sizes = [1, 32], strides = [1, 1]} : vector<12x32xf32> to vector<1x32xf32>
    %590 = vector.shape_cast %589 : vector<1x32xf32> to vector<32xf32>
    %591 = vector.shape_cast %590 : vector<32xf32> to vector<1x32xf32>
    %592 = vector.extract_strided_slice %575 {offsets = [4, 0], sizes = [1, 32], strides = [1, 1]} : vector<12x32xf32> to vector<1x32xf32>
    %593 = vector.shape_cast %592 : vector<1x32xf32> to vector<32xf32>
    %594 = vector.shape_cast %593 : vector<32xf32> to vector<1x32xf32>
    %595 = vector.extract_strided_slice %575 {offsets = [5, 0], sizes = [1, 32], strides = [1, 1]} : vector<12x32xf32> to vector<1x32xf32>
    %596 = vector.shape_cast %595 : vector<1x32xf32> to vector<32xf32>
    %597 = vector.shape_cast %596 : vector<32xf32> to vector<1x32xf32>
    %598 = vector.extract_strided_slice %575 {offsets = [6, 0], sizes = [1, 32], strides = [1, 1]} : vector<12x32xf32> to vector<1x32xf32>
    %599 = vector.shape_cast %598 : vector<1x32xf32> to vector<32xf32>
    %600 = vector.shape_cast %599 : vector<32xf32> to vector<1x32xf32>
    %601 = vector.extract_strided_slice %575 {offsets = [7, 0], sizes = [1, 32], strides = [1, 1]} : vector<12x32xf32> to vector<1x32xf32>
    %602 = vector.shape_cast %601 : vector<1x32xf32> to vector<32xf32>
    %603 = vector.shape_cast %602 : vector<32xf32> to vector<1x32xf32>
    %604 = vector.extract_strided_slice %575 {offsets = [8, 0], sizes = [1, 32], strides = [1, 1]} : vector<12x32xf32> to vector<1x32xf32>
    %605 = vector.shape_cast %604 : vector<1x32xf32> to vector<32xf32>
    %606 = vector.shape_cast %605 : vector<32xf32> to vector<1x32xf32>
    %607 = vector.extract_strided_slice %575 {offsets = [9, 0], sizes = [1, 32], strides = [1, 1]} : vector<12x32xf32> to vector<1x32xf32>
    %608 = vector.shape_cast %607 : vector<1x32xf32> to vector<32xf32>
    %609 = vector.shape_cast %608 : vector<32xf32> to vector<1x32xf32>
    %610 = vector.extract_strided_slice %575 {offsets = [10, 0], sizes = [1, 32], strides = [1, 1]} : vector<12x32xf32> to vector<1x32xf32>
    %611 = vector.shape_cast %610 : vector<1x32xf32> to vector<32xf32>
    %612 = vector.shape_cast %611 : vector<32xf32> to vector<1x32xf32>
    %613 = vector.extract_strided_slice %575 {offsets = [11, 0], sizes = [1, 32], strides = [1, 1]} : vector<12x32xf32> to vector<1x32xf32>
    %614 = vector.shape_cast %613 : vector<1x32xf32> to vector<32xf32>
    %615 = vector.shape_cast %614 : vector<32xf32> to vector<1x32xf32>
    %616 = vector.broadcast %582 : vector<1x32xf32> to vector<32x32xf32>
    %617 = arith.cmpf oge, %579, %616 : vector<32x32xf32>
    %618 = vector.broadcast %585 : vector<1x32xf32> to vector<32x32xf32>
    %619 = arith.cmpf olt, %579, %618 : vector<32x32xf32>
    %620 = arith.andi %617, %619 : vector<32x32xi1>
    %621 = arith.extui %620 : vector<32x32xi1> to vector<32x32xi32>
    %622 = arith.sitofp %621 : vector<32x32xi32> to vector<32x32xf32>
    %623 = vector.broadcast %585 : vector<1x32xf32> to vector<32x32xf32>
    %624 = arith.cmpf oge, %579, %623 : vector<32x32xf32>
    %625 = vector.broadcast %588 : vector<1x32xf32> to vector<32x32xf32>
    %626 = arith.cmpf olt, %579, %625 : vector<32x32xf32>
    %627 = arith.andi %624, %626 : vector<32x32xi1>
    %628 = arith.extui %627 : vector<32x32xi1> to vector<32x32xi32>
    %629 = arith.sitofp %628 : vector<32x32xi32> to vector<32x32xf32>
    %630 = vector.broadcast %588 : vector<1x32xf32> to vector<32x32xf32>
    %631 = arith.cmpf oge, %579, %630 : vector<32x32xf32>
    %632 = vector.broadcast %591 : vector<1x32xf32> to vector<32x32xf32>
    %633 = arith.cmpf olt, %579, %632 : vector<32x32xf32>
    %634 = arith.andi %631, %633 : vector<32x32xi1>
    %635 = arith.extui %634 : vector<32x32xi1> to vector<32x32xi32>
    %636 = arith.sitofp %635 : vector<32x32xi32> to vector<32x32xf32>
    %637 = vector.broadcast %591 : vector<1x32xf32> to vector<32x32xf32>
    %638 = arith.cmpf oge, %579, %637 : vector<32x32xf32>
    %639 = vector.broadcast %594 : vector<1x32xf32> to vector<32x32xf32>
    %640 = arith.cmpf olt, %579, %639 : vector<32x32xf32>
    %641 = arith.andi %638, %640 : vector<32x32xi1>
    %642 = arith.extui %641 : vector<32x32xi1> to vector<32x32xi32>
    %643 = arith.sitofp %642 : vector<32x32xi32> to vector<32x32xf32>
    %644 = vector.broadcast %594 : vector<1x32xf32> to vector<32x32xf32>
    %645 = arith.cmpf oge, %579, %644 : vector<32x32xf32>
    %646 = vector.broadcast %597 : vector<1x32xf32> to vector<32x32xf32>
    %647 = arith.cmpf olt, %579, %646 : vector<32x32xf32>
    %648 = arith.andi %645, %647 : vector<32x32xi1>
    %649 = arith.extui %648 : vector<32x32xi1> to vector<32x32xi32>
    %650 = arith.sitofp %649 : vector<32x32xi32> to vector<32x32xf32>
    %651 = vector.broadcast %597 : vector<1x32xf32> to vector<32x32xf32>
    %652 = arith.cmpf oge, %579, %651 : vector<32x32xf32>
    %653 = vector.broadcast %600 : vector<1x32xf32> to vector<32x32xf32>
    %654 = arith.cmpf olt, %579, %653 : vector<32x32xf32>
    %655 = arith.andi %652, %654 : vector<32x32xi1>
    %656 = arith.extui %655 : vector<32x32xi1> to vector<32x32xi32>
    %657 = arith.sitofp %656 : vector<32x32xi32> to vector<32x32xf32>
    %658 = vector.broadcast %600 : vector<1x32xf32> to vector<32x32xf32>
    %659 = arith.cmpf oge, %579, %658 : vector<32x32xf32>
    %660 = vector.broadcast %603 : vector<1x32xf32> to vector<32x32xf32>
    %661 = arith.cmpf olt, %579, %660 : vector<32x32xf32>
    %662 = arith.andi %659, %661 : vector<32x32xi1>
    %663 = arith.extui %662 : vector<32x32xi1> to vector<32x32xi32>
    %664 = arith.sitofp %663 : vector<32x32xi32> to vector<32x32xf32>
    %665 = vector.broadcast %603 : vector<1x32xf32> to vector<32x32xf32>
    %666 = arith.cmpf oge, %579, %665 : vector<32x32xf32>
    %667 = vector.broadcast %606 : vector<1x32xf32> to vector<32x32xf32>
    %668 = arith.cmpf olt, %579, %667 : vector<32x32xf32>
    %669 = arith.andi %666, %668 : vector<32x32xi1>
    %670 = arith.extui %669 : vector<32x32xi1> to vector<32x32xi32>
    %671 = arith.sitofp %670 : vector<32x32xi32> to vector<32x32xf32>
    %672 = vector.broadcast %606 : vector<1x32xf32> to vector<32x32xf32>
    %673 = arith.cmpf oge, %579, %672 : vector<32x32xf32>
    %674 = vector.broadcast %609 : vector<1x32xf32> to vector<32x32xf32>
    %675 = arith.cmpf olt, %579, %674 : vector<32x32xf32>
    %676 = arith.andi %673, %675 : vector<32x32xi1>
    %677 = arith.extui %676 : vector<32x32xi1> to vector<32x32xi32>
    %678 = arith.sitofp %677 : vector<32x32xi32> to vector<32x32xf32>
    %679 = vector.broadcast %609 : vector<1x32xf32> to vector<32x32xf32>
    %680 = arith.cmpf oge, %579, %679 : vector<32x32xf32>
    %681 = vector.broadcast %612 : vector<1x32xf32> to vector<32x32xf32>
    %682 = arith.cmpf olt, %579, %681 : vector<32x32xf32>
    %683 = arith.andi %680, %682 : vector<32x32xi1>
    %684 = arith.extui %683 : vector<32x32xi1> to vector<32x32xi32>
    %685 = arith.sitofp %684 : vector<32x32xi32> to vector<32x32xf32>
    %686 = vector.broadcast %612 : vector<1x32xf32> to vector<32x32xf32>
    %687 = arith.cmpf oge, %579, %686 : vector<32x32xf32>
    %688 = vector.broadcast %615 : vector<1x32xf32> to vector<32x32xf32>
    %689 = arith.cmpf olt, %579, %688 : vector<32x32xf32>
    %690 = arith.andi %687, %689 : vector<32x32xi1>
    %691 = arith.extui %690 : vector<32x32xi1> to vector<32x32xi32>
    %692 = arith.sitofp %691 : vector<32x32xi32> to vector<32x32xf32>
    %693 = arith.subf %585, %582 : vector<1x32xf32>
    %694 = tpu.reciprocal %693 : vector<1x32xf32> -> vector<1x32xf32>
    %695 = arith.subf %588, %585 : vector<1x32xf32>
    %696 = tpu.reciprocal %695 : vector<1x32xf32> -> vector<1x32xf32>
    %697 = vector.broadcast %582 : vector<1x32xf32> to vector<32x32xf32>
    %698 = arith.subf %579, %697 : vector<32x32xf32>
    %699 = vector.broadcast %694 : vector<1x32xf32> to vector<32x32xf32>
    %700 = arith.mulf %698, %699 : vector<32x32xf32>
    %701 = arith.mulf %700, %622 : vector<32x32xf32>
    %702 = vector.broadcast %588 : vector<1x32xf32> to vector<32x32xf32>
    %703 = arith.subf %702, %579 : vector<32x32xf32>
    %704 = vector.broadcast %696 : vector<1x32xf32> to vector<32x32xf32>
    %705 = arith.mulf %703, %704 : vector<32x32xf32>
    %706 = arith.mulf %705, %629 : vector<32x32xf32>
    %707 = arith.addf %701, %706 : vector<32x32xf32>
    %708 = arith.subf %588, %585 : vector<1x32xf32>
    %709 = tpu.reciprocal %708 : vector<1x32xf32> -> vector<1x32xf32>
    %710 = arith.subf %591, %588 : vector<1x32xf32>
    %711 = tpu.reciprocal %710 : vector<1x32xf32> -> vector<1x32xf32>
    %712 = vector.broadcast %585 : vector<1x32xf32> to vector<32x32xf32>
    %713 = arith.subf %579, %712 : vector<32x32xf32>
    %714 = vector.broadcast %709 : vector<1x32xf32> to vector<32x32xf32>
    %715 = arith.mulf %713, %714 : vector<32x32xf32>
    %716 = arith.mulf %715, %629 : vector<32x32xf32>
    %717 = vector.broadcast %591 : vector<1x32xf32> to vector<32x32xf32>
    %718 = arith.subf %717, %579 : vector<32x32xf32>
    %719 = vector.broadcast %711 : vector<1x32xf32> to vector<32x32xf32>
    %720 = arith.mulf %718, %719 : vector<32x32xf32>
    %721 = arith.mulf %720, %636 : vector<32x32xf32>
    %722 = arith.addf %716, %721 : vector<32x32xf32>
    %723 = arith.subf %591, %588 : vector<1x32xf32>
    %724 = tpu.reciprocal %723 : vector<1x32xf32> -> vector<1x32xf32>
    %725 = arith.subf %594, %591 : vector<1x32xf32>
    %726 = tpu.reciprocal %725 : vector<1x32xf32> -> vector<1x32xf32>
    %727 = vector.broadcast %588 : vector<1x32xf32> to vector<32x32xf32>
    %728 = arith.subf %579, %727 : vector<32x32xf32>
    %729 = vector.broadcast %724 : vector<1x32xf32> to vector<32x32xf32>
    %730 = arith.mulf %728, %729 : vector<32x32xf32>
    %731 = arith.mulf %730, %636 : vector<32x32xf32>
    %732 = vector.broadcast %594 : vector<1x32xf32> to vector<32x32xf32>
    %733 = arith.subf %732, %579 : vector<32x32xf32>
    %734 = vector.broadcast %726 : vector<1x32xf32> to vector<32x32xf32>
    %735 = arith.mulf %733, %734 : vector<32x32xf32>
    %736 = arith.mulf %735, %643 : vector<32x32xf32>
    %737 = arith.addf %731, %736 : vector<32x32xf32>
    %738 = arith.subf %594, %591 : vector<1x32xf32>
    %739 = tpu.reciprocal %738 : vector<1x32xf32> -> vector<1x32xf32>
    %740 = arith.subf %597, %594 : vector<1x32xf32>
    %741 = tpu.reciprocal %740 : vector<1x32xf32> -> vector<1x32xf32>
    %742 = vector.broadcast %591 : vector<1x32xf32> to vector<32x32xf32>
    %743 = arith.subf %579, %742 : vector<32x32xf32>
    %744 = vector.broadcast %739 : vector<1x32xf32> to vector<32x32xf32>
    %745 = arith.mulf %743, %744 : vector<32x32xf32>
    %746 = arith.mulf %745, %643 : vector<32x32xf32>
    %747 = vector.broadcast %597 : vector<1x32xf32> to vector<32x32xf32>
    %748 = arith.subf %747, %579 : vector<32x32xf32>
    %749 = vector.broadcast %741 : vector<1x32xf32> to vector<32x32xf32>
    %750 = arith.mulf %748, %749 : vector<32x32xf32>
    %751 = arith.mulf %750, %650 : vector<32x32xf32>
    %752 = arith.addf %746, %751 : vector<32x32xf32>
    %753 = arith.subf %597, %594 : vector<1x32xf32>
    %754 = tpu.reciprocal %753 : vector<1x32xf32> -> vector<1x32xf32>
    %755 = arith.subf %600, %597 : vector<1x32xf32>
    %756 = tpu.reciprocal %755 : vector<1x32xf32> -> vector<1x32xf32>
    %757 = vector.broadcast %594 : vector<1x32xf32> to vector<32x32xf32>
    %758 = arith.subf %579, %757 : vector<32x32xf32>
    %759 = vector.broadcast %754 : vector<1x32xf32> to vector<32x32xf32>
    %760 = arith.mulf %758, %759 : vector<32x32xf32>
    %761 = arith.mulf %760, %650 : vector<32x32xf32>
    %762 = vector.broadcast %600 : vector<1x32xf32> to vector<32x32xf32>
    %763 = arith.subf %762, %579 : vector<32x32xf32>
    %764 = vector.broadcast %756 : vector<1x32xf32> to vector<32x32xf32>
    %765 = arith.mulf %763, %764 : vector<32x32xf32>
    %766 = arith.mulf %765, %657 : vector<32x32xf32>
    %767 = arith.addf %761, %766 : vector<32x32xf32>
    %768 = arith.subf %600, %597 : vector<1x32xf32>
    %769 = tpu.reciprocal %768 : vector<1x32xf32> -> vector<1x32xf32>
    %770 = arith.subf %603, %600 : vector<1x32xf32>
    %771 = tpu.reciprocal %770 : vector<1x32xf32> -> vector<1x32xf32>
    %772 = vector.broadcast %597 : vector<1x32xf32> to vector<32x32xf32>
    %773 = arith.subf %579, %772 : vector<32x32xf32>
    %774 = vector.broadcast %769 : vector<1x32xf32> to vector<32x32xf32>
    %775 = arith.mulf %773, %774 : vector<32x32xf32>
    %776 = arith.mulf %775, %657 : vector<32x32xf32>
    %777 = vector.broadcast %603 : vector<1x32xf32> to vector<32x32xf32>
    %778 = arith.subf %777, %579 : vector<32x32xf32>
    %779 = vector.broadcast %771 : vector<1x32xf32> to vector<32x32xf32>
    %780 = arith.mulf %778, %779 : vector<32x32xf32>
    %781 = arith.mulf %780, %664 : vector<32x32xf32>
    %782 = arith.addf %776, %781 : vector<32x32xf32>
    %783 = arith.subf %603, %600 : vector<1x32xf32>
    %784 = tpu.reciprocal %783 : vector<1x32xf32> -> vector<1x32xf32>
    %785 = arith.subf %606, %603 : vector<1x32xf32>
    %786 = tpu.reciprocal %785 : vector<1x32xf32> -> vector<1x32xf32>
    %787 = vector.broadcast %600 : vector<1x32xf32> to vector<32x32xf32>
    %788 = arith.subf %579, %787 : vector<32x32xf32>
    %789 = vector.broadcast %784 : vector<1x32xf32> to vector<32x32xf32>
    %790 = arith.mulf %788, %789 : vector<32x32xf32>
    %791 = arith.mulf %790, %664 : vector<32x32xf32>
    %792 = vector.broadcast %606 : vector<1x32xf32> to vector<32x32xf32>
    %793 = arith.subf %792, %579 : vector<32x32xf32>
    %794 = vector.broadcast %786 : vector<1x32xf32> to vector<32x32xf32>
    %795 = arith.mulf %793, %794 : vector<32x32xf32>
    %796 = arith.mulf %795, %671 : vector<32x32xf32>
    %797 = arith.addf %791, %796 : vector<32x32xf32>
    %798 = arith.subf %606, %603 : vector<1x32xf32>
    %799 = tpu.reciprocal %798 : vector<1x32xf32> -> vector<1x32xf32>
    %800 = arith.subf %609, %606 : vector<1x32xf32>
    %801 = tpu.reciprocal %800 : vector<1x32xf32> -> vector<1x32xf32>
    %802 = vector.broadcast %603 : vector<1x32xf32> to vector<32x32xf32>
    %803 = arith.subf %579, %802 : vector<32x32xf32>
    %804 = vector.broadcast %799 : vector<1x32xf32> to vector<32x32xf32>
    %805 = arith.mulf %803, %804 : vector<32x32xf32>
    %806 = arith.mulf %805, %671 : vector<32x32xf32>
    %807 = vector.broadcast %609 : vector<1x32xf32> to vector<32x32xf32>
    %808 = arith.subf %807, %579 : vector<32x32xf32>
    %809 = vector.broadcast %801 : vector<1x32xf32> to vector<32x32xf32>
    %810 = arith.mulf %808, %809 : vector<32x32xf32>
    %811 = arith.mulf %810, %678 : vector<32x32xf32>
    %812 = arith.addf %806, %811 : vector<32x32xf32>
    %813 = arith.subf %609, %606 : vector<1x32xf32>
    %814 = tpu.reciprocal %813 : vector<1x32xf32> -> vector<1x32xf32>
    %815 = arith.subf %612, %609 : vector<1x32xf32>
    %816 = tpu.reciprocal %815 : vector<1x32xf32> -> vector<1x32xf32>
    %817 = vector.broadcast %606 : vector<1x32xf32> to vector<32x32xf32>
    %818 = arith.subf %579, %817 : vector<32x32xf32>
    %819 = vector.broadcast %814 : vector<1x32xf32> to vector<32x32xf32>
    %820 = arith.mulf %818, %819 : vector<32x32xf32>
    %821 = arith.mulf %820, %678 : vector<32x32xf32>
    %822 = vector.broadcast %612 : vector<1x32xf32> to vector<32x32xf32>
    %823 = arith.subf %822, %579 : vector<32x32xf32>
    %824 = vector.broadcast %816 : vector<1x32xf32> to vector<32x32xf32>
    %825 = arith.mulf %823, %824 : vector<32x32xf32>
    %826 = arith.mulf %825, %685 : vector<32x32xf32>
    %827 = arith.addf %821, %826 : vector<32x32xf32>
    %828 = arith.subf %612, %609 : vector<1x32xf32>
    %829 = tpu.reciprocal %828 : vector<1x32xf32> -> vector<1x32xf32>
    %830 = arith.subf %615, %612 : vector<1x32xf32>
    %831 = tpu.reciprocal %830 : vector<1x32xf32> -> vector<1x32xf32>
    %832 = vector.broadcast %609 : vector<1x32xf32> to vector<32x32xf32>
    %833 = arith.subf %579, %832 : vector<32x32xf32>
    %834 = vector.broadcast %829 : vector<1x32xf32> to vector<32x32xf32>
    %835 = arith.mulf %833, %834 : vector<32x32xf32>
    %836 = arith.mulf %835, %685 : vector<32x32xf32>
    %837 = vector.broadcast %615 : vector<1x32xf32> to vector<32x32xf32>
    %838 = arith.subf %837, %579 : vector<32x32xf32>
    %839 = vector.broadcast %831 : vector<1x32xf32> to vector<32x32xf32>
    %840 = arith.mulf %838, %839 : vector<32x32xf32>
    %841 = arith.mulf %840, %692 : vector<32x32xf32>
    %842 = arith.addf %836, %841 : vector<32x32xf32>
    %843 = arith.subf %588, %582 : vector<1x32xf32>
    %844 = tpu.reciprocal %843 : vector<1x32xf32> -> vector<1x32xf32>
    %845 = arith.subf %591, %585 : vector<1x32xf32>
    %846 = tpu.reciprocal %845 : vector<1x32xf32> -> vector<1x32xf32>
    %847 = vector.broadcast %582 : vector<1x32xf32> to vector<32x32xf32>
    %848 = arith.subf %579, %847 : vector<32x32xf32>
    %849 = vector.broadcast %844 : vector<1x32xf32> to vector<32x32xf32>
    %850 = arith.mulf %848, %849 : vector<32x32xf32>
    %851 = arith.mulf %850, %707 : vector<32x32xf32>
    %852 = vector.broadcast %591 : vector<1x32xf32> to vector<32x32xf32>
    %853 = arith.subf %852, %579 : vector<32x32xf32>
    %854 = vector.broadcast %846 : vector<1x32xf32> to vector<32x32xf32>
    %855 = arith.mulf %853, %854 : vector<32x32xf32>
    %856 = arith.mulf %855, %722 : vector<32x32xf32>
    %857 = arith.addf %851, %856 : vector<32x32xf32>
    %858 = arith.subf %591, %585 : vector<1x32xf32>
    %859 = tpu.reciprocal %858 : vector<1x32xf32> -> vector<1x32xf32>
    %860 = arith.subf %594, %588 : vector<1x32xf32>
    %861 = tpu.reciprocal %860 : vector<1x32xf32> -> vector<1x32xf32>
    %862 = vector.broadcast %585 : vector<1x32xf32> to vector<32x32xf32>
    %863 = arith.subf %579, %862 : vector<32x32xf32>
    %864 = vector.broadcast %859 : vector<1x32xf32> to vector<32x32xf32>
    %865 = arith.mulf %863, %864 : vector<32x32xf32>
    %866 = arith.mulf %865, %722 : vector<32x32xf32>
    %867 = vector.broadcast %594 : vector<1x32xf32> to vector<32x32xf32>
    %868 = arith.subf %867, %579 : vector<32x32xf32>
    %869 = vector.broadcast %861 : vector<1x32xf32> to vector<32x32xf32>
    %870 = arith.mulf %868, %869 : vector<32x32xf32>
    %871 = arith.mulf %870, %737 : vector<32x32xf32>
    %872 = arith.addf %866, %871 : vector<32x32xf32>
    %873 = arith.subf %594, %588 : vector<1x32xf32>
    %874 = tpu.reciprocal %873 : vector<1x32xf32> -> vector<1x32xf32>
    %875 = arith.subf %597, %591 : vector<1x32xf32>
    %876 = tpu.reciprocal %875 : vector<1x32xf32> -> vector<1x32xf32>
    %877 = vector.broadcast %588 : vector<1x32xf32> to vector<32x32xf32>
    %878 = arith.subf %579, %877 : vector<32x32xf32>
    %879 = vector.broadcast %874 : vector<1x32xf32> to vector<32x32xf32>
    %880 = arith.mulf %878, %879 : vector<32x32xf32>
    %881 = arith.mulf %880, %737 : vector<32x32xf32>
    %882 = vector.broadcast %597 : vector<1x32xf32> to vector<32x32xf32>
    %883 = arith.subf %882, %579 : vector<32x32xf32>
    %884 = vector.broadcast %876 : vector<1x32xf32> to vector<32x32xf32>
    %885 = arith.mulf %883, %884 : vector<32x32xf32>
    %886 = arith.mulf %885, %752 : vector<32x32xf32>
    %887 = arith.addf %881, %886 : vector<32x32xf32>
    %888 = arith.subf %597, %591 : vector<1x32xf32>
    %889 = tpu.reciprocal %888 : vector<1x32xf32> -> vector<1x32xf32>
    %890 = arith.subf %600, %594 : vector<1x32xf32>
    %891 = tpu.reciprocal %890 : vector<1x32xf32> -> vector<1x32xf32>
    %892 = vector.broadcast %591 : vector<1x32xf32> to vector<32x32xf32>
    %893 = arith.subf %579, %892 : vector<32x32xf32>
    %894 = vector.broadcast %889 : vector<1x32xf32> to vector<32x32xf32>
    %895 = arith.mulf %893, %894 : vector<32x32xf32>
    %896 = arith.mulf %895, %752 : vector<32x32xf32>
    %897 = vector.broadcast %600 : vector<1x32xf32> to vector<32x32xf32>
    %898 = arith.subf %897, %579 : vector<32x32xf32>
    %899 = vector.broadcast %891 : vector<1x32xf32> to vector<32x32xf32>
    %900 = arith.mulf %898, %899 : vector<32x32xf32>
    %901 = arith.mulf %900, %767 : vector<32x32xf32>
    %902 = arith.addf %896, %901 : vector<32x32xf32>
    %903 = arith.subf %600, %594 : vector<1x32xf32>
    %904 = tpu.reciprocal %903 : vector<1x32xf32> -> vector<1x32xf32>
    %905 = arith.subf %603, %597 : vector<1x32xf32>
    %906 = tpu.reciprocal %905 : vector<1x32xf32> -> vector<1x32xf32>
    %907 = vector.broadcast %594 : vector<1x32xf32> to vector<32x32xf32>
    %908 = arith.subf %579, %907 : vector<32x32xf32>
    %909 = vector.broadcast %904 : vector<1x32xf32> to vector<32x32xf32>
    %910 = arith.mulf %908, %909 : vector<32x32xf32>
    %911 = arith.mulf %910, %767 : vector<32x32xf32>
    %912 = vector.broadcast %603 : vector<1x32xf32> to vector<32x32xf32>
    %913 = arith.subf %912, %579 : vector<32x32xf32>
    %914 = vector.broadcast %906 : vector<1x32xf32> to vector<32x32xf32>
    %915 = arith.mulf %913, %914 : vector<32x32xf32>
    %916 = arith.mulf %915, %782 : vector<32x32xf32>
    %917 = arith.addf %911, %916 : vector<32x32xf32>
    %918 = arith.subf %603, %597 : vector<1x32xf32>
    %919 = tpu.reciprocal %918 : vector<1x32xf32> -> vector<1x32xf32>
    %920 = arith.subf %606, %600 : vector<1x32xf32>
    %921 = tpu.reciprocal %920 : vector<1x32xf32> -> vector<1x32xf32>
    %922 = vector.broadcast %597 : vector<1x32xf32> to vector<32x32xf32>
    %923 = arith.subf %579, %922 : vector<32x32xf32>
    %924 = vector.broadcast %919 : vector<1x32xf32> to vector<32x32xf32>
    %925 = arith.mulf %923, %924 : vector<32x32xf32>
    %926 = arith.mulf %925, %782 : vector<32x32xf32>
    %927 = vector.broadcast %606 : vector<1x32xf32> to vector<32x32xf32>
    %928 = arith.subf %927, %579 : vector<32x32xf32>
    %929 = vector.broadcast %921 : vector<1x32xf32> to vector<32x32xf32>
    %930 = arith.mulf %928, %929 : vector<32x32xf32>
    %931 = arith.mulf %930, %797 : vector<32x32xf32>
    %932 = arith.addf %926, %931 : vector<32x32xf32>
    %933 = arith.subf %606, %600 : vector<1x32xf32>
    %934 = tpu.reciprocal %933 : vector<1x32xf32> -> vector<1x32xf32>
    %935 = arith.subf %609, %603 : vector<1x32xf32>
    %936 = tpu.reciprocal %935 : vector<1x32xf32> -> vector<1x32xf32>
    %937 = vector.broadcast %600 : vector<1x32xf32> to vector<32x32xf32>
    %938 = arith.subf %579, %937 : vector<32x32xf32>
    %939 = vector.broadcast %934 : vector<1x32xf32> to vector<32x32xf32>
    %940 = arith.mulf %938, %939 : vector<32x32xf32>
    %941 = arith.mulf %940, %797 : vector<32x32xf32>
    %942 = vector.broadcast %609 : vector<1x32xf32> to vector<32x32xf32>
    %943 = arith.subf %942, %579 : vector<32x32xf32>
    %944 = vector.broadcast %936 : vector<1x32xf32> to vector<32x32xf32>
    %945 = arith.mulf %943, %944 : vector<32x32xf32>
    %946 = arith.mulf %945, %812 : vector<32x32xf32>
    %947 = arith.addf %941, %946 : vector<32x32xf32>
    %948 = arith.subf %609, %603 : vector<1x32xf32>
    %949 = tpu.reciprocal %948 : vector<1x32xf32> -> vector<1x32xf32>
    %950 = arith.subf %612, %606 : vector<1x32xf32>
    %951 = tpu.reciprocal %950 : vector<1x32xf32> -> vector<1x32xf32>
    %952 = vector.broadcast %603 : vector<1x32xf32> to vector<32x32xf32>
    %953 = arith.subf %579, %952 : vector<32x32xf32>
    %954 = vector.broadcast %949 : vector<1x32xf32> to vector<32x32xf32>
    %955 = arith.mulf %953, %954 : vector<32x32xf32>
    %956 = arith.mulf %955, %812 : vector<32x32xf32>
    %957 = vector.broadcast %612 : vector<1x32xf32> to vector<32x32xf32>
    %958 = arith.subf %957, %579 : vector<32x32xf32>
    %959 = vector.broadcast %951 : vector<1x32xf32> to vector<32x32xf32>
    %960 = arith.mulf %958, %959 : vector<32x32xf32>
    %961 = arith.mulf %960, %827 : vector<32x32xf32>
    %962 = arith.addf %956, %961 : vector<32x32xf32>
    %963 = arith.subf %612, %606 : vector<1x32xf32>
    %964 = tpu.reciprocal %963 : vector<1x32xf32> -> vector<1x32xf32>
    %965 = arith.subf %615, %609 : vector<1x32xf32>
    %966 = tpu.reciprocal %965 : vector<1x32xf32> -> vector<1x32xf32>
    %967 = vector.broadcast %606 : vector<1x32xf32> to vector<32x32xf32>
    %968 = arith.subf %579, %967 : vector<32x32xf32>
    %969 = vector.broadcast %964 : vector<1x32xf32> to vector<32x32xf32>
    %970 = arith.mulf %968, %969 : vector<32x32xf32>
    %971 = arith.mulf %970, %827 : vector<32x32xf32>
    %972 = vector.broadcast %615 : vector<1x32xf32> to vector<32x32xf32>
    %973 = arith.subf %972, %579 : vector<32x32xf32>
    %974 = vector.broadcast %966 : vector<1x32xf32> to vector<32x32xf32>
    %975 = arith.mulf %973, %974 : vector<32x32xf32>
    %976 = arith.mulf %975, %842 : vector<32x32xf32>
    %977 = arith.addf %971, %976 : vector<32x32xf32>
    %978 = arith.subf %591, %582 : vector<1x32xf32>
    %979 = tpu.reciprocal %978 : vector<1x32xf32> -> vector<1x32xf32>
    %980 = arith.subf %594, %585 : vector<1x32xf32>
    %981 = tpu.reciprocal %980 : vector<1x32xf32> -> vector<1x32xf32>
    %982 = vector.broadcast %582 : vector<1x32xf32> to vector<32x32xf32>
    %983 = arith.subf %579, %982 : vector<32x32xf32>
    %984 = vector.broadcast %979 : vector<1x32xf32> to vector<32x32xf32>
    %985 = arith.mulf %983, %984 : vector<32x32xf32>
    %986 = arith.mulf %985, %857 : vector<32x32xf32>
    %987 = vector.broadcast %594 : vector<1x32xf32> to vector<32x32xf32>
    %988 = arith.subf %987, %579 : vector<32x32xf32>
    %989 = vector.broadcast %981 : vector<1x32xf32> to vector<32x32xf32>
    %990 = arith.mulf %988, %989 : vector<32x32xf32>
    %991 = arith.mulf %990, %872 : vector<32x32xf32>
    %992 = arith.addf %986, %991 : vector<32x32xf32>
    %993 = arith.subf %594, %585 : vector<1x32xf32>
    %994 = tpu.reciprocal %993 : vector<1x32xf32> -> vector<1x32xf32>
    %995 = arith.subf %597, %588 : vector<1x32xf32>
    %996 = tpu.reciprocal %995 : vector<1x32xf32> -> vector<1x32xf32>
    %997 = vector.broadcast %585 : vector<1x32xf32> to vector<32x32xf32>
    %998 = arith.subf %579, %997 : vector<32x32xf32>
    %999 = vector.broadcast %994 : vector<1x32xf32> to vector<32x32xf32>
    %1000 = arith.mulf %998, %999 : vector<32x32xf32>
    %1001 = arith.mulf %1000, %872 : vector<32x32xf32>
    %1002 = vector.broadcast %597 : vector<1x32xf32> to vector<32x32xf32>
    %1003 = arith.subf %1002, %579 : vector<32x32xf32>
    %1004 = vector.broadcast %996 : vector<1x32xf32> to vector<32x32xf32>
    %1005 = arith.mulf %1003, %1004 : vector<32x32xf32>
    %1006 = arith.mulf %1005, %887 : vector<32x32xf32>
    %1007 = arith.addf %1001, %1006 : vector<32x32xf32>
    %1008 = arith.subf %597, %588 : vector<1x32xf32>
    %1009 = tpu.reciprocal %1008 : vector<1x32xf32> -> vector<1x32xf32>
    %1010 = arith.subf %600, %591 : vector<1x32xf32>
    %1011 = tpu.reciprocal %1010 : vector<1x32xf32> -> vector<1x32xf32>
    %1012 = vector.broadcast %588 : vector<1x32xf32> to vector<32x32xf32>
    %1013 = arith.subf %579, %1012 : vector<32x32xf32>
    %1014 = vector.broadcast %1009 : vector<1x32xf32> to vector<32x32xf32>
    %1015 = arith.mulf %1013, %1014 : vector<32x32xf32>
    %1016 = arith.mulf %1015, %887 : vector<32x32xf32>
    %1017 = vector.broadcast %600 : vector<1x32xf32> to vector<32x32xf32>
    %1018 = arith.subf %1017, %579 : vector<32x32xf32>
    %1019 = vector.broadcast %1011 : vector<1x32xf32> to vector<32x32xf32>
    %1020 = arith.mulf %1018, %1019 : vector<32x32xf32>
    %1021 = arith.mulf %1020, %902 : vector<32x32xf32>
    %1022 = arith.addf %1016, %1021 : vector<32x32xf32>
    %1023 = arith.subf %600, %591 : vector<1x32xf32>
    %1024 = tpu.reciprocal %1023 : vector<1x32xf32> -> vector<1x32xf32>
    %1025 = arith.subf %603, %594 : vector<1x32xf32>
    %1026 = tpu.reciprocal %1025 : vector<1x32xf32> -> vector<1x32xf32>
    %1027 = vector.broadcast %591 : vector<1x32xf32> to vector<32x32xf32>
    %1028 = arith.subf %579, %1027 : vector<32x32xf32>
    %1029 = vector.broadcast %1024 : vector<1x32xf32> to vector<32x32xf32>
    %1030 = arith.mulf %1028, %1029 : vector<32x32xf32>
    %1031 = arith.mulf %1030, %902 : vector<32x32xf32>
    %1032 = vector.broadcast %603 : vector<1x32xf32> to vector<32x32xf32>
    %1033 = arith.subf %1032, %579 : vector<32x32xf32>
    %1034 = vector.broadcast %1026 : vector<1x32xf32> to vector<32x32xf32>
    %1035 = arith.mulf %1033, %1034 : vector<32x32xf32>
    %1036 = arith.mulf %1035, %917 : vector<32x32xf32>
    %1037 = arith.addf %1031, %1036 : vector<32x32xf32>
    %1038 = arith.subf %603, %594 : vector<1x32xf32>
    %1039 = tpu.reciprocal %1038 : vector<1x32xf32> -> vector<1x32xf32>
    %1040 = arith.subf %606, %597 : vector<1x32xf32>
    %1041 = tpu.reciprocal %1040 : vector<1x32xf32> -> vector<1x32xf32>
    %1042 = vector.broadcast %594 : vector<1x32xf32> to vector<32x32xf32>
    %1043 = arith.subf %579, %1042 : vector<32x32xf32>
    %1044 = vector.broadcast %1039 : vector<1x32xf32> to vector<32x32xf32>
    %1045 = arith.mulf %1043, %1044 : vector<32x32xf32>
    %1046 = arith.mulf %1045, %917 : vector<32x32xf32>
    %1047 = vector.broadcast %606 : vector<1x32xf32> to vector<32x32xf32>
    %1048 = arith.subf %1047, %579 : vector<32x32xf32>
    %1049 = vector.broadcast %1041 : vector<1x32xf32> to vector<32x32xf32>
    %1050 = arith.mulf %1048, %1049 : vector<32x32xf32>
    %1051 = arith.mulf %1050, %932 : vector<32x32xf32>
    %1052 = arith.addf %1046, %1051 : vector<32x32xf32>
    %1053 = arith.subf %606, %597 : vector<1x32xf32>
    %1054 = tpu.reciprocal %1053 : vector<1x32xf32> -> vector<1x32xf32>
    %1055 = arith.subf %609, %600 : vector<1x32xf32>
    %1056 = tpu.reciprocal %1055 : vector<1x32xf32> -> vector<1x32xf32>
    %1057 = vector.broadcast %597 : vector<1x32xf32> to vector<32x32xf32>
    %1058 = arith.subf %579, %1057 : vector<32x32xf32>
    %1059 = vector.broadcast %1054 : vector<1x32xf32> to vector<32x32xf32>
    %1060 = arith.mulf %1058, %1059 : vector<32x32xf32>
    %1061 = arith.mulf %1060, %932 : vector<32x32xf32>
    %1062 = vector.broadcast %609 : vector<1x32xf32> to vector<32x32xf32>
    %1063 = arith.subf %1062, %579 : vector<32x32xf32>
    %1064 = vector.broadcast %1056 : vector<1x32xf32> to vector<32x32xf32>
    %1065 = arith.mulf %1063, %1064 : vector<32x32xf32>
    %1066 = arith.mulf %1065, %947 : vector<32x32xf32>
    %1067 = arith.addf %1061, %1066 : vector<32x32xf32>
    %1068 = arith.subf %609, %600 : vector<1x32xf32>
    %1069 = tpu.reciprocal %1068 : vector<1x32xf32> -> vector<1x32xf32>
    %1070 = arith.subf %612, %603 : vector<1x32xf32>
    %1071 = tpu.reciprocal %1070 : vector<1x32xf32> -> vector<1x32xf32>
    %1072 = vector.broadcast %600 : vector<1x32xf32> to vector<32x32xf32>
    %1073 = arith.subf %579, %1072 : vector<32x32xf32>
    %1074 = vector.broadcast %1069 : vector<1x32xf32> to vector<32x32xf32>
    %1075 = arith.mulf %1073, %1074 : vector<32x32xf32>
    %1076 = arith.mulf %1075, %947 : vector<32x32xf32>
    %1077 = vector.broadcast %612 : vector<1x32xf32> to vector<32x32xf32>
    %1078 = arith.subf %1077, %579 : vector<32x32xf32>
    %1079 = vector.broadcast %1071 : vector<1x32xf32> to vector<32x32xf32>
    %1080 = arith.mulf %1078, %1079 : vector<32x32xf32>
    %1081 = arith.mulf %1080, %962 : vector<32x32xf32>
    %1082 = arith.addf %1076, %1081 : vector<32x32xf32>
    %1083 = arith.subf %612, %603 : vector<1x32xf32>
    %1084 = tpu.reciprocal %1083 : vector<1x32xf32> -> vector<1x32xf32>
    %1085 = arith.subf %615, %606 : vector<1x32xf32>
    %1086 = tpu.reciprocal %1085 : vector<1x32xf32> -> vector<1x32xf32>
    %1087 = vector.broadcast %603 : vector<1x32xf32> to vector<32x32xf32>
    %1088 = arith.subf %579, %1087 : vector<32x32xf32>
    %1089 = vector.broadcast %1084 : vector<1x32xf32> to vector<32x32xf32>
    %1090 = arith.mulf %1088, %1089 : vector<32x32xf32>
    %1091 = arith.mulf %1090, %962 : vector<32x32xf32>
    %1092 = vector.broadcast %615 : vector<1x32xf32> to vector<32x32xf32>
    %1093 = arith.subf %1092, %579 : vector<32x32xf32>
    %1094 = vector.broadcast %1086 : vector<1x32xf32> to vector<32x32xf32>
    %1095 = arith.mulf %1093, %1094 : vector<32x32xf32>
    %1096 = arith.mulf %1095, %977 : vector<32x32xf32>
    %1097 = arith.addf %1091, %1096 : vector<32x32xf32>
    %1098 = vector.extract_strided_slice %576 {offsets = [0, 0], sizes = [1, 32], strides = [1, 1]} : vector<8x32xf32> to vector<1x32xf32>
    %1099 = vector.shape_cast %1098 : vector<1x32xf32> to vector<32xf32>
    %1100 = vector.shape_cast %1099 : vector<32xf32> to vector<1x32xf32>
    %1101 = vector.broadcast %1100 : vector<1x32xf32> to vector<32x32xf32>
    %1102 = arith.mulf %1101, %992 : vector<32x32xf32>
    %1103 = vector.extract_strided_slice %576 {offsets = [1, 0], sizes = [1, 32], strides = [1, 1]} : vector<8x32xf32> to vector<1x32xf32>
    %1104 = vector.shape_cast %1103 : vector<1x32xf32> to vector<32xf32>
    %1105 = vector.shape_cast %1104 : vector<32xf32> to vector<1x32xf32>
    %1106 = vector.broadcast %1105 : vector<1x32xf32> to vector<32x32xf32>
    %1107 = arith.mulf %1106, %1007 : vector<32x32xf32>
    %1108 = arith.addf %1102, %1107 : vector<32x32xf32>
    %1109 = vector.extract_strided_slice %576 {offsets = [2, 0], sizes = [1, 32], strides = [1, 1]} : vector<8x32xf32> to vector<1x32xf32>
    %1110 = vector.shape_cast %1109 : vector<1x32xf32> to vector<32xf32>
    %1111 = vector.shape_cast %1110 : vector<32xf32> to vector<1x32xf32>
    %1112 = vector.broadcast %1111 : vector<1x32xf32> to vector<32x32xf32>
    %1113 = arith.mulf %1112, %1022 : vector<32x32xf32>
    %1114 = arith.addf %1108, %1113 : vector<32x32xf32>
    %1115 = vector.extract_strided_slice %576 {offsets = [3, 0], sizes = [1, 32], strides = [1, 1]} : vector<8x32xf32> to vector<1x32xf32>
    %1116 = vector.shape_cast %1115 : vector<1x32xf32> to vector<32xf32>
    %1117 = vector.shape_cast %1116 : vector<32xf32> to vector<1x32xf32>
    %1118 = vector.broadcast %1117 : vector<1x32xf32> to vector<32x32xf32>
    %1119 = arith.mulf %1118, %1037 : vector<32x32xf32>
    %1120 = arith.addf %1114, %1119 : vector<32x32xf32>
    %1121 = vector.extract_strided_slice %576 {offsets = [4, 0], sizes = [1, 32], strides = [1, 1]} : vector<8x32xf32> to vector<1x32xf32>
    %1122 = vector.shape_cast %1121 : vector<1x32xf32> to vector<32xf32>
    %1123 = vector.shape_cast %1122 : vector<32xf32> to vector<1x32xf32>
    %1124 = vector.broadcast %1123 : vector<1x32xf32> to vector<32x32xf32>
    %1125 = arith.mulf %1124, %1052 : vector<32x32xf32>
    %1126 = arith.addf %1120, %1125 : vector<32x32xf32>
    %1127 = vector.extract_strided_slice %576 {offsets = [5, 0], sizes = [1, 32], strides = [1, 1]} : vector<8x32xf32> to vector<1x32xf32>
    %1128 = vector.shape_cast %1127 : vector<1x32xf32> to vector<32xf32>
    %1129 = vector.shape_cast %1128 : vector<32xf32> to vector<1x32xf32>
    %1130 = vector.broadcast %1129 : vector<1x32xf32> to vector<32x32xf32>
    %1131 = arith.mulf %1130, %1067 : vector<32x32xf32>
    %1132 = arith.addf %1126, %1131 : vector<32x32xf32>
    %1133 = vector.extract_strided_slice %576 {offsets = [6, 0], sizes = [1, 32], strides = [1, 1]} : vector<8x32xf32> to vector<1x32xf32>
    %1134 = vector.shape_cast %1133 : vector<1x32xf32> to vector<32xf32>
    %1135 = vector.shape_cast %1134 : vector<32xf32> to vector<1x32xf32>
    %1136 = vector.broadcast %1135 : vector<1x32xf32> to vector<32x32xf32>
    %1137 = arith.mulf %1136, %1082 : vector<32x32xf32>
    %1138 = arith.addf %1132, %1137 : vector<32x32xf32>
    %1139 = vector.extract_strided_slice %576 {offsets = [7, 0], sizes = [1, 32], strides = [1, 1]} : vector<8x32xf32> to vector<1x32xf32>
    %1140 = vector.shape_cast %1139 : vector<1x32xf32> to vector<32xf32>
    %1141 = vector.shape_cast %1140 : vector<32xf32> to vector<1x32xf32>
    %1142 = vector.broadcast %1141 : vector<1x32xf32> to vector<32x32xf32>
    %1143 = arith.mulf %1142, %1097 : vector<32x32xf32>
    %1144 = arith.addf %1138, %1143 : vector<32x32xf32>
    %c0_18 = arith.constant 0 : index
    %c0_19 = arith.constant 0 : index
    %1145 = vector.load %arg10[%c0_18, %c0_19] : memref<32x8xf32, #tpu.memory_space<vmem>>, vector<32x8xf32>
    %c0_20 = arith.constant 0 : index
    %c0_21 = arith.constant 0 : index
    %1146 = vector.load %arg11[%c0_20, %c0_21] : memref<1x8xf32, #tpu.memory_space<vmem>>, vector<1x8xf32>
    %cst_22 = arith.constant dense<0.000000e+00> : vector<32x8xf32>
    %1147 = tpu.matmul %1144, %1145, %cst_22 {dimension_numbers = #tpu.dot_dimension_numbers<[1], [0], [0], [1], [0, 0, 1, 1], [], []>} : vector<32x32xf32>, vector<32x8xf32>, vector<32x8xf32> -> vector<32x8xf32>
    %1148 = vector.broadcast %1146 : vector<1x8xf32> to vector<32x8xf32>
    %1149 = arith.addf %1147, %1148 : vector<32x8xf32>
    %c0_23 = arith.constant 0 : index
    %c0_24 = arith.constant 0 : index
    %1150 = vector.load %arg12[%c0_23, %c0_24] : memref<32x8xf32, #tpu.memory_space<vmem>>, vector<32x8xf32>
    tpu.vector_store %arg12[%c0_23, %c0_24], %1149 {strides = array<i32>} : memref<32x8xf32, #tpu.memory_space<vmem>>, vector<32x8xf32>,
    return
  }
  func.func @transform_0(%arg0: i32) -> (i32, i32) {
    %c0_i32 = arith.constant 0 : i32
    %c0_i32_0 = arith.constant 0 : i32
    return %arg0, %c0_i32 : i32, i32
  }
  func.func @transform_1(%arg0: i32) -> (i32, i32) {
    %c0_i32 = arith.constant 0 : i32
    %c0_i32_0 = arith.constant 0 : i32
    %c0_i32_1 = arith.constant 0 : i32
    return %c0_i32, %c0_i32_0 : i32, i32
  }
  func.func @transform_2(%arg0: i32) -> (i32, i32) {
    %c0_i32 = arith.constant 0 : i32
    %c0_i32_0 = arith.constant 0 : i32
    %c0_i32_1 = arith.constant 0 : i32
    return %c0_i32, %c0_i32_0 : i32, i32
  }
  func.func @transform_3(%arg0: i32) -> (i32, i32) {
    %c0_i32 = arith.constant 0 : i32
    %c0_i32_0 = arith.constant 0 : i32
    %c0_i32_1 = arith.constant 0 : i32
    return %c0_i32, %c0_i32_0 : i32, i32
  }
  func.func @transform_4(%arg0: i32) -> (i32, i32) {
    %c0_i32 = arith.constant 0 : i32
    %c0_i32_0 = arith.constant 0 : i32
    %c0_i32_1 = arith.constant 0 : i32
    return %c0_i32, %c0_i32_0 : i32, i32
  }
  func.func @transform_5(%arg0: i32) -> (i32, i32) {
    %c0_i32 = arith.constant 0 : i32
    %c0_i32_0 = arith.constant 0 : i32
    %c0_i32_1 = arith.constant 0 : i32
    return %c0_i32, %c0_i32_0 : i32, i32
  }
  func.func @transform_6(%arg0: i32) -> (i32, i32) {
    %c0_i32 = arith.constant 0 : i32
    %c0_i32_0 = arith.constant 0 : i32
    %c0_i32_1 = arith.constant 0 : i32
    return %c0_i32, %c0_i32_0 : i32, i32
  }
  func.func @transform_7(%arg0: i32) -> (i32, i32) {
    %c0_i32 = arith.constant 0 : i32
    %c0_i32_0 = arith.constant 0 : i32
    %c0_i32_1 = arith.constant 0 : i32
    return %c0_i32, %c0_i32_0 : i32, i32
  }
  func.func @transform_8(%arg0: i32) -> (i32, i32) {
    %c0_i32 = arith.constant 0 : i32
    %c0_i32_0 = arith.constant 0 : i32
    %c0_i32_1 = arith.constant 0 : i32
    return %c0_i32, %c0_i32_0 : i32, i32
  }
  func.func @transform_9(%arg0: i32) -> (i32, i32) {
    %c0_i32 = arith.constant 0 : i32
    %c0_i32_0 = arith.constant 0 : i32
    %c0_i32_1 = arith.constant 0 : i32
    return %c0_i32, %c0_i32_0 : i32, i32
  }
  func.func @transform_10(%arg0: i32) -> (i32, i32) {
    %c0_i32 = arith.constant 0 : i32
    %c0_i32_0 = arith.constant 0 : i32
    %c0_i32_1 = arith.constant 0 : i32
    return %c0_i32, %c0_i32_0 : i32, i32
  }
  func.func @transform_11(%arg0: i32) -> (i32, i32) {
    %c0_i32 = arith.constant 0 : i32
    %c0_i32_0 = arith.constant 0 : i32
    return %arg0, %c0_i32 : i32, i32
  }
}

</mosaic_0001>

<llo_original>
// kernel: tpu_custom_call.1
$region0: #{tpu_custom_call.1}
  #allocation0 [shape = 'u32[]', space=smem, size = 0x4, offset = 0x4, fixed_abs, tag = 'smem constant byte address 0x4 - core index']
  #allocation1 [shape = 'u32[72,128]{1,0:T(1,128)}', space=vmem, size = 0x9000, scoped, tag = 'internal scratch']
  %s0 = inlined_call_operand.vmem [shape: f32[64,16], index: 0, kind: input, shape index: {}]
  %s1 = inlined_call_operand.vmem [shape: f32[16,32], index: 1, kind: input, shape index: {}]
  %s2 = inlined_call_operand.vmem [shape: f32[1,32], index: 2, kind: input, shape index: {}]
  %s3 = inlined_call_operand.vmem [shape: f32[12,32], index: 3, kind: input, shape index: {}]
  %s4 = inlined_call_operand.vmem [shape: f32[8,32], index: 4, kind: input, shape index: {}]
  %s5 = inlined_call_operand.vmem [shape: f32[32,32], index: 5, kind: input, shape index: {}]
  %s6 = inlined_call_operand.vmem [shape: f32[1,32], index: 6, kind: input, shape index: {}]
  %s7 = inlined_call_operand.vmem [shape: f32[12,32], index: 7, kind: input, shape index: {}]
  %s8 = inlined_call_operand.vmem [shape: f32[8,32], index: 8, kind: input, shape index: {}]
  %s9 = inlined_call_operand.vmem [shape: f32[32,8], index: 9, kind: input, shape index: {}]
  %s10 = inlined_call_operand.vmem [shape: f32[1,8], index: 10, kind: input, shape index: {}]
  %s11 = inlined_call_operand.vmem [shape: f32[64,8], index: 11, kind: output, shape index: {}]
  %s12 = sld [smem:[#allocation0]]
  $region77: #{tpu_custom_call.1} parent=0
    _
  %s14 = ssub.s32 1, %s12
  %s15 = scalar_select 0, %s14, %s12
  loop: start=0, step=1, limit=4
  $region2: #{tpu_custom_call.1} parent=0 // loop_pre_header
    _
  $region3: #{tpu_custom_call.1} parent=0 // loop_header
    %s17 = sphi 0, %s21
    %p18 = scmp.ge.s32.totalorder %s17, 4
    %s27 = sphi 0, %s29
    %s30 = sphi 0, %s27
    %s31 = sphi 0, %s30
    %s47 = sphi 0, %s31
    %s51 = sphi 0, %s51
    %s53 = sphi 0, %s51
    %s54 = sphi 0, %s53
    %s68 = sphi 0, %s54
    %s72 = sphi 0, %s72
    %s74 = sphi 0, %s72
    %s75 = sphi 0, %s74
    %s89 = sphi 0, %s75
    %s93 = sphi 0, %s93
    %s95 = sphi 0, %s93
    %s96 = sphi 0, %s95
    %s110 = sphi 0, %s96
    %s114 = sphi 0, %s114
    %s116 = sphi 0, %s114
    %s117 = sphi 0, %s116
    %s131 = sphi 0, %s117
    %s135 = sphi 0, %s135
    %s137 = sphi 0, %s135
    %s138 = sphi 0, %s137
    %s152 = sphi 0, %s138
    %s156 = sphi 0, %s156
    %s158 = sphi 0, %s156
    %s159 = sphi 0, %s158
    %s173 = sphi 0, %s159
    %s177 = sphi 0, %s177
    %s179 = sphi 0, %s177
    %s180 = sphi 0, %s179
    %s194 = sphi 0, %s180
    %s198 = sphi 0, %s198
    %s200 = sphi 0, %s198
    %s201 = sphi 0, %s200
    %s215 = sphi 0, %s201
    %s219 = sphi 0, %s219
    %s221 = sphi 0, %s219
    %s222 = sphi 0, %s221
    %s236 = sphi 0, %s222
    %s240 = sphi 0, %s240
    %s242 = sphi 0, %s240
    %s243 = sphi 0, %s242
    %s257 = sphi 0, %s243
    %s263 = sphi 0, %s265
    %s266 = sphi 0, %s263
    %s267 = sphi 0, %s266
    %s283 = sphi 0, %s267
  $region4: #{tpu_custom_call.1} parent=0 // loop_header_branch
    %20 = sbr.rel (%p18) target = $region8
  $region5: #{tpu_custom_call.1} parent=0 // loop_body
    %s22 = ssub.s32 %s17, 1
    %s23 = ssub.s32 %s17, 2
    %s24 = sadd.s32 %s17, 1
    %s25 = ssub.s32 %s17, %s24
    %p26 = scmp.eq.s32.totalorder %s25, 0
    %s28 = sadd.s32 %s27, 1
    %s29 = scalar_select %p26, %s27, %s28
    %p32 = pneg %p26
    %p33 = scmp.eq.s32.totalorder %s17, 1
    %p34 = por %p32, %p33
    %p35 = scmp.ne.s32.totalorder %s27, %s30
    %p36 = scmp.eq.s32.totalorder %s17, 0
    %p37 = por %p35, %p36
    %p38 = scmp.ne.s32.totalorder %s27, %s30
    %p39 = scmp.eq.s32.totalorder %s22, 1
    %p40 = por %p38, %p39
    %p41 = scmp.ne.s32.totalorder %s30, %s31
    %p42 = scmp.eq.s32.totalorder %s22, 0
    %p43 = por %p41, %p42
    %p44 = scmp.ne.s32.totalorder %s30, %s31
    %p45 = scmp.eq.s32.totalorder %s23, 1
    %p46 = por %p44, %p45
    %p48 = scmp.ne.s32.totalorder %s31, %s47
    %p49 = scmp.eq.s32.totalorder %s23, 0
    %p50 = por %p48, %p49
    %s52 = sadd.s32 %s51, 1
    %p55 = scmp.eq.s32.totalorder %s17, 1
    %p56 = scmp.ne.s32.totalorder %s51, %s53
    %p57 = scmp.eq.s32.totalorder %s17, 0
    %p58 = por %p56, %p57
    %p59 = scmp.ne.s32.totalorder %s51, %s53
    %p60 = scmp.eq.s32.totalorder %s22, 1
    %p61 = por %p59, %p60
    %p62 = scmp.ne.s32.totalorder %s53, %s54
    %p63 = scmp.eq.s32.totalorder %s22, 0
    %p64 = por %p62, %p63
    %p65 = scmp.ne.s32.totalorder %s53, %s54
    %p66 = scmp.eq.s32.totalorder %s23, 1
    %p67 = por %p65, %p66
    %p69 = scmp.ne.s32.totalorder %s54, %s68
    %p70 = scmp.eq.s32.totalorder %s23, 0
    %p71 = por %p69, %p70
    %s73 = sadd.s32 %s72, 1
    %p76 = scmp.eq.s32.totalorder %s17, 1
    %p77 = scmp.ne.s32.totalorder %s72, %s74
    %p78 = scmp.eq.s32.totalorder %s17, 0
    %p79 = por %p77, %p78
    %p80 = scmp.ne.s32.totalorder %s72, %s74
    %p81 = scmp.eq.s32.totalorder %s22, 1
    %p82 = por %p80, %p81
    %p83 = scmp.ne.s32.totalorder %s74, %s75
    %p84 = scmp.eq.s32.totalorder %s22, 0
    %p85 = por %p83, %p84
    %p86 = scmp.ne.s32.totalorder %s74, %s75
    %p87 = scmp.eq.s32.totalorder %s23, 1
    %p88 = por %p86, %p87
    %p90 = scmp.ne.s32.totalorder %s75, %s89
    %p91 = scmp.eq.s32.totalorder %s23, 0
    %p92 = por %p90, %p91
    %s94 = sadd.s32 %s93, 1
    %p97 = scmp.eq.s32.totalorder %s17, 1
    %p98 = scmp.ne.s32.totalorder %s93, %s95
    %p99 = scmp.eq.s32.totalorder %s17, 0
    %p100 = por %p98, %p99
    %p101 = scmp.ne.s32.totalorder %s93, %s95
    %p102 = scmp.eq.s32.totalorder %s22, 1
    %p103 = por %p101, %p102
    %p104 = scmp.ne.s32.totalorder %s95, %s96
    %p105 = scmp.eq.s32.totalorder %s22, 0
    %p106 = por %p104, %p105
    %p107 = scmp.ne.s32.totalorder %s95, %s96
    %p108 = scmp.eq.s32.totalorder %s23, 1
    %p109 = por %p107, %p108
    %p111 = scmp.ne.s32.totalorder %s96, %s110
    %p112 = scmp.eq.s32.totalorder %s23, 0
    %p113 = por %p111, %p112
    %s115 = sadd.s32 %s114, 1
    %p118 = scmp.eq.s32.totalorder %s17, 1
    %p119 = scmp.ne.s32.totalorder %s114, %s116
    %p120 = scmp.eq.s32.totalorder %s17, 0
    %p121 = por %p119, %p120
    %p122 = scmp.ne.s32.totalorder %s114, %s116
    %p123 = scmp.eq.s32.totalorder %s22, 1
    %p124 = por %p122, %p123
    %p125 = scmp.ne.s32.totalorder %s116, %s117
    %p126 = scmp.eq.s32.totalorder %s22, 0
    %p127 = por %p125, %p126
    %p128 = scmp.ne.s32.totalorder %s116, %s117
    %p129 = scmp.eq.s32.totalorder %s23, 1
    %p130 = por %p128, %p129
    %p132 = scmp.ne.s32.totalorder %s117, %s131
    %p133 = scmp.eq.s32.totalorder %s23, 0
    %p134 = por %p132, %p133
    %s136 = sadd.s32 %s135, 1
    %p139 = scmp.eq.s32.totalorder %s17, 1
    %p140 = scmp.ne.s32.totalorder %s135, %s137
    %p141 = scmp.eq.s32.totalorder %s17, 0
    %p142 = por %p140, %p141
    %p143 = scmp.ne.s32.totalorder %s135, %s137
    %p144 = scmp.eq.s32.totalorder %s22, 1
    %p145 = por %p143, %p144
    %p146 = scmp.ne.s32.totalorder %s137, %s138
    %p147 = scmp.eq.s32.totalorder %s22, 0
    %p148 = por %p146, %p147
    %p149 = scmp.ne.s32.totalorder %s137, %s138
    %p150 = scmp.eq.s32.totalorder %s23, 1
    %p151 = por %p149, %p150
    %p153 = scmp.ne.s32.totalorder %s138, %s152
    %p154 = scmp.eq.s32.totalorder %s23, 0
    %p155 = por %p153, %p154
    %s157 = sadd.s32 %s156, 1
    %p160 = scmp.eq.s32.totalorder %s17, 1
    %p161 = scmp.ne.s32.totalorder %s156, %s158
    %p162 = scmp.eq.s32.totalorder %s17, 0
    %p163 = por %p161, %p162
    %p164 = scmp.ne.s32.totalorder %s156, %s158
    %p165 = scmp.eq.s32.totalorder %s22, 1
    %p166 = por %p164, %p165
    %p167 = scmp.ne.s32.totalorder %s158, %s159
    %p168 = scmp.eq.s32.totalorder %s22, 0
    %p169 = por %p167, %p168
    %p170 = scmp.ne.s32.totalorder %s158, %s159
    %p171 = scmp.eq.s32.totalorder %s23, 1
    %p172 = por %p170, %p171
    %p174 = scmp.ne.s32.totalorder %s159, %s173
    %p175 = scmp.eq.s32.totalorder %s23, 0
    %p176 = por %p174, %p175
    %s178 = sadd.s32 %s177, 1
    %p181 = scmp.eq.s32.totalorder %s17, 1
    %p182 = scmp.ne.s32.totalorder %s177, %s179
    %p183 = scmp.eq.s32.totalorder %s17, 0
    %p184 = por %p182, %p183
    %p185 = scmp.ne.s32.totalorder %s177, %s179
    %p186 = scmp.eq.s32.totalorder %s22, 1
    %p187 = por %p185, %p186
    %p188 = scmp.ne.s32.totalorder %s179, %s180
    %p189 = scmp.eq.s32.totalorder %s22, 0
    %p190 = por %p188, %p189
    %p191 = scmp.ne.s32.totalorder %s179, %s180
    %p192 = scmp.eq.s32.totalorder %s23, 1
    %p193 = por %p191, %p192
    %p195 = scmp.ne.s32.totalorder %s180, %s194
    %p196 = scmp.eq.s32.totalorder %s23, 0
    %p197 = por %p195, %p196
    %s199 = sadd.s32 %s198, 1
    %p202 = scmp.eq.s32.totalorder %s17, 1
    %p203 = scmp.ne.s32.totalorder %s198, %s200
    %p204 = scmp.eq.s32.totalorder %s17, 0
    %p205 = por %p203, %p204
    %p206 = scmp.ne.s32.totalorder %s198, %s200
    %p207 = scmp.eq.s32.totalorder %s22, 1
    %p208 = por %p206, %p207
    %p209 = scmp.ne.s32.totalorder %s200, %s201
    %p210 = scmp.eq.s32.totalorder %s22, 0
    %p211 = por %p209, %p210
    %p212 = scmp.ne.s32.totalorder %s200, %s201
    %p213 = scmp.eq.s32.totalorder %s23, 1
    %p214 = por %p212, %p213
    %p216 = scmp.ne.s32.totalorder %s201, %s215
    %p217 = scmp.eq.s32.totalorder %s23, 0
    %p218 = por %p216, %p217
    %s220 = sadd.s32 %s219, 1
    %p223 = scmp.eq.s32.totalorder %s17, 1
    %p224 = scmp.ne.s32.totalorder %s219, %s221
    %p225 = scmp.eq.s32.totalorder %s17, 0
    %p226 = por %p224, %p225
    %p227 = scmp.ne.s32.totalorder %s219, %s221
    %p228 = scmp.eq.s32.totalorder %s22, 1
    %p229 = por %p227, %p228
    %p230 = scmp.ne.s32.totalorder %s221, %s222
    %p231 = scmp.eq.s32.totalorder %s22, 0
    %p232 = por %p230, %p231
    %p233 = scmp.ne.s32.totalorder %s221, %s222
    %p234 = scmp.eq.s32.totalorder %s23, 1
    %p235 = por %p233, %p234
    %p237 = scmp.ne.s32.totalorder %s222, %s236
    %p238 = scmp.eq.s32.totalorder %s23, 0
    %p239 = por %p237, %p238
    %s241 = sadd.s32 %s240, 1
    %p244 = scmp.eq.s32.totalorder %s17, 1
    %p245 = scmp.ne.s32.totalorder %s240, %s242
    %p246 = scmp.eq.s32.totalorder %s17, 0
    %p247 = por %p245, %p246
    %p248 = scmp.ne.s32.totalorder %s240, %s242
    %p249 = scmp.eq.s32.totalorder %s22, 1
    %p250 = por %p248, %p249
    %p251 = scmp.ne.s32.totalorder %s242, %s243
    %p252 = scmp.eq.s32.totalorder %s22, 0
    %p253 = por %p251, %p252
    %p254 = scmp.ne.s32.totalorder %s242, %s243
    %p255 = scmp.eq.s32.totalorder %s23, 1
    %p256 = por %p254, %p255
    %p258 = scmp.ne.s32.totalorder %s243, %s257
    %p259 = scmp.eq.s32.totalorder %s23, 0
    %p260 = por %p258, %p259
    %s261 = ssub.s32 %s17, %s24
    %p262 = scmp.eq.s32.totalorder %s261, 0
    %s264 = sadd.s32 %s263, 1
    %s265 = scalar_select %p262, %s263, %s264
    %p268 = pneg %p262
    %p269 = scmp.eq.s32.totalorder %s17, 1
    %p270 = por %p268, %p269
    %p271 = scmp.ne.s32.totalorder %s263, %s266
    %p272 = scmp.eq.s32.totalorder %s17, 0
    %p273 = por %p271, %p272
    %p274 = scmp.ne.s32.totalorder %s263, %s266
    %p275 = scmp.eq.s32.totalorder %s22, 1
    %p276 = por %p274, %p275
    %p277 = scmp.ne.s32.totalorder %s266, %s267
    %p278 = scmp.eq.s32.totalorder %s22, 0
    %p279 = por %p277, %p278
    %p280 = scmp.ne.s32.totalorder %s266, %s267
    %p281 = scmp.eq.s32.totalorder %s23, 1
    %p282 = por %p280, %p281
    %p284 = scmp.ne.s32.totalorder %s267, %s283
    %p285 = scmp.eq.s32.totalorder %s23, 0
    %p286 = por %p284, %p285
    %p287 = scmp.le.s32.totalorder 1, %s17
    %p288 = scmp.lt.s32.totalorder %s17, 3
    %p289 = pnand %p287, %p288
    %p290 = pneg %p289
    // Predicated region
    $region9: #{tpu_custom_call.1} parent=5 // pred_check
      _
    $region10: #{tpu_custom_call.1} parent=5 // pred_check_branch
      %292 = sbr.rel (%p289) target = $region12
    $region11: #{tpu_custom_call.1} parent=5 // pred_region
      %s293 = ssub.s32 %s17, 1
      // Predicated region
      $region13: #{tpu_custom_call.1} parent=11 // pred_check
        %p294 = pneg %p64
      $region14: #{tpu_custom_call.1} parent=11 // pred_check_branch
        %296 = sbr.rel (%p294) target = $region16
      $region15: #{tpu_custom_call.1} parent=11 // pred_region
        _
      $region16: #{tpu_custom_call.1} parent=11 // pred_fallthru
        _
      // Predicated region
      $region17: #{tpu_custom_call.1} parent=11 // pred_check
        %p297 = pneg %p85
      $region18: #{tpu_custom_call.1} parent=11 // pred_check_branch
        %299 = sbr.rel (%p297) target = $region20
      $region19: #{tpu_custom_call.1} parent=11 // pred_region
        _
      $region20: #{tpu_custom_call.1} parent=11 // pred_fallthru
        _
      // Predicated region
      $region21: #{tpu_custom_call.1} parent=11 // pred_check
        %p300 = pneg %p106
      $region22: #{tpu_custom_call.1} parent=11 // pred_check_branch
        %302 = sbr.rel (%p300) target = $region24
      $region23: #{tpu_custom_call.1} parent=11 // pred_region
        _
      $region24: #{tpu_custom_call.1} parent=11 // pred_fallthru
        _
      // Predicated region
      $region25: #{tpu_custom_call.1} parent=11 // pred_check
        %p303 = pneg %p127
      $region26: #{tpu_custom_call.1} parent=11 // pred_check_branch
        %305 = sbr.rel (%p303) target = $region28
      $region27: #{tpu_custom_call.1} parent=11 // pred_region
        _
      $region28: #{tpu_custom_call.1} parent=11 // pred_fallthru
        _
      // Predicated region
      $region29: #{tpu_custom_call.1} parent=11 // pred_check
        %p306 = pneg %p148
      $region30: #{tpu_custom_call.1} parent=11 // pred_check_branch
        %308 = sbr.rel (%p306) target = $region32
      $region31: #{tpu_custom_call.1} parent=11 // pred_region
        _
      $region32: #{tpu_custom_call.1} parent=11 // pred_fallthru
        _
      // Predicated region
      $region33: #{tpu_custom_call.1} parent=11 // pred_check
        %p309 = pneg %p169
      $region34: #{tpu_custom_call.1} parent=11 // pred_check_branch
        %311 = sbr.rel (%p309) target = $region36
      $region35: #{tpu_custom_call.1} parent=11 // pred_region
        _
      $region36: #{tpu_custom_call.1} parent=11 // pred_fallthru
        _
      // Predicated region
      $region37: #{tpu_custom_call.1} parent=11 // pred_check
        %p312 = pneg %p190
      $region38: #{tpu_custom_call.1} parent=11 // pred_check_branch
        %314 = sbr.rel (%p312) target = $region40
      $region39: #{tpu_custom_call.1} parent=11 // pred_region
        _
      $region40: #{tpu_custom_call.1} parent=11 // pred_fallthru
        _
      // Predicated region
      $region41: #{tpu_custom_call.1} parent=11 // pred_check
        %p315 = pneg %p211
      $region42: #{tpu_custom_call.1} parent=11 // pred_check_branch
        %317 = sbr.rel (%p315) target = $region44
      $region43: #{tpu_custom_call.1} parent=11 // pred_region
        _
      $region44: #{tpu_custom_call.1} parent=11 // pred_fallthru
        _
      // Predicated region
      $region45: #{tpu_custom_call.1} parent=11 // pred_check
        %p318 = pneg %p232
      $region46: #{tpu_custom_call.1} parent=11 // pred_check_branch
        %320 = sbr.rel (%p318) target = $region48
      $region47: #{tpu_custom_call.1} parent=11 // pred_region
        _
      $region48: #{tpu_custom_call.1} parent=11 // pred_fallthru
        _
      // Predicated region
      $region49: #{tpu_custom_call.1} parent=11 // pred_check
        %p321 = pneg %p253
      $region50: #{tpu_custom_call.1} parent=11 // pred_check_branch
        %323 = sbr.rel (%p321) target = $region52
      $region51: #{tpu_custom_call.1} parent=11 // pred_region
        _
      $region52: #{tpu_custom_call.1} parent=11 // pred_fallthru
        _
    $region12: #{tpu_custom_call.1} parent=5 // pred_fallthru
      _
    %p324 = scmp.lt.s32.totalorder %s17, 2
    // Predicated region
    $region53: #{tpu_custom_call.1} parent=5 // pred_check
      %p325 = pneg %p324
    $region54: #{tpu_custom_call.1} parent=5 // pred_check_branch
      %327 = sbr.rel (%p325) target = $region56
    $region55: #{tpu_custom_call.1} parent=5 // pred_region
      // Predicated region
      $region57: #{tpu_custom_call.1} parent=55 // pred_check
        %p328 = pneg %p37
      $region58: #{tpu_custom_call.1} parent=55 // pred_check_branch
        %330 = sbr.rel (%p328) target = $region60
      $region59: #{tpu_custom_call.1} parent=55 // pred_region
        %s331 = smul.u32 4, %s17
        %p332 = scmp.lt.s32.totalorder %s331, 7
        %s333 = scalar_select %p332, %s331, 7
        %s334 = smul.addr %s333, 8
        %s335 = scalar_lea.vmem %s0, %s334
        %s336 = smul.u32 4, %s17
      $region60: #{tpu_custom_call.1} parent=55 // pred_fallthru
        _
    $region56: #{tpu_custom_call.1} parent=5 // pred_fallthru
      _
    %p337 = scmp.le.s32.totalorder 1, %s17
    %p338 = scmp.lt.s32.totalorder %s17, 3
    %p339 = pnand %p337, %p338
    %p340 = pneg %p339
    // Predicated region
    $region61: #{tpu_custom_call.1} parent=5 // pred_check
      _
    $region62: #{tpu_custom_call.1} parent=5 // pred_check_branch
      %342 = sbr.rel (%p339) target = $region64
    $region63: #{tpu_custom_call.1} parent=5 // pred_region
      %s343 = ssub.s32 %s17, 1
      %s344 = smul.u32 4, %s22
      %p345 = scmp.lt.s32.totalorder %s344, 7
      %s346 = scalar_select %p345, %s344, 7
      %s347 = smul.addr %s346, 8
      %s348 = scalar_lea.vmem %s0, %s347
      %p349 = pneg %p43
      %p350 = pneg %p40
      %p351 = pneg %p64
      %p352 = pneg %p61
      %p353 = pneg %p85
      %p354 = pneg %p82
      %p355 = pneg %p106
      %p356 = pneg %p103
      %p357 = pneg %p127
      %p358 = pneg %p124
      %p359 = pneg %p148
      %p360 = pneg %p145
      %p361 = pneg %p169
      %p362 = pneg %p166
      %p363 = pneg %p190
      %p364 = pneg %p187
      %p365 = pneg %p211
      %p366 = pneg %p208
      %p367 = pneg %p232
      %p368 = pneg %p229
      %p369 = pneg %p253
      %p370 = pneg %p250
      %p371 = pneg %p279
      %p372 = pneg %p276
      %s373 = smul.u32 4, %s22
      %p374 = scmp.lt.s32.totalorder %s373, 7
      %s375 = scalar_select %p374, %s373, 7
      %s376 = smul.addr %s375, 8
      %s377 = scalar_lea.vmem %s11, %s376
      %s378 = smul.u32 4, %s22
      %p379 = scmp.lt.s32.totalorder %s378, 7
      %s380 = scalar_select %p379, %s378, 7
      %s381 = smul.addr %s380, 8
      %s382 = scalar_lea.vmem %s0, %s381
      %s383 = smul.u32 4, %s22
      %s384 = smul.u32 4, %s22
      %p385 = scmp.lt.s32.totalorder %s384, 7
      %s386 = scalar_select %p385, %s384, 7
      %s387 = smul.addr %s386, 8
      %s388 = scalar_lea.vmem %s11, %s387
      %s389 = smul.u32 4, %s22
      %v390 = vld [vmem:[%s382] sm:$0xff]
      %v391 = vld [vmem:[%s382 + $0x8] sm:$0xff]
      %v392 = vld [vmem:[%s382 + $0x10] sm:$0xff]
      %v393 = vld [vmem:[%s382 + $0x18] sm:$0xff]
      %v394 = vld [vmem:[%s1] sm:$0xff]
      %v395 = vld [vmem:[%s1 + $0x8] sm:$0xff]
      %v396 = vld [vmem:[%s2] sm:$0x1]
      %v397 = vld [vmem:[%s3] sm:$0xff]
      %v398 = vld [vmem:[%s3 + $0x8] sm:$0xf]
      %v399 = vld [vmem:[%s4] sm:$0xff]
      %v401 = vperm.slane %v396, 0
      %vm403 = vcmask 130048
      %v405 = vsel %vm403, %v390, 0
      %v408 = vsel %vm403, %v391, 0
      %v411 = vsel %vm403, %v392, 0
      %v414 = vsel %vm403, %v393, 0
      %416 = vmatpush.msra.mxu0 0.0
      %417 = vmatpush.msra.mxu0 0.0
      %418 = vmatpush.msra.mxu0 0.0
      %419 = vmatpush.msra.mxu0 0.0
      %420 = vmatpush.msra.mxu0 0.0
      %421 = vmatpush.msra.mxu0 0.0
      %422 = vmatpush.msra.mxu0 0.0
      %423 = vmatpush.msra.mxu0 0.0
      %424 = vmatpush.msra.mxu0 0.0
      %425 = vmatpush.msra.mxu0 0.0
      %426 = vmatpush.msra.mxu0 0.0
      %427 = vmatpush.msra.mxu0 0.0
      %428 = vmatpush.msra.mxu0 0.0
      %429 = vmatpush.msra.mxu0 0.0
      %430 = vmatpush.msra.mxu0 %v395
      %431 = vmatpush.msra.mxu0 %v394
      %432 = vmatmul.f32.gmra.mxu0 %v405
      %v433 = vpop.f32.mrf.mxu0
      %v434 = vadd.f32 %v401, %v433
      %435 = vmatmul.f32.gmra.mxu0 %v408
      %v436 = vpop.f32.mrf.mxu0
      %v437 = vadd.f32 %v401, %v436
      %438 = vmatmul.f32.gmra.mxu0 %v411
      %v439 = vpop.f32.mrf.mxu0
      %v440 = vadd.f32 %v401, %v439
      %441 = vmatmul.f32.gmra.mxu0 %v414
      %v442 = vpop.f32.mrf.mxu0
      %v443 = vadd.f32 %v401, %v442
      %444 = vdwg.mxu0
      %v445 = vperm.slane %v397, 0
      %vm446 = vcmp.ge.f32.partialorder %v434, %v445
      %vm447 = vcmp.ge.f32.partialorder %v437, %v445
      %vm448 = vcmp.ge.f32.partialorder %v440, %v445
      %vm449 = vcmp.ge.f32.partialorder %v443, %v445
      %v450 = vperm.slane %v397, 1
      %vm451 = vcmp.lt.f32.partialorder %v434, %v450
      %vm452 = vcmp.lt.f32.partialorder %v437, %v450
      %vm453 = vcmp.lt.f32.partialorder %v440, %v450
      %vm454 = vcmp.lt.f32.partialorder %v443, %v450
      %vm455 = vmand %vm446, %vm451
      %vm456 = vmand %vm447, %vm452
      %vm457 = vmand %vm448, %vm453
      %vm458 = vmand %vm449, %vm454
      %v459 = vsel %vm455, 1, 0
      %v460 = vsel %vm456, 1, 0
      %v461 = vsel %vm457, 1, 0
      %v462 = vsel %vm458, 1, 0
      %v463 = vcvt.s32.f32 %v459
      %v464 = vcvt.s32.f32 %v460
      %v465 = vcvt.s32.f32 %v461
      %v466 = vcvt.s32.f32 %v462
      %vm467 = vcmp.ge.f32.partialorder %v434, %v450
      %vm468 = vcmp.ge.f32.partialorder %v437, %v450
      %vm469 = vcmp.ge.f32.partialorder %v440, %v450
      %vm470 = vcmp.ge.f32.partialorder %v443, %v450
      %v471 = vperm.slane %v397, 2
      %vm472 = vcmp.lt.f32.partialorder %v434, %v471
      %vm473 = vcmp.lt.f32.partialorder %v437, %v471
      %vm474 = vcmp.lt.f32.partialorder %v440, %v471
      %vm475 = vcmp.lt.f32.partialorder %v443, %v471
      %vm476 = vmand %vm467, %vm472
      %vm477 = vmand %vm468, %vm473
      %vm478 = vmand %vm469, %vm474
      %vm479 = vmand %vm470, %vm475
      %v480 = vsel %vm476, 1, 0
      %v481 = vsel %vm477, 1, 0
      %v482 = vsel %vm478, 1, 0
      %v483 = vsel %vm479, 1, 0
      %v484 = vcvt.s32.f32 %v480
      %v485 = vcvt.s32.f32 %v481
      %v486 = vcvt.s32.f32 %v482
      %v487 = vcvt.s32.f32 %v483
      %vm488 = vcmp.ge.f32.partialorder %v434, %v471
      %vm489 = vcmp.ge.f32.partialorder %v437, %v471
      %vm490 = vcmp.ge.f32.partialorder %v440, %v471
      %vm491 = vcmp.ge.f32.partialorder %v443, %v471
      %v492 = vperm.slane %v397, 3
      %vm493 = vcmp.lt.f32.partialorder %v434, %v492
      %vm494 = vcmp.lt.f32.partialorder %v437, %v492
      %vm495 = vcmp.lt.f32.partialorder %v440, %v492
      %vm496 = vcmp.lt.f32.partialorder %v443, %v492
      %vm497 = vmand %vm488, %vm493
      %vm498 = vmand %vm489, %vm494
      %vm499 = vmand %vm490, %vm495
      %vm500 = vmand %vm491, %vm496
      %v501 = vsel %vm497, 1, 0
      %v502 = vsel %vm498, 1, 0
      %v503 = vsel %vm499, 1, 0
      %v504 = vsel %vm500, 1, 0
      %v505 = vcvt.s32.f32 %v501
      %v506 = vcvt.s32.f32 %v502
      %v507 = vcvt.s32.f32 %v503
      %v508 = vcvt.s32.f32 %v504
      %vm509 = vcmp.ge.f32.partialorder %v434, %v492
      %vm510 = vcmp.ge.f32.partialorder %v437, %v492
      %vm511 = vcmp.ge.f32.partialorder %v440, %v492
      %vm512 = vcmp.ge.f32.partialorder %v443, %v492
      %v513 = vperm.slane %v397, 4
      %vm514 = vcmp.lt.f32.partialorder %v434, %v513
      %vm515 = vcmp.lt.f32.partialorder %v437, %v513
      %vm516 = vcmp.lt.f32.partialorder %v440, %v513
      %vm517 = vcmp.lt.f32.partialorder %v443, %v513
      %vm518 = vmand %vm509, %vm514
      %vm519 = vmand %vm510, %vm515
      %vm520 = vmand %vm511, %vm516
      %vm521 = vmand %vm512, %vm517
      %v522 = vsel %vm518, 1, 0
      %v523 = vsel %vm519, 1, 0
      %v524 = vsel %vm520, 1, 0
      %v525 = vsel %vm521, 1, 0
      %v526 = vcvt.s32.f32 %v522
      %v527 = vcvt.s32.f32 %v523
      %v528 = vcvt.s32.f32 %v524
      %v529 = vcvt.s32.f32 %v525
      %vm530 = vcmp.ge.f32.partialorder %v434, %v513
      %vm531 = vcmp.ge.f32.partialorder %v437, %v513
      %vm532 = vcmp.ge.f32.partialorder %v440, %v513
      %vm533 = vcmp.ge.f32.partialorder %v443, %v513
      %v534 = vperm.slane %v397, 5
      %vm535 = vcmp.lt.f32.partialorder %v434, %v534
      %vm536 = vcmp.lt.f32.partialorder %v437, %v534
      %vm537 = vcmp.lt.f32.partialorder %v440, %v534
      %vm538 = vcmp.lt.f32.partialorder %v443, %v534
      %vm539 = vmand %vm530, %vm535
      %vm540 = vmand %vm531, %vm536
      %vm541 = vmand %vm532, %vm537
      %vm542 = vmand %vm533, %vm538
      %v543 = vsel %vm539, 1, 0
      %v544 = vsel %vm540, 1, 0
      %v545 = vsel %vm541, 1, 0
      %v546 = vsel %vm542, 1, 0
      %v547 = vcvt.s32.f32 %v543
      %v548 = vcvt.s32.f32 %v544
      %v549 = vcvt.s32.f32 %v545
      %v550 = vcvt.s32.f32 %v546
      %vm551 = vcmp.ge.f32.partialorder %v434, %v534
      %vm552 = vcmp.ge.f32.partialorder %v437, %v534
      %vm553 = vcmp.ge.f32.partialorder %v440, %v534
      %vm554 = vcmp.ge.f32.partialorder %v443, %v534
      %v555 = vperm.slane %v397, 6
      %vm556 = vcmp.lt.f32.partialorder %v434, %v555
      %vm557 = vcmp.lt.f32.partialorder %v437, %v555
      %vm558 = vcmp.lt.f32.partialorder %v440, %v555
      %vm559 = vcmp.lt.f32.partialorder %v443, %v555
      %vm560 = vmand %vm551, %vm556
      %vm561 = vmand %vm552, %vm557
      %vm562 = vmand %vm553, %vm558
      %vm563 = vmand %vm554, %vm559
      %v564 = vsel %vm560, 1, 0
      %v565 = vsel %vm561, 1, 0
      %v566 = vsel %vm562, 1, 0
      %v567 = vsel %vm563, 1, 0
      %v568 = vcvt.s32.f32 %v564
      %v569 = vcvt.s32.f32 %v565
      %v570 = vcvt.s32.f32 %v566
      %v571 = vcvt.s32.f32 %v567
      %vm572 = vcmp.ge.f32.partialorder %v434, %v555
      %vm573 = vcmp.ge.f32.partialorder %v437, %v555
      %vm574 = vcmp.ge.f32.partialorder %v440, %v555
      %vm575 = vcmp.ge.f32.partialorder %v443, %v555
      %v576 = vperm.slane %v397, 7
      %vm577 = vcmp.lt.f32.partialorder %v434, %v576
      %vm578 = vcmp.lt.f32.partialorder %v437, %v576
      %vm579 = vcmp.lt.f32.partialorder %v440, %v576
      %vm580 = vcmp.lt.f32.partialorder %v443, %v576
      %vm581 = vmand %vm572, %vm577
      %vm582 = vmand %vm573, %vm578
      %vm583 = vmand %vm574, %vm579
      %vm584 = vmand %vm575, %vm580
      %v585 = vsel %vm581, 1, 0
      %v586 = vsel %vm582, 1, 0
      %v587 = vsel %vm583, 1, 0
      %v588 = vsel %vm584, 1, 0
      %v589 = vcvt.s32.f32 %v585
      %v590 = vcvt.s32.f32 %v586
      %v591 = vcvt.s32.f32 %v587
      %v592 = vcvt.s32.f32 %v588
      %vm593 = vcmp.ge.f32.partialorder %v434, %v576
      %vm594 = vcmp.ge.f32.partialorder %v437, %v576
      %vm595 = vcmp.ge.f32.partialorder %v440, %v576
      %vm596 = vcmp.ge.f32.partialorder %v443, %v576
      %v597 = vperm.slane %v398, 0
      %vm598 = vcmp.lt.f32.partialorder %v434, %v597
      %vm599 = vcmp.lt.f32.partialorder %v437, %v597
      %vm600 = vcmp.lt.f32.partialorder %v440, %v597
      %vm601 = vcmp.lt.f32.partialorder %v443, %v597
      %vm602 = vmand %vm593, %vm598
      %vm603 = vmand %vm594, %vm599
      %vm604 = vmand %vm595, %vm600
      %vm605 = vmand %vm596, %vm601
      %v606 = vsel %vm602, 1, 0
      %v607 = vsel %vm603, 1, 0
      %v608 = vsel %vm604, 1, 0
      %v609 = vsel %vm605, 1, 0
      %v610 = vcvt.s32.f32 %v606
      %v611 = vcvt.s32.f32 %v607
      %v612 = vcvt.s32.f32 %v608
      %v613 = vcvt.s32.f32 %v609
      %vm614 = vcmp.ge.f32.partialorder %v434, %v597
      %vm615 = vcmp.ge.f32.partialorder %v437, %v597
      %vm616 = vcmp.ge.f32.partialorder %v440, %v597
      %vm617 = vcmp.ge.f32.partialorder %v443, %v597
      %v618 = vperm.slane %v398, 1
      %vm619 = vcmp.lt.f32.partialorder %v434, %v618
      %vm620 = vcmp.lt.f32.partialorder %v437, %v618
      %vm621 = vcmp.lt.f32.partialorder %v440, %v618
      %vm622 = vcmp.lt.f32.partialorder %v443, %v618
      %vm623 = vmand %vm614, %vm619
      %vm624 = vmand %vm615, %vm620
      %vm625 = vmand %vm616, %vm621
      %vm626 = vmand %vm617, %vm622
      %v627 = vsel %vm623, 1, 0
      %v628 = vsel %vm624, 1, 0
      %v629 = vsel %vm625, 1, 0
      %v630 = vsel %vm626, 1, 0
      %v631 = vcvt.s32.f32 %v627
      %v632 = vcvt.s32.f32 %v628
      %v633 = vcvt.s32.f32 %v629
      %v634 = vcvt.s32.f32 %v630
      %vm635 = vcmp.ge.f32.partialorder %v434, %v618
      %vm636 = vcmp.ge.f32.partialorder %v437, %v618
      %vm637 = vcmp.ge.f32.partialorder %v440, %v618
      %vm638 = vcmp.ge.f32.partialorder %v443, %v618
      %v639 = vperm.slane %v398, 2
      %vm640 = vcmp.lt.f32.partialorder %v434, %v639
      %vm641 = vcmp.lt.f32.partialorder %v437, %v639
      %vm642 = vcmp.lt.f32.partialorder %v440, %v639
      %vm643 = vcmp.lt.f32.partialorder %v443, %v639
      %vm644 = vmand %vm635, %vm640
      %vm645 = vmand %vm636, %vm641
      %vm646 = vmand %vm637, %vm642
      %vm647 = vmand %vm638, %vm643
      %v648 = vsel %vm644, 1, 0
      %v649 = vsel %vm645, 1, 0
      %v650 = vsel %vm646, 1, 0
      %v651 = vsel %vm647, 1, 0
      %v652 = vcvt.s32.f32 %v648
      %v653 = vcvt.s32.f32 %v649
      %v654 = vcvt.s32.f32 %v650
      %v655 = vcvt.s32.f32 %v651
      %vm656 = vcmp.ge.f32.partialorder %v434, %v639
      %vm657 = vcmp.ge.f32.partialorder %v437, %v639
      %vm658 = vcmp.ge.f32.partialorder %v440, %v639
      %vm659 = vcmp.ge.f32.partialorder %v443, %v639
      %v660 = vperm.slane %v398, 3
      %vm661 = vcmp.lt.f32.partialorder %v434, %v660
      %vm662 = vcmp.lt.f32.partialorder %v437, %v660
      %vm663 = vcmp.lt.f32.partialorder %v440, %v660
      %vm664 = vcmp.lt.f32.partialorder %v443, %v660
      %vm665 = vmand %vm656, %vm661
      %vm666 = vmand %vm657, %vm662
      %vm667 = vmand %vm658, %vm663
      %vm668 = vmand %vm659, %vm664
      %v669 = vsel %vm665, 1, 0
      %v670 = vsel %vm666, 1, 0
      %v671 = vsel %vm667, 1, 0
      %v672 = vsel %vm668, 1, 0
      %v673 = vcvt.s32.f32 %v669
      %v674 = vcvt.s32.f32 %v670
      %v675 = vcvt.s32.f32 %v671
      %v676 = vcvt.s32.f32 %v672
      %v678 = vrot.slane %v397, 7
      %v680 = vsub.f32 %v397, %v678
      %v681 = vrcp.pop %v680
      %v682 = vmul.f32 %v680, %v681
      %v683 = vsub.f32 1.0, %v682
      %v684 = vmul.f32 %v681, %v683
      %v685 = vadd.f32 %v681, %v684
      %vm686 = vweird.f32 %v680
      %vm687 = vweird.f32 %v681
      %vm688 = vmor %vm686, %vm687
      %v689 = vsel %vm688, %v681, %v685
      %v690 = vand.u32 2147483647, %v680
      %vm691 = vcmp.eq.f32.partialorder %v690, 8.507059e+37
      %v692 = vand.u32 %v680, 2147483648
      %v693 = vor.u32 1.1754944e-38, %v692
      %v694 = vsel %vm691, %v693, %v689
      %v695 = vsub.f32 %v434, %v445
      %v696 = vsub.f32 %v437, %v445
      %v697 = vsub.f32 %v440, %v445
      %v698 = vsub.f32 %v443, %v445
      %v699 = vperm.slane %v694, 1
      %v700 = vmul.f32 %v695, %v699
      %v701 = vmul.f32 %v696, %v699
      %v702 = vmul.f32 %v697, %v699
      %v703 = vmul.f32 %v698, %v699
      %v704 = vmul.f32 %v700, %v463
      %v705 = vmul.f32 %v701, %v464
      %v706 = vmul.f32 %v702, %v465
      %v707 = vmul.f32 %v703, %v466
      %v708 = vsub.f32 %v471, %v434
      %v709 = vsub.f32 %v471, %v437
      %v710 = vsub.f32 %v471, %v440
      %v711 = vsub.f32 %v471, %v443
      %v712 = vperm.slane %v694, 2
      %v713 = vmul.f32 %v708, %v712
      %v714 = vmul.f32 %v709, %v712
      %v715 = vmul.f32 %v710, %v712
      %v716 = vmul.f32 %v711, %v712
      %v717 = vmul.f32 %v713, %v484
      %v718 = vmul.f32 %v714, %v485
      %v719 = vmul.f32 %v715, %v486
      %v720 = vmul.f32 %v716, %v487
      %v721 = vadd.f32 %v704, %v717
      %v722 = vadd.f32 %v705, %v718
      %v723 = vadd.f32 %v706, %v719
      %v724 = vadd.f32 %v707, %v720
      %v725 = vsub.f32 %v434, %v450
      %v726 = vsub.f32 %v437, %v450
      %v727 = vsub.f32 %v440, %v450
      %v728 = vsub.f32 %v443, %v450
      %v729 = vmul.f32 %v725, %v712
      %v730 = vmul.f32 %v726, %v712
      %v731 = vmul.f32 %v727, %v712
      %v732 = vmul.f32 %v728, %v712
      %v733 = vmul.f32 %v729, %v484
      %v734 = vmul.f32 %v730, %v485
      %v735 = vmul.f32 %v731, %v486
      %v736 = vmul.f32 %v732, %v487
      %v737 = vsub.f32 %v492, %v434
      %v738 = vsub.f32 %v492, %v437
      %v739 = vsub.f32 %v492, %v440
      %v740 = vsub.f32 %v492, %v443
      %v741 = vperm.slane %v694, 3
      %v742 = vmul.f32 %v737, %v741
      %v743 = vmul.f32 %v738, %v741
      %v744 = vmul.f32 %v739, %v741
      %v745 = vmul.f32 %v740, %v741
      %v746 = vmul.f32 %v742, %v505
      %v747 = vmul.f32 %v743, %v506
      %v748 = vmul.f32 %v744, %v507
      %v749 = vmul.f32 %v745, %v508
      %v750 = vadd.f32 %v733, %v746
      %v751 = vadd.f32 %v734, %v747
      %v752 = vadd.f32 %v735, %v748
      %v753 = vadd.f32 %v736, %v749
      %v754 = vsub.f32 %v434, %v471
      %v755 = vsub.f32 %v437, %v471
      %v756 = vsub.f32 %v440, %v471
      %v757 = vsub.f32 %v443, %v471
      %v758 = vmul.f32 %v754, %v741
      %v759 = vmul.f32 %v755, %v741
      %v760 = vmul.f32 %v756, %v741
      %v761 = vmul.f32 %v757, %v741
      %v762 = vmul.f32 %v758, %v505
      %v763 = vmul.f32 %v759, %v506
      %v764 = vmul.f32 %v760, %v507
      %v765 = vmul.f32 %v761, %v508
      %v766 = vsub.f32 %v513, %v434
      %v767 = vsub.f32 %v513, %v437
      %v768 = vsub.f32 %v513, %v440
      %v769 = vsub.f32 %v513, %v443
      %v770 = vperm.slane %v694, 4
      %v771 = vmul.f32 %v766, %v770
      %v772 = vmul.f32 %v767, %v770
      %v773 = vmul.f32 %v768, %v770
      %v774 = vmul.f32 %v769, %v770
      %v775 = vmul.f32 %v771, %v526
      %v776 = vmul.f32 %v772, %v527
      %v777 = vmul.f32 %v773, %v528
      %v778 = vmul.f32 %v774, %v529
      %v779 = vadd.f32 %v762, %v775
      %v780 = vadd.f32 %v763, %v776
      %v781 = vadd.f32 %v764, %v777
      %v782 = vadd.f32 %v765, %v778
      %v783 = vsub.f32 %v434, %v492
      %v784 = vsub.f32 %v437, %v492
      %v785 = vsub.f32 %v440, %v492
      %v786 = vsub.f32 %v443, %v492
      %v787 = vmul.f32 %v783, %v770
      %v788 = vmul.f32 %v784, %v770
      %v789 = vmul.f32 %v785, %v770
      %v790 = vmul.f32 %v786, %v770
      %v791 = vmul.f32 %v787, %v526
      %v792 = vmul.f32 %v788, %v527
      %v793 = vmul.f32 %v789, %v528
      %v794 = vmul.f32 %v790, %v529
      %v795 = vsub.f32 %v534, %v434
      %v796 = vsub.f32 %v534, %v437
      %v797 = vsub.f32 %v534, %v440
      %v798 = vsub.f32 %v534, %v443
      %v799 = vperm.slane %v694, 5
      %v800 = vmul.f32 %v795, %v799
      %v801 = vmul.f32 %v796, %v799
      %v802 = vmul.f32 %v797, %v799
      %v803 = vmul.f32 %v798, %v799
      %v804 = vmul.f32 %v800, %v547
      %v805 = vmul.f32 %v801, %v548
      %v806 = vmul.f32 %v802, %v549
      %v807 = vmul.f32 %v803, %v550
      %v808 = vadd.f32 %v791, %v804
      %v809 = vadd.f32 %v792, %v805
      %v810 = vadd.f32 %v793, %v806
      %v811 = vadd.f32 %v794, %v807
      %v812 = vsub.f32 %v434, %v513
      %v813 = vsub.f32 %v437, %v513
      %v814 = vsub.f32 %v440, %v513
      %v815 = vsub.f32 %v443, %v513
      %v816 = vmul.f32 %v812, %v799
      %v817 = vmul.f32 %v813, %v799
      %v818 = vmul.f32 %v814, %v799
      %v819 = vmul.f32 %v815, %v799
      %v820 = vmul.f32 %v816, %v547
      %v821 = vmul.f32 %v817, %v548
      %v822 = vmul.f32 %v818, %v549
      %v823 = vmul.f32 %v819, %v550
      %v824 = vsub.f32 %v555, %v434
      %v825 = vsub.f32 %v555, %v437
      %v826 = vsub.f32 %v555, %v440
      %v827 = vsub.f32 %v555, %v443
      %v828 = vperm.slane %v694, 6
      %v829 = vmul.f32 %v824, %v828
      %v830 = vmul.f32 %v825, %v828
      %v831 = vmul.f32 %v826, %v828
      %v832 = vmul.f32 %v827, %v828
      %v833 = vmul.f32 %v829, %v568
      %v834 = vmul.f32 %v830, %v569
      %v835 = vmul.f32 %v831, %v570
      %v836 = vmul.f32 %v832, %v571
      %v837 = vadd.f32 %v820, %v833
      %v838 = vadd.f32 %v821, %v834
      %v839 = vadd.f32 %v822, %v835
      %v840 = vadd.f32 %v823, %v836
      %v841 = vsub.f32 %v434, %v534
      %v842 = vsub.f32 %v437, %v534
      %v843 = vsub.f32 %v440, %v534
      %v844 = vsub.f32 %v443, %v534
      %v845 = vmul.f32 %v841, %v828
      %v846 = vmul.f32 %v842, %v828
      %v847 = vmul.f32 %v843, %v828
      %v848 = vmul.f32 %v844, %v828
      %v849 = vmul.f32 %v845, %v568
      %v850 = vmul.f32 %v846, %v569
      %v851 = vmul.f32 %v847, %v570
      %v852 = vmul.f32 %v848, %v571
      %v853 = vsub.f32 %v576, %v434
      %v854 = vsub.f32 %v576, %v437
      %v855 = vsub.f32 %v576, %v440
      %v856 = vsub.f32 %v576, %v443
      %v857 = vperm.slane %v694, 7
      %v858 = vmul.f32 %v853, %v857
      %v859 = vmul.f32 %v854, %v857
      %v860 = vmul.f32 %v855, %v857
      %v861 = vmul.f32 %v856, %v857
      %v862 = vmul.f32 %v858, %v589
      %v863 = vmul.f32 %v859, %v590
      %v864 = vmul.f32 %v860, %v591
      %v865 = vmul.f32 %v861, %v592
      %v866 = vadd.f32 %v849, %v862
      %v867 = vadd.f32 %v850, %v863
      %v868 = vadd.f32 %v851, %v864
      %v869 = vadd.f32 %v852, %v865
      %v870 = vsub.f32 %v398, %v678
      %v871 = vrcp.pop %v870
      %v872 = vmul.f32 %v870, %v871
      %v873 = vsub.f32 1.0, %v872
      %v874 = vmul.f32 %v871, %v873
      %v875 = vadd.f32 %v871, %v874
      %vm876 = vweird.f32 %v870
      %vm877 = vweird.f32 %v871
      %vm878 = vmor %vm876, %vm877
      %v879 = vsel %vm878, %v871, %v875
      %v880 = vand.u32 2147483647, %v870
      %vm881 = vcmp.eq.f32.partialorder %v880, 8.507059e+37
      %v882 = vand.u32 %v870, 2147483648
      %v883 = vor.u32 1.1754944e-38, %v882
      %v884 = vsel %vm881, %v883, %v879
      %v885 = vsub.f32 %v434, %v555
      %v886 = vsub.f32 %v437, %v555
      %v887 = vsub.f32 %v440, %v555
      %v888 = vsub.f32 %v443, %v555
      %v889 = vmul.f32 %v885, %v857
      %v890 = vmul.f32 %v886, %v857
      %v891 = vmul.f32 %v887, %v857
      %v892 = vmul.f32 %v888, %v857
      %v893 = vmul.f32 %v889, %v589
      %v894 = vmul.f32 %v890, %v590
      %v895 = vmul.f32 %v891, %v591
      %v896 = vmul.f32 %v892, %v592
      %v897 = vsub.f32 %v597, %v434
      %v898 = vsub.f32 %v597, %v437
      %v899 = vsub.f32 %v597, %v440
      %v900 = vsub.f32 %v597, %v443
      %v901 = vperm.slane %v884, 0
      %v902 = vmul.f32 %v897, %v901
      %v903 = vmul.f32 %v898, %v901
      %v904 = vmul.f32 %v899, %v901
      %v905 = vmul.f32 %v900, %v901
      %v906 = vmul.f32 %v902, %v610
      %v907 = vmul.f32 %v903, %v611
      %v908 = vmul.f32 %v904, %v612
      %v909 = vmul.f32 %v905, %v613
      %v910 = vadd.f32 %v893, %v906
      %v911 = vadd.f32 %v894, %v907
      %v912 = vadd.f32 %v895, %v908
      %v913 = vadd.f32 %v896, %v909
      %v915 = vrot.slane %v398, 7
      %v917 = vsub.f32 %v398, %v915
      %v918 = vrcp.pop %v917
      %v919 = vmul.f32 %v917, %v918
      %v920 = vsub.f32 1.0, %v919
      %v921 = vmul.f32 %v918, %v920
      %v922 = vadd.f32 %v918, %v921
      %vm923 = vweird.f32 %v917
      %vm924 = vweird.f32 %v918
      %vm925 = vmor %vm923, %vm924
      %v926 = vsel %vm925, %v918, %v922
      %v927 = vand.u32 2147483647, %v917
      %vm928 = vcmp.eq.f32.partialorder %v927, 8.507059e+37
      %v929 = vand.u32 %v917, 2147483648
      %v930 = vor.u32 1.1754944e-38, %v929
      %v931 = vsel %vm928, %v930, %v926
      %v932 = vsub.f32 %v434, %v576
      %v933 = vsub.f32 %v437, %v576
      %v934 = vsub.f32 %v440, %v576
      %v935 = vsub.f32 %v443, %v576
      %v936 = vmul.f32 %v932, %v901
      %v937 = vmul.f32 %v933, %v901
      %v938 = vmul.f32 %v934, %v901
      %v939 = vmul.f32 %v935, %v901
      %v940 = vmul.f32 %v936, %v610
      %v941 = vmul.f32 %v937, %v611
      %v942 = vmul.f32 %v938, %v612
      %v943 = vmul.f32 %v939, %v613
      %v944 = vsub.f32 %v618, %v434
      %v945 = vsub.f32 %v618, %v437
      %v946 = vsub.f32 %v618, %v440
      %v947 = vsub.f32 %v618, %v443
      %v948 = vperm.slane %v931, 1
      %v949 = vmul.f32 %v944, %v948
      %v950 = vmul.f32 %v945, %v948
      %v951 = vmul.f32 %v946, %v948
      %v952 = vmul.f32 %v947, %v948
      %v953 = vmul.f32 %v949, %v631
      %v954 = vmul.f32 %v950, %v632
      %v955 = vmul.f32 %v951, %v633
      %v956 = vmul.f32 %v952, %v634
      %v957 = vadd.f32 %v940, %v953
      %v958 = vadd.f32 %v941, %v954
      %v959 = vadd.f32 %v942, %v955
      %v960 = vadd.f32 %v943, %v956
      %v961 = vsub.f32 %v434, %v597
      %v962 = vsub.f32 %v437, %v597
      %v963 = vsub.f32 %v440, %v597
      %v964 = vsub.f32 %v443, %v597
      %v965 = vmul.f32 %v961, %v948
      %v966 = vmul.f32 %v962, %v948
      %v967 = vmul.f32 %v963, %v948
      %v968 = vmul.f32 %v964, %v948
      %v969 = vmul.f32 %v965, %v631
      %v970 = vmul.f32 %v966, %v632
      %v971 = vmul.f32 %v967, %v633
      %v972 = vmul.f32 %v968, %v634
      %v973 = vsub.f32 %v639, %v434
      %v974 = vsub.f32 %v639, %v437
      %v975 = vsub.f32 %v639, %v440
      %v976 = vsub.f32 %v639, %v443
      %v977 = vperm.slane %v931, 2
      %v978 = vmul.f32 %v973, %v977
      %v979 = vmul.f32 %v974, %v977
      %v980 = vmul.f32 %v975, %v977
      %v981 = vmul.f32 %v976, %v977
      %v982 = vmul.f32 %v978, %v652
      %v983 = vmul.f32 %v979, %v653
      %v984 = vmul.f32 %v980, %v654
      %v985 = vmul.f32 %v981, %v655
      %v986 = vadd.f32 %v969, %v982
      %v987 = vadd.f32 %v970, %v983
      %v988 = vadd.f32 %v971, %v984
      %v989 = vadd.f32 %v972, %v985
      %v990 = vsub.f32 %v434, %v618
      %v991 = vsub.f32 %v437, %v618
      %v992 = vsub.f32 %v440, %v618
      %v993 = vsub.f32 %v443, %v618
      %v994 = vmul.f32 %v990, %v977
      %v995 = vmul.f32 %v991, %v977
      %v996 = vmul.f32 %v992, %v977
      %v997 = vmul.f32 %v993, %v977
      %v998 = vmul.f32 %v994, %v652
      %v999 = vmul.f32 %v995, %v653
      %v1000 = vmul.f32 %v996, %v654
      %v1001 = vmul.f32 %v997, %v655
      %v1002 = vsub.f32 %v660, %v434
      %v1003 = vsub.f32 %v660, %v437
      %v1004 = vsub.f32 %v660, %v440
      %v1005 = vsub.f32 %v660, %v443
      %v1006 = vperm.slane %v931, 3
      %v1007 = vmul.f32 %v1002, %v1006
      %v1008 = vmul.f32 %v1003, %v1006
      %v1009 = vmul.f32 %v1004, %v1006
      %v1010 = vmul.f32 %v1005, %v1006
      %v1011 = vmul.f32 %v1007, %v673
      %v1012 = vmul.f32 %v1008, %v674
      %v1013 = vmul.f32 %v1009, %v675
      %v1014 = vmul.f32 %v1010, %v676
      %v1015 = vadd.f32 %v998, %v1011
      %v1016 = vadd.f32 %v999, %v1012
      %v1017 = vadd.f32 %v1000, %v1013
      %v1018 = vadd.f32 %v1001, %v1014
      %v1019 = vrot.slane %v397, 6
      %v1021 = vsub.f32 %v397, %v1019
      %v1022 = vrcp.pop %v1021
      %v1023 = vmul.f32 %v1021, %v1022
      %v1024 = vsub.f32 1.0, %v1023
      %v1025 = vmul.f32 %v1022, %v1024
      %v1026 = vadd.f32 %v1022, %v1025
      %vm1027 = vweird.f32 %v1021
      %vm1028 = vweird.f32 %v1022
      %vm1029 = vmor %vm1027, %vm1028
      %v1030 = vsel %vm1029, %v1022, %v1026
      %v1031 = vand.u32 2147483647, %v1021
      %vm1032 = vcmp.eq.f32.partialorder %v1031, 8.507059e+37
      %v1033 = vand.u32 %v1021, 2147483648
      %v1034 = vor.u32 1.1754944e-38, %v1033
      %v1035 = vsel %vm1032, %v1034, %v1030
      %v1036 = vperm.slane %v1035, 2
      %v1037 = vmul.f32 %v695, %v1036
      %v1038 = vmul.f32 %v696, %v1036
      %v1039 = vmul.f32 %v697, %v1036
      %v1040 = vmul.f32 %v698, %v1036
      %v1041 = vmul.f32 %v1037, %v721
      %v1042 = vmul.f32 %v1038, %v722
      %v1043 = vmul.f32 %v1039, %v723
      %v1044 = vmul.f32 %v1040, %v724
      %v1045 = vperm.slane %v1035, 3
      %v1046 = vmul.f32 %v737, %v1045
      %v1047 = vmul.f32 %v738, %v1045
      %v1048 = vmul.f32 %v739, %v1045
      %v1049 = vmul.f32 %v740, %v1045
      %v1050 = vmul.f32 %v1046, %v750
      %v1051 = vmul.f32 %v1047, %v751
      %v1052 = vmul.f32 %v1048, %v752
      %v1053 = vmul.f32 %v1049, %v753
      %v1054 = vadd.f32 %v1041, %v1050
      %v1055 = vadd.f32 %v1042, %v1051
      %v1056 = vadd.f32 %v1043, %v1052
      %v1057 = vadd.f32 %v1044, %v1053
      %v1058 = vmul.f32 %v725, %v1045
      %v1059 = vmul.f32 %v726, %v1045
      %v1060 = vmul.f32 %v727, %v1045
      %v1061 = vmul.f32 %v728, %v1045
      %v1062 = vmul.f32 %v1058, %v750
      %v1063 = vmul.f32 %v1059, %v751
      %v1064 = vmul.f32 %v1060, %v752
      %v1065 = vmul.f32 %v1061, %v753
      %v1066 = vperm.slane %v1035, 4
      %v1067 = vmul.f32 %v766, %v1066
      %v1068 = vmul.f32 %v767, %v1066
      %v1069 = vmul.f32 %v768, %v1066
      %v1070 = vmul.f32 %v769, %v1066
      %v1071 = vmul.f32 %v1067, %v779
      %v1072 = vmul.f32 %v1068, %v780
      %v1073 = vmul.f32 %v1069, %v781
      %v1074 = vmul.f32 %v1070, %v782
      %v1075 = vadd.f32 %v1062, %v1071
      %v1076 = vadd.f32 %v1063, %v1072
      %v1077 = vadd.f32 %v1064, %v1073
      %v1078 = vadd.f32 %v1065, %v1074
      %v1079 = vmul.f32 %v754, %v1066
      %v1080 = vmul.f32 %v755, %v1066
      %v1081 = vmul.f32 %v756, %v1066
      %v1082 = vmul.f32 %v757, %v1066
      %v1083 = vmul.f32 %v1079, %v779
      %v1084 = vmul.f32 %v1080, %v780
      %v1085 = vmul.f32 %v1081, %v781
      %v1086 = vmul.f32 %v1082, %v782
      %v1087 = vperm.slane %v1035, 5
      %v1088 = vmul.f32 %v795, %v1087
      %v1089 = vmul.f32 %v796, %v1087
      %v1090 = vmul.f32 %v797, %v1087
      %v1091 = vmul.f32 %v798, %v1087
      %v1092 = vmul.f32 %v1088, %v808
      %v1093 = vmul.f32 %v1089, %v809
      %v1094 = vmul.f32 %v1090, %v810
      %v1095 = vmul.f32 %v1091, %v811
      %v1096 = vadd.f32 %v1083, %v1092
      %v1097 = vadd.f32 %v1084, %v1093
      %v1098 = vadd.f32 %v1085, %v1094
      %v1099 = vadd.f32 %v1086, %v1095
      %v1100 = vmul.f32 %v783, %v1087
      %v1101 = vmul.f32 %v784, %v1087
      %v1102 = vmul.f32 %v785, %v1087
      %v1103 = vmul.f32 %v786, %v1087
      %v1104 = vmul.f32 %v1100, %v808
      %v1105 = vmul.f32 %v1101, %v809
      %v1106 = vmul.f32 %v1102, %v810
      %v1107 = vmul.f32 %v1103, %v811
      %v1108 = vperm.slane %v1035, 6
      %v1109 = vmul.f32 %v824, %v1108
      %v1110 = vmul.f32 %v825, %v1108
      %v1111 = vmul.f32 %v826, %v1108
      %v1112 = vmul.f32 %v827, %v1108
      %v1113 = vmul.f32 %v1109, %v837
      %v1114 = vmul.f32 %v1110, %v838
      %v1115 = vmul.f32 %v1111, %v839
      %v1116 = vmul.f32 %v1112, %v840
      %v1117 = vadd.f32 %v1104, %v1113
      %v1118 = vadd.f32 %v1105, %v1114
      %v1119 = vadd.f32 %v1106, %v1115
      %v1120 = vadd.f32 %v1107, %v1116
      %v1121 = vmul.f32 %v812, %v1108
      %v1122 = vmul.f32 %v813, %v1108
      %v1123 = vmul.f32 %v814, %v1108
      %v1124 = vmul.f32 %v815, %v1108
      %v1125 = vmul.f32 %v1121, %v837
      %v1126 = vmul.f32 %v1122, %v838
      %v1127 = vmul.f32 %v1123, %v839
      %v1128 = vmul.f32 %v1124, %v840
      %v1129 = vperm.slane %v1035, 7
      %v1130 = vmul.f32 %v853, %v1129
      %v1131 = vmul.f32 %v854, %v1129
      %v1132 = vmul.f32 %v855, %v1129
      %v1133 = vmul.f32 %v856, %v1129
      %v1134 = vmul.f32 %v1130, %v866
      %v1135 = vmul.f32 %v1131, %v867
      %v1136 = vmul.f32 %v1132, %v868
      %v1137 = vmul.f32 %v1133, %v869
      %v1138 = vadd.f32 %v1125, %v1134
      %v1139 = vadd.f32 %v1126, %v1135
      %v1140 = vadd.f32 %v1127, %v1136
      %v1141 = vadd.f32 %v1128, %v1137
      %v1142 = vsub.f32 %v398, %v1019
      %v1143 = vrcp.pop %v1142
      %v1144 = vmul.f32 %v1142, %v1143
      %v1145 = vsub.f32 1.0, %v1144
      %v1146 = vmul.f32 %v1143, %v1145
      %v1147 = vadd.f32 %v1143, %v1146
      %vm1148 = vweird.f32 %v1142
      %vm1149 = vweird.f32 %v1143
      %vm1150 = vmor %vm1148, %vm1149
      %v1151 = vsel %vm1150, %v1143, %v1147
      %v1152 = vand.u32 2147483647, %v1142
      %vm1153 = vcmp.eq.f32.partialorder %v1152, 8.507059e+37
      %v1154 = vand.u32 %v1142, 2147483648
      %v1155 = vor.u32 1.1754944e-38, %v1154
      %v1156 = vsel %vm1153, %v1155, %v1151
      %v1157 = vmul.f32 %v841, %v1129
      %v1158 = vmul.f32 %v842, %v1129
      %v1159 = vmul.f32 %v843, %v1129
      %v1160 = vmul.f32 %v844, %v1129
      %v1161 = vmul.f32 %v1157, %v866
      %v1162 = vmul.f32 %v1158, %v867
      %v1163 = vmul.f32 %v1159, %v868
      %v1164 = vmul.f32 %v1160, %v869
      %v1165 = vperm.slane %v1156, 0
      %v1166 = vmul.f32 %v897, %v1165
      %v1167 = vmul.f32 %v898, %v1165
      %v1168 = vmul.f32 %v899, %v1165
      %v1169 = vmul.f32 %v900, %v1165
      %v1170 = vmul.f32 %v1166, %v910
      %v1171 = vmul.f32 %v1167, %v911
      %v1172 = vmul.f32 %v1168, %v912
      %v1173 = vmul.f32 %v1169, %v913
      %v1174 = vadd.f32 %v1161, %v1170
      %v1175 = vadd.f32 %v1162, %v1171
      %v1176 = vadd.f32 %v1163, %v1172
      %v1177 = vadd.f32 %v1164, %v1173
      %v1178 = vmul.f32 %v885, %v1165
      %v1179 = vmul.f32 %v886, %v1165
      %v1180 = vmul.f32 %v887, %v1165
      %v1181 = vmul.f32 %v888, %v1165
      %v1182 = vmul.f32 %v1178, %v910
      %v1183 = vmul.f32 %v1179, %v911
      %v1184 = vmul.f32 %v1180, %v912
      %v1185 = vmul.f32 %v1181, %v913
      %v1186 = vperm.slane %v1156, 1
      %v1187 = vmul.f32 %v944, %v1186
      %v1188 = vmul.f32 %v945, %v1186
      %v1189 = vmul.f32 %v946, %v1186
      %v1190 = vmul.f32 %v947, %v1186
      %v1191 = vmul.f32 %v1187, %v957
      %v1192 = vmul.f32 %v1188, %v958
      %v1193 = vmul.f32 %v1189, %v959
      %v1194 = vmul.f32 %v1190, %v960
      %v1195 = vadd.f32 %v1182, %v1191
      %v1196 = vadd.f32 %v1183, %v1192
      %v1197 = vadd.f32 %v1184, %v1193
      %v1198 = vadd.f32 %v1185, %v1194
      %v1199 = vrot.slane %v398, 6
      %v1201 = vsub.f32 %v398, %v1199
      %v1202 = vrcp.pop %v1201
      %v1203 = vmul.f32 %v1201, %v1202
      %v1204 = vsub.f32 1.0, %v1203
      %v1205 = vmul.f32 %v1202, %v1204
      %v1206 = vadd.f32 %v1202, %v1205
      %vm1207 = vweird.f32 %v1201
      %vm1208 = vweird.f32 %v1202
      %vm1209 = vmor %vm1207, %vm1208
      %v1210 = vsel %vm1209, %v1202, %v1206
      %v1211 = vand.u32 2147483647, %v1201
      %vm1212 = vcmp.eq.f32.partialorder %v1211, 8.507059e+37
      %v1213 = vand.u32 %v1201, 2147483648
      %v1214 = vor.u32 1.1754944e-38, %v1213
      %v1215 = vsel %vm1212, %v1214, %v1210
      %v1216 = vmul.f32 %v932, %v1186
      %v1217 = vmul.f32 %v933, %v1186
      %v1218 = vmul.f32 %v934, %v1186
      %v1219 = vmul.f32 %v935, %v1186
      %v1220 = vmul.f32 %v1216, %v957
      %v1221 = vmul.f32 %v1217, %v958
      %v1222 = vmul.f32 %v1218, %v959
      %v1223 = vmul.f32 %v1219, %v960
      %v1224 = vperm.slane %v1215, 2
      %v1225 = vmul.f32 %v973, %v1224
      %v1226 = vmul.f32 %v974, %v1224
      %v1227 = vmul.f32 %v975, %v1224
      %v1228 = vmul.f32 %v976, %v1224
      %v1229 = vmul.f32 %v1225, %v986
      %v1230 = vmul.f32 %v1226, %v987
      %v1231 = vmul.f32 %v1227, %v988
      %v1232 = vmul.f32 %v1228, %v989
      %v1233 = vadd.f32 %v1220, %v1229
      %v1234 = vadd.f32 %v1221, %v1230
      %v1235 = vadd.f32 %v1222, %v1231
      %v1236 = vadd.f32 %v1223, %v1232
      %v1237 = vmul.f32 %v961, %v1224
      %v1238 = vmul.f32 %v962, %v1224
      %v1239 = vmul.f32 %v963, %v1224
      %v1240 = vmul.f32 %v964, %v1224
      %v1241 = vmul.f32 %v1237, %v986
      %v1242 = vmul.f32 %v1238, %v987
      %v1243 = vmul.f32 %v1239, %v988
      %v1244 = vmul.f32 %v1240, %v989
      %v1245 = vperm.slane %v1215, 3
      %v1246 = vmul.f32 %v1002, %v1245
      %v1247 = vmul.f32 %v1003, %v1245
      %v1248 = vmul.f32 %v1004, %v1245
      %v1249 = vmul.f32 %v1005, %v1245
      %v1250 = vmul.f32 %v1246, %v1015
      %v1251 = vmul.f32 %v1247, %v1016
      %v1252 = vmul.f32 %v1248, %v1017
      %v1253 = vmul.f32 %v1249, %v1018
      %v1254 = vadd.f32 %v1241, %v1250
      %v1255 = vadd.f32 %v1242, %v1251
      %v1256 = vadd.f32 %v1243, %v1252
      %v1257 = vadd.f32 %v1244, %v1253
      %v1258 = vrot.slane %v397, 5
      %v1260 = vsub.f32 %v397, %v1258
      %v1261 = vrcp.pop %v1260
      %v1262 = vmul.f32 %v1260, %v1261
      %v1263 = vsub.f32 1.0, %v1262
      %v1264 = vmul.f32 %v1261, %v1263
      %v1265 = vadd.f32 %v1261, %v1264
      %vm1266 = vweird.f32 %v1260
      %vm1267 = vweird.f32 %v1261
      %vm1268 = vmor %vm1266, %vm1267
      %v1269 = vsel %vm1268, %v1261, %v1265
      %v1270 = vand.u32 2147483647, %v1260
      %vm1271 = vcmp.eq.f32.partialorder %v1270, 8.507059e+37
      %v1272 = vand.u32 %v1260, 2147483648
      %v1273 = vor.u32 1.1754944e-38, %v1272
      %v1274 = vsel %vm1271, %v1273, %v1269
      %v1275 = vperm.slane %v1274, 3
      %v1276 = vmul.f32 %v695, %v1275
      %v1277 = vmul.f32 %v696, %v1275
      %v1278 = vmul.f32 %v697, %v1275
      %v1279 = vmul.f32 %v698, %v1275
      %v1280 = vmul.f32 %v1276, %v1054
      %v1281 = vmul.f32 %v1277, %v1055
      %v1282 = vmul.f32 %v1278, %v1056
      %v1283 = vmul.f32 %v1279, %v1057
      %v1284 = vperm.slane %v1274, 4
      %v1285 = vmul.f32 %v766, %v1284
      %v1286 = vmul.f32 %v767, %v1284
      %v1287 = vmul.f32 %v768, %v1284
      %v1288 = vmul.f32 %v769, %v1284
      %v1289 = vmul.f32 %v1285, %v1075
      %v1290 = vmul.f32 %v1286, %v1076
      %v1291 = vmul.f32 %v1287, %v1077
      %v1292 = vmul.f32 %v1288, %v1078
      %v1293 = vadd.f32 %v1280, %v1289
      %v1294 = vadd.f32 %v1281, %v1290
      %v1295 = vadd.f32 %v1282, %v1291
      %v1296 = vadd.f32 %v1283, %v1292
      %v1297 = vmul.f32 %v725, %v1284
      %v1298 = vmul.f32 %v726, %v1284
      %v1299 = vmul.f32 %v727, %v1284
      %v1300 = vmul.f32 %v728, %v1284
      %v1301 = vmul.f32 %v1297, %v1075
      %v1302 = vmul.f32 %v1298, %v1076
      %v1303 = vmul.f32 %v1299, %v1077
      %v1304 = vmul.f32 %v1300, %v1078
      %v1305 = vperm.slane %v1274, 5
      %v1306 = vmul.f32 %v795, %v1305
      %v1307 = vmul.f32 %v796, %v1305
      %v1308 = vmul.f32 %v797, %v1305
      %v1309 = vmul.f32 %v798, %v1305
      %v1310 = vmul.f32 %v1306, %v1096
      %v1311 = vmul.f32 %v1307, %v1097
      %v1312 = vmul.f32 %v1308, %v1098
      %v1313 = vmul.f32 %v1309, %v1099
      %v1314 = vadd.f32 %v1301, %v1310
      %v1315 = vadd.f32 %v1302, %v1311
      %v1316 = vadd.f32 %v1303, %v1312
      %v1317 = vadd.f32 %v1304, %v1313
      %v1318 = vmul.f32 %v754, %v1305
      %v1319 = vmul.f32 %v755, %v1305
      %v1320 = vmul.f32 %v756, %v1305
      %v1321 = vmul.f32 %v757, %v1305
      %v1322 = vmul.f32 %v1318, %v1096
      %v1323 = vmul.f32 %v1319, %v1097
      %v1324 = vmul.f32 %v1320, %v1098
      %v1325 = vmul.f32 %v1321, %v1099
      %v1326 = vperm.slane %v1274, 6
      %v1327 = vmul.f32 %v824, %v1326
      %v1328 = vmul.f32 %v825, %v1326
      %v1329 = vmul.f32 %v826, %v1326
      %v1330 = vmul.f32 %v827, %v1326
      %v1331 = vmul.f32 %v1327, %v1117
      %v1332 = vmul.f32 %v1328, %v1118
      %v1333 = vmul.f32 %v1329, %v1119
      %v1334 = vmul.f32 %v1330, %v1120
      %v1335 = vadd.f32 %v1322, %v1331
      %v1336 = vadd.f32 %v1323, %v1332
      %v1337 = vadd.f32 %v1324, %v1333
      %v1338 = vadd.f32 %v1325, %v1334
      %v1339 = vmul.f32 %v783, %v1326
      %v1340 = vmul.f32 %v784, %v1326
      %v1341 = vmul.f32 %v785, %v1326
      %v1342 = vmul.f32 %v786, %v1326
      %v1343 = vmul.f32 %v1339, %v1117
      %v1344 = vmul.f32 %v1340, %v1118
      %v1345 = vmul.f32 %v1341, %v1119
      %v1346 = vmul.f32 %v1342, %v1120
      %v1347 = vperm.slane %v1274, 7
      %v1348 = vmul.f32 %v853, %v1347
      %v1349 = vmul.f32 %v854, %v1347
      %v1350 = vmul.f32 %v855, %v1347
      %v1351 = vmul.f32 %v856, %v1347
      %v1352 = vmul.f32 %v1348, %v1138
      %v1353 = vmul.f32 %v1349, %v1139
      %v1354 = vmul.f32 %v1350, %v1140
      %v1355 = vmul.f32 %v1351, %v1141
      %v1356 = vadd.f32 %v1343, %v1352
      %v1357 = vadd.f32 %v1344, %v1353
      %v1358 = vadd.f32 %v1345, %v1354
      %v1359 = vadd.f32 %v1346, %v1355
      %v1360 = vsub.f32 %v398, %v1258
      %v1361 = vrcp.pop %v1360
      %v1362 = vmul.f32 %v1360, %v1361
      %v1363 = vsub.f32 1.0, %v1362
      %v1364 = vmul.f32 %v1361, %v1363
      %v1365 = vadd.f32 %v1361, %v1364
      %vm1366 = vweird.f32 %v1360
      %vm1367 = vweird.f32 %v1361
      %vm1368 = vmor %vm1366, %vm1367
      %v1369 = vsel %vm1368, %v1361, %v1365
      %v1370 = vand.u32 2147483647, %v1360
      %vm1371 = vcmp.eq.f32.partialorder %v1370, 8.507059e+37
      %v1372 = vand.u32 %v1360, 2147483648
      %v1373 = vor.u32 1.1754944e-38, %v1372
      %v1374 = vsel %vm1371, %v1373, %v1369
      %v1375 = vmul.f32 %v812, %v1347
      %v1376 = vmul.f32 %v813, %v1347
      %v1377 = vmul.f32 %v814, %v1347
      %v1378 = vmul.f32 %v815, %v1347
      %v1379 = vmul.f32 %v1375, %v1138
      %v1380 = vmul.f32 %v1376, %v1139
      %v1381 = vmul.f32 %v1377, %v1140
      %v1382 = vmul.f32 %v1378, %v1141
      %v1383 = vperm.slane %v1374, 0
      %v1384 = vmul.f32 %v897, %v1383
      %v1385 = vmul.f32 %v898, %v1383
      %v1386 = vmul.f32 %v899, %v1383
      %v1387 = vmul.f32 %v900, %v1383
      %v1388 = vmul.f32 %v1384, %v1174
      %v1389 = vmul.f32 %v1385, %v1175
      %v1390 = vmul.f32 %v1386, %v1176
      %v1391 = vmul.f32 %v1387, %v1177
      %v1392 = vadd.f32 %v1379, %v1388
      %v1393 = vadd.f32 %v1380, %v1389
      %v1394 = vadd.f32 %v1381, %v1390
      %v1395 = vadd.f32 %v1382, %v1391
      %v1396 = vmul.f32 %v841, %v1383
      %v1397 = vmul.f32 %v842, %v1383
      %v1398 = vmul.f32 %v843, %v1383
      %v1399 = vmul.f32 %v844, %v1383
      %v1400 = vmul.f32 %v1396, %v1174
      %v1401 = vmul.f32 %v1397, %v1175
      %v1402 = vmul.f32 %v1398, %v1176
      %v1403 = vmul.f32 %v1399, %v1177
      %v1404 = vperm.slane %v1374, 1
      %v1405 = vmul.f32 %v944, %v1404
      %v1406 = vmul.f32 %v945, %v1404
      %v1407 = vmul.f32 %v946, %v1404
      %v1408 = vmul.f32 %v947, %v1404
      %v1409 = vmul.f32 %v1405, %v1195
      %v1410 = vmul.f32 %v1406, %v1196
      %v1411 = vmul.f32 %v1407, %v1197
      %v1412 = vmul.f32 %v1408, %v1198
      %v1413 = vadd.f32 %v1400, %v1409
      %v1414 = vadd.f32 %v1401, %v1410
      %v1415 = vadd.f32 %v1402, %v1411
      %v1416 = vadd.f32 %v1403, %v1412
      %v1417 = vmul.f32 %v885, %v1404
      %v1418 = vmul.f32 %v886, %v1404
      %v1419 = vmul.f32 %v887, %v1404
      %v1420 = vmul.f32 %v888, %v1404
      %v1421 = vmul.f32 %v1417, %v1195
      %v1422 = vmul.f32 %v1418, %v1196
      %v1423 = vmul.f32 %v1419, %v1197
      %v1424 = vmul.f32 %v1420, %v1198
      %v1425 = vperm.slane %v1374, 2
      %v1426 = vmul.f32 %v973, %v1425
      %v1427 = vmul.f32 %v974, %v1425
      %v1428 = vmul.f32 %v975, %v1425
      %v1429 = vmul.f32 %v976, %v1425
      %v1430 = vmul.f32 %v1426, %v1233
      %v1431 = vmul.f32 %v1427, %v1234
      %v1432 = vmul.f32 %v1428, %v1235
      %v1433 = vmul.f32 %v1429, %v1236
      %v1434 = vadd.f32 %v1421, %v1430
      %v1435 = vadd.f32 %v1422, %v1431
      %v1436 = vadd.f32 %v1423, %v1432
      %v1437 = vadd.f32 %v1424, %v1433
      %v1438 = vrot.slane %v398, 5
      %v1440 = vsub.f32 %v398, %v1438
      %v1441 = vrcp.pop %v1440
      %v1442 = vmul.f32 %v1440, %v1441
      %v1443 = vsub.f32 1.0, %v1442
      %v1444 = vmul.f32 %v1441, %v1443
      %v1445 = vadd.f32 %v1441, %v1444
      %vm1446 = vweird.f32 %v1440
      %vm1447 = vweird.f32 %v1441
      %vm1448 = vmor %vm1446, %vm1447
      %v1449 = vsel %vm1448, %v1441, %v1445
      %v1450 = vand.u32 2147483647, %v1440
      %vm1451 = vcmp.eq.f32.partialorder %v1450, 8.507059e+37
      %v1452 = vand.u32 %v1440, 2147483648
      %v1453 = vor.u32 1.1754944e-38, %v1452
      %v1454 = vsel %vm1451, %v1453, %v1449
      %v1455 = vmul.f32 %v932, %v1425
      %v1456 = vmul.f32 %v933, %v1425
      %v1457 = vmul.f32 %v934, %v1425
      %v1458 = vmul.f32 %v935, %v1425
      %v1459 = vmul.f32 %v1455, %v1233
      %v1460 = vmul.f32 %v1456, %v1234
      %v1461 = vmul.f32 %v1457, %v1235
      %v1462 = vmul.f32 %v1458, %v1236
      %v1463 = vperm.slane %v1454, 3
      %v1464 = vmul.f32 %v1002, %v1463
      %v1465 = vmul.f32 %v1003, %v1463
      %v1466 = vmul.f32 %v1004, %v1463
      %v1467 = vmul.f32 %v1005, %v1463
      %v1468 = vmul.f32 %v1464, %v1254
      %v1469 = vmul.f32 %v1465, %v1255
      %v1470 = vmul.f32 %v1466, %v1256
      %v1471 = vmul.f32 %v1467, %v1257
      %v1472 = vadd.f32 %v1459, %v1468
      %v1473 = vadd.f32 %v1460, %v1469
      %v1474 = vadd.f32 %v1461, %v1470
      %v1475 = vadd.f32 %v1462, %v1471
      %v1476 = vperm.slane %v399, 0
      %v1477 = vmul.f32 %v1476, %v1293
      %v1478 = vmul.f32 %v1476, %v1294
      %v1479 = vmul.f32 %v1476, %v1295
      %v1480 = vmul.f32 %v1476, %v1296
      %v1481 = vperm.slane %v399, 1
      %v1482 = vmul.f32 %v1481, %v1314
      %v1483 = vmul.f32 %v1481, %v1315
      %v1484 = vmul.f32 %v1481, %v1316
      %v1485 = vmul.f32 %v1481, %v1317
      %v1486 = vadd.f32 %v1477, %v1482
      %v1487 = vadd.f32 %v1478, %v1483
      %v1488 = vadd.f32 %v1479, %v1484
      %v1489 = vadd.f32 %v1480, %v1485
      %v1490 = vperm.slane %v399, 2
      %v1491 = vmul.f32 %v1490, %v1335
      %v1492 = vmul.f32 %v1490, %v1336
      %v1493 = vmul.f32 %v1490, %v1337
      %v1494 = vmul.f32 %v1490, %v1338
      %v1495 = vadd.f32 %v1486, %v1491
      %v1496 = vadd.f32 %v1487, %v1492
      %v1497 = vadd.f32 %v1488, %v1493
      %v1498 = vadd.f32 %v1489, %v1494
      %v1499 = vperm.slane %v399, 3
      %v1500 = vmul.f32 %v1499, %v1356
      %v1501 = vmul.f32 %v1499, %v1357
      %v1502 = vmul.f32 %v1499, %v1358
      %v1503 = vmul.f32 %v1499, %v1359
      %v1504 = vadd.f32 %v1495, %v1500
      %v1505 = vadd.f32 %v1496, %v1501
      %v1506 = vadd.f32 %v1497, %v1502
      %v1507 = vadd.f32 %v1498, %v1503
      %v1508 = vperm.slane %v399, 4
      %v1509 = vmul.f32 %v1508, %v1392
      %v1510 = vmul.f32 %v1508, %v1393
      %v1511 = vmul.f32 %v1508, %v1394
      %v1512 = vmul.f32 %v1508, %v1395
      %v1513 = vadd.f32 %v1504, %v1509
      %v1514 = vadd.f32 %v1505, %v1510
      %v1515 = vadd.f32 %v1506, %v1511
      %v1516 = vadd.f32 %v1507, %v1512
      %v1517 = vperm.slane %v399, 5
      %v1518 = vmul.f32 %v1517, %v1413
      %v1519 = vmul.f32 %v1517, %v1414
      %v1520 = vmul.f32 %v1517, %v1415
      %v1521 = vmul.f32 %v1517, %v1416
      %v1522 = vadd.f32 %v1513, %v1518
      %v1523 = vadd.f32 %v1514, %v1519
      %v1524 = vadd.f32 %v1515, %v1520
      %v1525 = vadd.f32 %v1516, %v1521
      %v1526 = vperm.slane %v399, 6
      %v1527 = vmul.f32 %v1526, %v1434
      %v1528 = vmul.f32 %v1526, %v1435
      %v1529 = vmul.f32 %v1526, %v1436
      %v1530 = vmul.f32 %v1526, %v1437
      %v1531 = vadd.f32 %v1522, %v1527
      %v1532 = vadd.f32 %v1523, %v1528
      %v1533 = vadd.f32 %v1524, %v1529
      %v1534 = vadd.f32 %v1525, %v1530
      %v1535 = vperm.slane %v399, 7
      %v1536 = vmul.f32 %v1535, %v1472
      %v1537 = vmul.f32 %v1535, %v1473
      %v1538 = vmul.f32 %v1535, %v1474
      %v1539 = vmul.f32 %v1535, %v1475
      %v1540 = vadd.f32 %v1531, %v1536
      %v1541 = vadd.f32 %v1532, %v1537
      %v1542 = vadd.f32 %v1533, %v1538
      %v1543 = vadd.f32 %v1534, %v1539
      %v1544 = vld [vmem:[%s5] sm:$0xff]
      %v1545 = vld [vmem:[%s5 + $0x8] sm:$0xff]
      %v1546 = vld [vmem:[%s5 + $0x10] sm:$0xff]
      %v1547 = vld [vmem:[%s5 + $0x18] sm:$0xff]
      %v1548 = vld [vmem:[%s6] sm:$0x1]
      %v1549 = vld [vmem:[%s7] sm:$0xff]
      %v1550 = vld [vmem:[%s7 + $0x8] sm:$0xf]
      %v1551 = vld [vmem:[%s8] sm:$0xff]
      %v1553 = vperm.slane %v1548, 0
      %vm1555 = vcmask 261120
      %v1557 = vsel %vm1555, %v1540, 0
      %v1560 = vsel %vm1555, %v1541, 0
      %v1563 = vsel %vm1555, %v1542, 0
      %v1566 = vsel %vm1555, %v1543, 0
      %1568 = vmatpush.msra.mxu0 0.0
      %1569 = vmatpush.msra.mxu0 0.0
      %1570 = vmatpush.msra.mxu0 0.0
      %1571 = vmatpush.msra.mxu0 0.0
      %1572 = vmatpush.msra.mxu0 0.0
      %1573 = vmatpush.msra.mxu0 0.0
      %1574 = vmatpush.msra.mxu0 0.0
      %1575 = vmatpush.msra.mxu0 0.0
      %1576 = vmatpush.msra.mxu0 0.0
      %1577 = vmatpush.msra.mxu0 0.0
      %1578 = vmatpush.msra.mxu0 0.0
      %1579 = vmatpush.msra.mxu0 0.0
      %1580 = vmatpush.msra.mxu0 %v1547
      %1581 = vmatpush.msra.mxu0 %v1546
      %1582 = vmatpush.msra.mxu0 %v1545
      %1583 = vmatpush.msra.mxu0 %v1544
      %1584 = vmatmul.f32.gmra.mxu0 %v1557
      %v1585 = vpop.f32.mrf.mxu0
      %v1586 = vadd.f32 %v1553, %v1585
      %1587 = vmatmul.f32.gmra.mxu0 %v1560
      %v1588 = vpop.f32.mrf.mxu0
      %v1589 = vadd.f32 %v1553, %v1588
      %1590 = vmatmul.f32.gmra.mxu0 %v1563
      %v1591 = vpop.f32.mrf.mxu0
      %v1592 = vadd.f32 %v1553, %v1591
      %1593 = vmatmul.f32.gmra.mxu0 %v1566
      %v1594 = vpop.f32.mrf.mxu0
      %v1595 = vadd.f32 %v1553, %v1594
      %1596 = vdwg.mxu0
      %v1597 = vperm.slane %v1549, 0
      %vm1598 = vcmp.ge.f32.partialorder %v1586, %v1597
      %vm1599 = vcmp.ge.f32.partialorder %v1589, %v1597
      %vm1600 = vcmp.ge.f32.partialorder %v1592, %v1597
      %vm1601 = vcmp.ge.f32.partialorder %v1595, %v1597
      %v1602 = vperm.slane %v1549, 1
      %vm1603 = vcmp.lt.f32.partialorder %v1586, %v1602
      %vm1604 = vcmp.lt.f32.partialorder %v1589, %v1602
      %vm1605 = vcmp.lt.f32.partialorder %v1592, %v1602
      %vm1606 = vcmp.lt.f32.partialorder %v1595, %v1602
      %vm1607 = vmand %vm1598, %vm1603
      %vm1608 = vmand %vm1599, %vm1604
      %vm1609 = vmand %vm1600, %vm1605
      %vm1610 = vmand %vm1601, %vm1606
      %v1611 = vsel %vm1607, 1, 0
      %v1612 = vsel %vm1608, 1, 0
      %v1613 = vsel %vm1609, 1, 0
      %v1614 = vsel %vm1610, 1, 0
      %v1615 = vcvt.s32.f32 %v1611
      %v1616 = vcvt.s32.f32 %v1612
      %v1617 = vcvt.s32.f32 %v1613
      %v1618 = vcvt.s32.f32 %v1614
      %vm1619 = vcmp.ge.f32.partialorder %v1586, %v1602
      %vm1620 = vcmp.ge.f32.partialorder %v1589, %v1602
      %vm1621 = vcmp.ge.f32.partialorder %v1592, %v1602
      %vm1622 = vcmp.ge.f32.partialorder %v1595, %v1602
      %v1623 = vperm.slane %v1549, 2
      %vm1624 = vcmp.lt.f32.partialorder %v1586, %v1623
      %vm1625 = vcmp.lt.f32.partialorder %v1589, %v1623
      %vm1626 = vcmp.lt.f32.partialorder %v1592, %v1623
      %vm1627 = vcmp.lt.f32.partialorder %v1595, %v1623
      %vm1628 = vmand %vm1619, %vm1624
      %vm1629 = vmand %vm1620, %vm1625
      %vm1630 = vmand %vm1621, %vm1626
      %vm1631 = vmand %vm1622, %vm1627
      %v1632 = vsel %vm1628, 1, 0
      %v1633 = vsel %vm1629, 1, 0
      %v1634 = vsel %vm1630, 1, 0
      %v1635 = vsel %vm1631, 1, 0
      %v1636 = vcvt.s32.f32 %v1632
      %v1637 = vcvt.s32.f32 %v1633
      %v1638 = vcvt.s32.f32 %v1634
      %v1639 = vcvt.s32.f32 %v1635
      %vm1640 = vcmp.ge.f32.partialorder %v1586, %v1623
      %vm1641 = vcmp.ge.f32.partialorder %v1589, %v1623
      %vm1642 = vcmp.ge.f32.partialorder %v1592, %v1623
      %vm1643 = vcmp.ge.f32.partialorder %v1595, %v1623
      %v1644 = vperm.slane %v1549, 3
      %vm1645 = vcmp.lt.f32.partialorder %v1586, %v1644
      %vm1646 = vcmp.lt.f32.partialorder %v1589, %v1644
      %vm1647 = vcmp.lt.f32.partialorder %v1592, %v1644
      %vm1648 = vcmp.lt.f32.partialorder %v1595, %v1644
      %vm1649 = vmand %vm1640, %vm1645
      %vm1650 = vmand %vm1641, %vm1646
      %vm1651 = vmand %vm1642, %vm1647
      %vm1652 = vmand %vm1643, %vm1648
      %v1653 = vsel %vm1649, 1, 0
      %v1654 = vsel %vm1650, 1, 0
      %v1655 = vsel %vm1651, 1, 0
      %v1656 = vsel %vm1652, 1, 0
      %v1657 = vcvt.s32.f32 %v1653
      %v1658 = vcvt.s32.f32 %v1654
      %v1659 = vcvt.s32.f32 %v1655
      %v1660 = vcvt.s32.f32 %v1656
      %vm1661 = vcmp.ge.f32.partialorder %v1586, %v1644
      %vm1662 = vcmp.ge.f32.partialorder %v1589, %v1644
      %vm1663 = vcmp.ge.f32.partialorder %v1592, %v1644
      %vm1664 = vcmp.ge.f32.partialorder %v1595, %v1644
      %v1665 = vperm.slane %v1549, 4
      %vm1666 = vcmp.lt.f32.partialorder %v1586, %v1665
      %vm1667 = vcmp.lt.f32.partialorder %v1589, %v1665
      %vm1668 = vcmp.lt.f32.partialorder %v1592, %v1665
      %vm1669 = vcmp.lt.f32.partialorder %v1595, %v1665
      %vm1670 = vmand %vm1661, %vm1666
      %vm1671 = vmand %vm1662, %vm1667
      %vm1672 = vmand %vm1663, %vm1668
      %vm1673 = vmand %vm1664, %vm1669
      %v1674 = vsel %vm1670, 1, 0
      %v1675 = vsel %vm1671, 1, 0
      %v1676 = vsel %vm1672, 1, 0
      %v1677 = vsel %vm1673, 1, 0
      %v1678 = vcvt.s32.f32 %v1674
      %v1679 = vcvt.s32.f32 %v1675
      %v1680 = vcvt.s32.f32 %v1676
      %v1681 = vcvt.s32.f32 %v1677
      %vm1682 = vcmp.ge.f32.partialorder %v1586, %v1665
      %vm1683 = vcmp.ge.f32.partialorder %v1589, %v1665
      %vm1684 = vcmp.ge.f32.partialorder %v1592, %v1665
      %vm1685 = vcmp.ge.f32.partialorder %v1595, %v1665
      %v1686 = vperm.slane %v1549, 5
      %vm1687 = vcmp.lt.f32.partialorder %v1586, %v1686
      %vm1688 = vcmp.lt.f32.partialorder %v1589, %v1686
      %vm1689 = vcmp.lt.f32.partialorder %v1592, %v1686
      %vm1690 = vcmp.lt.f32.partialorder %v1595, %v1686
      %vm1691 = vmand %vm1682, %vm1687
      %vm1692 = vmand %vm1683, %vm1688
      %vm1693 = vmand %vm1684, %vm1689
      %vm1694 = vmand %vm1685, %vm1690
      %v1695 = vsel %vm1691, 1, 0
      %v1696 = vsel %vm1692, 1, 0
      %v1697 = vsel %vm1693, 1, 0
      %v1698 = vsel %vm1694, 1, 0
      %v1699 = vcvt.s32.f32 %v1695
      %v1700 = vcvt.s32.f32 %v1696
      %v1701 = vcvt.s32.f32 %v1697
      %v1702 = vcvt.s32.f32 %v1698
      %vm1703 = vcmp.ge.f32.partialorder %v1586, %v1686
      %vm1704 = vcmp.ge.f32.partialorder %v1589, %v1686
      %vm1705 = vcmp.ge.f32.partialorder %v1592, %v1686
      %vm1706 = vcmp.ge.f32.partialorder %v1595, %v1686
      %v1707 = vperm.slane %v1549, 6
      %vm1708 = vcmp.lt.f32.partialorder %v1586, %v1707
      %vm1709 = vcmp.lt.f32.partialorder %v1589, %v1707
      %vm1710 = vcmp.lt.f32.partialorder %v1592, %v1707
      %vm1711 = vcmp.lt.f32.partialorder %v1595, %v1707
      %vm1712 = vmand %vm1703, %vm1708
      %vm1713 = vmand %vm1704, %vm1709
      %vm1714 = vmand %vm1705, %vm1710
      %vm1715 = vmand %vm1706, %vm1711
      %v1716 = vsel %vm1712, 1, 0
      %v1717 = vsel %vm1713, 1, 0
      %v1718 = vsel %vm1714, 1, 0
      %v1719 = vsel %vm1715, 1, 0
      %v1720 = vcvt.s32.f32 %v1716
      %v1721 = vcvt.s32.f32 %v1717
      %v1722 = vcvt.s32.f32 %v1718
      %v1723 = vcvt.s32.f32 %v1719
      %vm1724 = vcmp.ge.f32.partialorder %v1586, %v1707
      %vm1725 = vcmp.ge.f32.partialorder %v1589, %v1707
      %vm1726 = vcmp.ge.f32.partialorder %v1592, %v1707
      %vm1727 = vcmp.ge.f32.partialorder %v1595, %v1707
      %v1728 = vperm.slane %v1549, 7
      %vm1729 = vcmp.lt.f32.partialorder %v1586, %v1728
      %vm1730 = vcmp.lt.f32.partialorder %v1589, %v1728
      %vm1731 = vcmp.lt.f32.partialorder %v1592, %v1728
      %vm1732 = vcmp.lt.f32.partialorder %v1595, %v1728
      %vm1733 = vmand %vm1724, %vm1729
      %vm1734 = vmand %vm1725, %vm1730
      %vm1735 = vmand %vm1726, %vm1731
      %vm1736 = vmand %vm1727, %vm1732
      %v1737 = vsel %vm1733, 1, 0
      %v1738 = vsel %vm1734, 1, 0
      %v1739 = vsel %vm1735, 1, 0
      %v1740 = vsel %vm1736, 1, 0
      %v1741 = vcvt.s32.f32 %v1737
      %v1742 = vcvt.s32.f32 %v1738
      %v1743 = vcvt.s32.f32 %v1739
      %v1744 = vcvt.s32.f32 %v1740
      %vm1745 = vcmp.ge.f32.partialorder %v1586, %v1728
      %vm1746 = vcmp.ge.f32.partialorder %v1589, %v1728
      %vm1747 = vcmp.ge.f32.partialorder %v1592, %v1728
      %vm1748 = vcmp.ge.f32.partialorder %v1595, %v1728
      %v1749 = vperm.slane %v1550, 0
      %vm1750 = vcmp.lt.f32.partialorder %v1586, %v1749
      %vm1751 = vcmp.lt.f32.partialorder %v1589, %v1749
      %vm1752 = vcmp.lt.f32.partialorder %v1592, %v1749
      %vm1753 = vcmp.lt.f32.partialorder %v1595, %v1749
      %vm1754 = vmand %vm1745, %vm1750
      %vm1755 = vmand %vm1746, %vm1751
      %vm1756 = vmand %vm1747, %vm1752
      %vm1757 = vmand %vm1748, %vm1753
      %v1758 = vsel %vm1754, 1, 0
      %v1759 = vsel %vm1755, 1, 0
      %v1760 = vsel %vm1756, 1, 0
      %v1761 = vsel %vm1757, 1, 0
      %v1762 = vcvt.s32.f32 %v1758
      %v1763 = vcvt.s32.f32 %v1759
      %v1764 = vcvt.s32.f32 %v1760
      %v1765 = vcvt.s32.f32 %v1761
      %vm1766 = vcmp.ge.f32.partialorder %v1586, %v1749
      %vm1767 = vcmp.ge.f32.partialorder %v1589, %v1749
      %vm1768 = vcmp.ge.f32.partialorder %v1592, %v1749
      %vm1769 = vcmp.ge.f32.partialorder %v1595, %v1749
      %v1770 = vperm.slane %v1550, 1
      %vm1771 = vcmp.lt.f32.partialorder %v1586, %v1770
      %vm1772 = vcmp.lt.f32.partialorder %v1589, %v1770
      %vm1773 = vcmp.lt.f32.partialorder %v1592, %v1770
      %vm1774 = vcmp.lt.f32.partialorder %v1595, %v1770
      %vm1775 = vmand %vm1766, %vm1771
      %vm1776 = vmand %vm1767, %vm1772
      %vm1777 = vmand %vm1768, %vm1773
      %vm1778 = vmand %vm1769, %vm1774
      %v1779 = vsel %vm1775, 1, 0
      %v1780 = vsel %vm1776, 1, 0
      %v1781 = vsel %vm1777, 1, 0
      %v1782 = vsel %vm1778, 1, 0
      %v1783 = vcvt.s32.f32 %v1779
      %v1784 = vcvt.s32.f32 %v1780
      %v1785 = vcvt.s32.f32 %v1781
      %v1786 = vcvt.s32.f32 %v1782
      %vm1787 = vcmp.ge.f32.partialorder %v1586, %v1770
      %vm1788 = vcmp.ge.f32.partialorder %v1589, %v1770
      %vm1789 = vcmp.ge.f32.partialorder %v1592, %v1770
      %vm1790 = vcmp.ge.f32.partialorder %v1595, %v1770
      %v1791 = vperm.slane %v1550, 2
      %vm1792 = vcmp.lt.f32.partialorder %v1586, %v1791
      %vm1793 = vcmp.lt.f32.partialorder %v1589, %v1791
      %vm1794 = vcmp.lt.f32.partialorder %v1592, %v1791
      %vm1795 = vcmp.lt.f32.partialorder %v1595, %v1791
      %vm1796 = vmand %vm1787, %vm1792
      %vm1797 = vmand %vm1788, %vm1793
      %vm1798 = vmand %vm1789, %vm1794
      %vm1799 = vmand %vm1790, %vm1795
      %v1800 = vsel %vm1796, 1, 0
      %v1801 = vsel %vm1797, 1, 0
      %v1802 = vsel %vm1798, 1, 0
      %v1803 = vsel %vm1799, 1, 0
      %v1804 = vcvt.s32.f32 %v1800
      %v1805 = vcvt.s32.f32 %v1801
      %v1806 = vcvt.s32.f32 %v1802
      %v1807 = vcvt.s32.f32 %v1803
      %vm1808 = vcmp.ge.f32.partialorder %v1586, %v1791
      %vm1809 = vcmp.ge.f32.partialorder %v1589, %v1791
      %vm1810 = vcmp.ge.f32.partialorder %v1592, %v1791
      %vm1811 = vcmp.ge.f32.partialorder %v1595, %v1791
      %v1812 = vperm.slane %v1550, 3
      %vm1813 = vcmp.lt.f32.partialorder %v1586, %v1812
      %vm1814 = vcmp.lt.f32.partialorder %v1589, %v1812
      %vm1815 = vcmp.lt.f32.partialorder %v1592, %v1812
      %vm1816 = vcmp.lt.f32.partialorder %v1595, %v1812
      %vm1817 = vmand %vm1808, %vm1813
      %vm1818 = vmand %vm1809, %vm1814
      %vm1819 = vmand %vm1810, %vm1815
      %vm1820 = vmand %vm1811, %vm1816
      %v1821 = vsel %vm1817, 1, 0
      %v1822 = vsel %vm1818, 1, 0
      %v1823 = vsel %vm1819, 1, 0
      %v1824 = vsel %vm1820, 1, 0
      %v1825 = vcvt.s32.f32 %v1821
      %v1826 = vcvt.s32.f32 %v1822
      %v1827 = vcvt.s32.f32 %v1823
      %v1828 = vcvt.s32.f32 %v1824
      %v1830 = vrot.slane %v1549, 7
      %v1832 = vsub.f32 %v1549, %v1830
      %v1833 = vrcp.pop %v1832
      %v1834 = vmul.f32 %v1832, %v1833
      %v1835 = vsub.f32 1.0, %v1834
      %v1836 = vmul.f32 %v1833, %v1835
      %v1837 = vadd.f32 %v1833, %v1836
      %vm1838 = vweird.f32 %v1832
      %vm1839 = vweird.f32 %v1833
      %vm1840 = vmor %vm1838, %vm1839
      %v1841 = vsel %vm1840, %v1833, %v1837
      %v1842 = vand.u32 2147483647, %v1832
      %vm1843 = vcmp.eq.f32.partialorder %v1842, 8.507059e+37
      %v1844 = vand.u32 %v1832, 2147483648
      %v1845 = vor.u32 1.1754944e-38, %v1844
      %v1846 = vsel %vm1843, %v1845, %v1841
      %v1847 = vsub.f32 %v1586, %v1597
      %v1848 = vsub.f32 %v1589, %v1597
      %v1849 = vsub.f32 %v1592, %v1597
      %v1850 = vsub.f32 %v1595, %v1597
      %v1851 = vperm.slane %v1846, 1
      %v1852 = vmul.f32 %v1847, %v1851
      %v1853 = vmul.f32 %v1848, %v1851
      %v1854 = vmul.f32 %v1849, %v1851
      %v1855 = vmul.f32 %v1850, %v1851
      %v1856 = vmul.f32 %v1852, %v1615
      %v1857 = vmul.f32 %v1853, %v1616
      %v1858 = vmul.f32 %v1854, %v1617
      %v1859 = vmul.f32 %v1855, %v1618
      %v1860 = vsub.f32 %v1623, %v1586
      %v1861 = vsub.f32 %v1623, %v1589
      %v1862 = vsub.f32 %v1623, %v1592
      %v1863 = vsub.f32 %v1623, %v1595
      %v1864 = vperm.slane %v1846, 2
      %v1865 = vmul.f32 %v1860, %v1864
      %v1866 = vmul.f32 %v1861, %v1864
      %v1867 = vmul.f32 %v1862, %v1864
      %v1868 = vmul.f32 %v1863, %v1864
      %v1869 = vmul.f32 %v1865, %v1636
      %v1870 = vmul.f32 %v1866, %v1637
      %v1871 = vmul.f32 %v1867, %v1638
      %v1872 = vmul.f32 %v1868, %v1639
      %v1873 = vadd.f32 %v1856, %v1869
      %v1874 = vadd.f32 %v1857, %v1870
      %v1875 = vadd.f32 %v1858, %v1871
      %v1876 = vadd.f32 %v1859, %v1872
      %v1877 = vsub.f32 %v1586, %v1602
      %v1878 = vsub.f32 %v1589, %v1602
      %v1879 = vsub.f32 %v1592, %v1602
      %v1880 = vsub.f32 %v1595, %v1602
      %v1881 = vmul.f32 %v1877, %v1864
      %v1882 = vmul.f32 %v1878, %v1864
      %v1883 = vmul.f32 %v1879, %v1864
      %v1884 = vmul.f32 %v1880, %v1864
      %v1885 = vmul.f32 %v1881, %v1636
      %v1886 = vmul.f32 %v1882, %v1637
      %v1887 = vmul.f32 %v1883, %v1638
      %v1888 = vmul.f32 %v1884, %v1639
      %v1889 = vsub.f32 %v1644, %v1586
      %v1890 = vsub.f32 %v1644, %v1589
      %v1891 = vsub.f32 %v1644, %v1592
      %v1892 = vsub.f32 %v1644, %v1595
      %v1893 = vperm.slane %v1846, 3
      %v1894 = vmul.f32 %v1889, %v1893
      %v1895 = vmul.f32 %v1890, %v1893
      %v1896 = vmul.f32 %v1891, %v1893
      %v1897 = vmul.f32 %v1892, %v1893
      %v1898 = vmul.f32 %v1894, %v1657
      %v1899 = vmul.f32 %v1895, %v1658
      %v1900 = vmul.f32 %v1896, %v1659
      %v1901 = vmul.f32 %v1897, %v1660
      %v1902 = vadd.f32 %v1885, %v1898
      %v1903 = vadd.f32 %v1886, %v1899
      %v1904 = vadd.f32 %v1887, %v1900
      %v1905 = vadd.f32 %v1888, %v1901
      %v1906 = vsub.f32 %v1586, %v1623
      %v1907 = vsub.f32 %v1589, %v1623
      %v1908 = vsub.f32 %v1592, %v1623
      %v1909 = vsub.f32 %v1595, %v1623
      %v1910 = vmul.f32 %v1906, %v1893
      %v1911 = vmul.f32 %v1907, %v1893
      %v1912 = vmul.f32 %v1908, %v1893
      %v1913 = vmul.f32 %v1909, %v1893
      %v1914 = vmul.f32 %v1910, %v1657
      %v1915 = vmul.f32 %v1911, %v1658
      %v1916 = vmul.f32 %v1912, %v1659
      %v1917 = vmul.f32 %v1913, %v1660
      %v1918 = vsub.f32 %v1665, %v1586
      %v1919 = vsub.f32 %v1665, %v1589
      %v1920 = vsub.f32 %v1665, %v1592
      %v1921 = vsub.f32 %v1665, %v1595
      %v1922 = vperm.slane %v1846, 4
      %v1923 = vmul.f32 %v1918, %v1922
      %v1924 = vmul.f32 %v1919, %v1922
      %v1925 = vmul.f32 %v1920, %v1922
      %v1926 = vmul.f32 %v1921, %v1922
      %v1927 = vmul.f32 %v1923, %v1678
      %v1928 = vmul.f32 %v1924, %v1679
      %v1929 = vmul.f32 %v1925, %v1680
      %v1930 = vmul.f32 %v1926, %v1681
      %v1931 = vadd.f32 %v1914, %v1927
      %v1932 = vadd.f32 %v1915, %v1928
      %v1933 = vadd.f32 %v1916, %v1929
      %v1934 = vadd.f32 %v1917, %v1930
      %v1935 = vsub.f32 %v1586, %v1644
      %v1936 = vsub.f32 %v1589, %v1644
      %v1937 = vsub.f32 %v1592, %v1644
      %v1938 = vsub.f32 %v1595, %v1644
      %v1939 = vmul.f32 %v1935, %v1922
      %v1940 = vmul.f32 %v1936, %v1922
      %v1941 = vmul.f32 %v1937, %v1922
      %v1942 = vmul.f32 %v1938, %v1922
      %v1943 = vmul.f32 %v1939, %v1678
      %v1944 = vmul.f32 %v1940, %v1679
      %v1945 = vmul.f32 %v1941, %v1680
      %v1946 = vmul.f32 %v1942, %v1681
      %v1947 = vsub.f32 %v1686, %v1586
      %v1948 = vsub.f32 %v1686, %v1589
      %v1949 = vsub.f32 %v1686, %v1592
      %v1950 = vsub.f32 %v1686, %v1595
      %v1951 = vperm.slane %v1846, 5
      %v1952 = vmul.f32 %v1947, %v1951
      %v1953 = vmul.f32 %v1948, %v1951
      %v1954 = vmul.f32 %v1949, %v1951
      %v1955 = vmul.f32 %v1950, %v1951
      %v1956 = vmul.f32 %v1952, %v1699
      %v1957 = vmul.f32 %v1953, %v1700
      %v1958 = vmul.f32 %v1954, %v1701
      %v1959 = vmul.f32 %v1955, %v1702
      %v1960 = vadd.f32 %v1943, %v1956
      %v1961 = vadd.f32 %v1944, %v1957
      %v1962 = vadd.f32 %v1945, %v1958
      %v1963 = vadd.f32 %v1946, %v1959
      %v1964 = vsub.f32 %v1586, %v1665
      %v1965 = vsub.f32 %v1589, %v1665
      %v1966 = vsub.f32 %v1592, %v1665
      %v1967 = vsub.f32 %v1595, %v1665
      %v1968 = vmul.f32 %v1964, %v1951
      %v1969 = vmul.f32 %v1965, %v1951
      %v1970 = vmul.f32 %v1966, %v1951
      %v1971 = vmul.f32 %v1967, %v1951
      %v1972 = vmul.f32 %v1968, %v1699
      %v1973 = vmul.f32 %v1969, %v1700
      %v1974 = vmul.f32 %v1970, %v1701
      %v1975 = vmul.f32 %v1971, %v1702
      %v1976 = vsub.f32 %v1707, %v1586
      %v1977 = vsub.f32 %v1707, %v1589
      %v1978 = vsub.f32 %v1707, %v1592
      %v1979 = vsub.f32 %v1707, %v1595
      %v1980 = vperm.slane %v1846, 6
      %v1981 = vmul.f32 %v1976, %v1980
      %v1982 = vmul.f32 %v1977, %v1980
      %v1983 = vmul.f32 %v1978, %v1980
      %v1984 = vmul.f32 %v1979, %v1980
      %v1985 = vmul.f32 %v1981, %v1720
      %v1986 = vmul.f32 %v1982, %v1721
      %v1987 = vmul.f32 %v1983, %v1722
      %v1988 = vmul.f32 %v1984, %v1723
      %v1989 = vadd.f32 %v1972, %v1985
      %v1990 = vadd.f32 %v1973, %v1986
      %v1991 = vadd.f32 %v1974, %v1987
      %v1992 = vadd.f32 %v1975, %v1988
      %v1993 = vsub.f32 %v1586, %v1686
      %v1994 = vsub.f32 %v1589, %v1686
      %v1995 = vsub.f32 %v1592, %v1686
      %v1996 = vsub.f32 %v1595, %v1686
      %v1997 = vmul.f32 %v1993, %v1980
      %v1998 = vmul.f32 %v1994, %v1980
      %v1999 = vmul.f32 %v1995, %v1980
      %v2000 = vmul.f32 %v1996, %v1980
      %v2001 = vmul.f32 %v1997, %v1720
      %v2002 = vmul.f32 %v1998, %v1721
      %v2003 = vmul.f32 %v1999, %v1722
      %v2004 = vmul.f32 %v2000, %v1723
      %v2005 = vsub.f32 %v1728, %v1586
      %v2006 = vsub.f32 %v1728, %v1589
      %v2007 = vsub.f32 %v1728, %v1592
      %v2008 = vsub.f32 %v1728, %v1595
      %v2009 = vperm.slane %v1846, 7
      %v2010 = vmul.f32 %v2005, %v2009
      %v2011 = vmul.f32 %v2006, %v2009
      %v2012 = vmul.f32 %v2007, %v2009
      %v2013 = vmul.f32 %v2008, %v2009
      %v2014 = vmul.f32 %v2010, %v1741
      %v2015 = vmul.f32 %v2011, %v1742
      %v2016 = vmul.f32 %v2012, %v1743
      %v2017 = vmul.f32 %v2013, %v1744
      %v2018 = vadd.f32 %v2001, %v2014
      %v2019 = vadd.f32 %v2002, %v2015
      %v2020 = vadd.f32 %v2003, %v2016
      %v2021 = vadd.f32 %v2004, %v2017
      %v2022 = vsub.f32 %v1550, %v1830
      %v2023 = vrcp.pop %v2022
      %v2024 = vmul.f32 %v2022, %v2023
      %v2025 = vsub.f32 1.0, %v2024
      %v2026 = vmul.f32 %v2023, %v2025
      %v2027 = vadd.f32 %v2023, %v2026
      %vm2028 = vweird.f32 %v2022
      %vm2029 = vweird.f32 %v2023
      %vm2030 = vmor %vm2028, %vm2029
      %v2031 = vsel %vm2030, %v2023, %v2027
      %v2032 = vand.u32 2147483647, %v2022
      %vm2033 = vcmp.eq.f32.partialorder %v2032, 8.507059e+37
      %v2034 = vand.u32 %v2022, 2147483648
      %v2035 = vor.u32 1.1754944e-38, %v2034
      %v2036 = vsel %vm2033, %v2035, %v2031
      %v2037 = vsub.f32 %v1586, %v1707
      %v2038 = vsub.f32 %v1589, %v1707
      %v2039 = vsub.f32 %v1592, %v1707
      %v2040 = vsub.f32 %v1595, %v1707
      %v2041 = vmul.f32 %v2037, %v2009
      %v2042 = vmul.f32 %v2038, %v2009
      %v2043 = vmul.f32 %v2039, %v2009
      %v2044 = vmul.f32 %v2040, %v2009
      %v2045 = vmul.f32 %v2041, %v1741
      %v2046 = vmul.f32 %v2042, %v1742
      %v2047 = vmul.f32 %v2043, %v1743
      %v2048 = vmul.f32 %v2044, %v1744
      %v2049 = vsub.f32 %v1749, %v1586
      %v2050 = vsub.f32 %v1749, %v1589
      %v2051 = vsub.f32 %v1749, %v1592
      %v2052 = vsub.f32 %v1749, %v1595
      %v2053 = vperm.slane %v2036, 0
      %v2054 = vmul.f32 %v2049, %v2053
      %v2055 = vmul.f32 %v2050, %v2053
      %v2056 = vmul.f32 %v2051, %v2053
      %v2057 = vmul.f32 %v2052, %v2053
      %v2058 = vmul.f32 %v2054, %v1762
      %v2059 = vmul.f32 %v2055, %v1763
      %v2060 = vmul.f32 %v2056, %v1764
      %v2061 = vmul.f32 %v2057, %v1765
      %v2062 = vadd.f32 %v2045, %v2058
      %v2063 = vadd.f32 %v2046, %v2059
      %v2064 = vadd.f32 %v2047, %v2060
      %v2065 = vadd.f32 %v2048, %v2061
      %v2067 = vrot.slane %v1550, 7
      %v2069 = vsub.f32 %v1550, %v2067
      %v2070 = vrcp.pop %v2069
      %v2071 = vmul.f32 %v2069, %v2070
      %v2072 = vsub.f32 1.0, %v2071
      %v2073 = vmul.f32 %v2070, %v2072
      %v2074 = vadd.f32 %v2070, %v2073
      %vm2075 = vweird.f32 %v2069
      %vm2076 = vweird.f32 %v2070
      %vm2077 = vmor %vm2075, %vm2076
      %v2078 = vsel %vm2077, %v2070, %v2074
      %v2079 = vand.u32 2147483647, %v2069
      %vm2080 = vcmp.eq.f32.partialorder %v2079, 8.507059e+37
      %v2081 = vand.u32 %v2069, 2147483648
      %v2082 = vor.u32 1.1754944e-38, %v2081
      %v2083 = vsel %vm2080, %v2082, %v2078
      %v2084 = vsub.f32 %v1586, %v1728
      %v2085 = vsub.f32 %v1589, %v1728
      %v2086 = vsub.f32 %v1592, %v1728
      %v2087 = vsub.f32 %v1595, %v1728
      %v2088 = vmul.f32 %v2084, %v2053
      %v2089 = vmul.f32 %v2085, %v2053
      %v2090 = vmul.f32 %v2086, %v2053
      %v2091 = vmul.f32 %v2087, %v2053
      %v2092 = vmul.f32 %v2088, %v1762
      %v2093 = vmul.f32 %v2089, %v1763
      %v2094 = vmul.f32 %v2090, %v1764
      %v2095 = vmul.f32 %v2091, %v1765
      %v2096 = vsub.f32 %v1770, %v1586
      %v2097 = vsub.f32 %v1770, %v1589
      %v2098 = vsub.f32 %v1770, %v1592
      %v2099 = vsub.f32 %v1770, %v1595
      %v2100 = vperm.slane %v2083, 1
      %v2101 = vmul.f32 %v2096, %v2100
      %v2102 = vmul.f32 %v2097, %v2100
      %v2103 = vmul.f32 %v2098, %v2100
      %v2104 = vmul.f32 %v2099, %v2100
      %v2105 = vmul.f32 %v2101, %v1783
      %v2106 = vmul.f32 %v2102, %v1784
      %v2107 = vmul.f32 %v2103, %v1785
      %v2108 = vmul.f32 %v2104, %v1786
      %v2109 = vadd.f32 %v2092, %v2105
      %v2110 = vadd.f32 %v2093, %v2106
      %v2111 = vadd.f32 %v2094, %v2107
      %v2112 = vadd.f32 %v2095, %v2108
      %v2113 = vsub.f32 %v1586, %v1749
      %v2114 = vsub.f32 %v1589, %v1749
      %v2115 = vsub.f32 %v1592, %v1749
      %v2116 = vsub.f32 %v1595, %v1749
      %v2117 = vmul.f32 %v2113, %v2100
      %v2118 = vmul.f32 %v2114, %v2100
      %v2119 = vmul.f32 %v2115, %v2100
      %v2120 = vmul.f32 %v2116, %v2100
      %v2121 = vmul.f32 %v2117, %v1783
      %v2122 = vmul.f32 %v2118, %v1784
      %v2123 = vmul.f32 %v2119, %v1785
      %v2124 = vmul.f32 %v2120, %v1786
      %v2125 = vsub.f32 %v1791, %v1586
      %v2126 = vsub.f32 %v1791, %v1589
      %v2127 = vsub.f32 %v1791, %v1592
      %v2128 = vsub.f32 %v1791, %v1595
      %v2129 = vperm.slane %v2083, 2
      %v2130 = vmul.f32 %v2125, %v2129
      %v2131 = vmul.f32 %v2126, %v2129
      %v2132 = vmul.f32 %v2127, %v2129
      %v2133 = vmul.f32 %v2128, %v2129
      %v2134 = vmul.f32 %v2130, %v1804
      %v2135 = vmul.f32 %v2131, %v1805
      %v2136 = vmul.f32 %v2132, %v1806
      %v2137 = vmul.f32 %v2133, %v1807
      %v2138 = vadd.f32 %v2121, %v2134
      %v2139 = vadd.f32 %v2122, %v2135
      %v2140 = vadd.f32 %v2123, %v2136
      %v2141 = vadd.f32 %v2124, %v2137
      %v2142 = vsub.f32 %v1586, %v1770
      %v2143 = vsub.f32 %v1589, %v1770
      %v2144 = vsub.f32 %v1592, %v1770
      %v2145 = vsub.f32 %v1595, %v1770
      %v2146 = vmul.f32 %v2142, %v2129
      %v2147 = vmul.f32 %v2143, %v2129
      %v2148 = vmul.f32 %v2144, %v2129
      %v2149 = vmul.f32 %v2145, %v2129
      %v2150 = vmul.f32 %v2146, %v1804
      %v2151 = vmul.f32 %v2147, %v1805
      %v2152 = vmul.f32 %v2148, %v1806
      %v2153 = vmul.f32 %v2149, %v1807
      %v2154 = vsub.f32 %v1812, %v1586
      %v2155 = vsub.f32 %v1812, %v1589
      %v2156 = vsub.f32 %v1812, %v1592
      %v2157 = vsub.f32 %v1812, %v1595
      %v2158 = vperm.slane %v2083, 3
      %v2159 = vmul.f32 %v2154, %v2158
      %v2160 = vmul.f32 %v2155, %v2158
      %v2161 = vmul.f32 %v2156, %v2158
      %v2162 = vmul.f32 %v2157, %v2158
      %v2163 = vmul.f32 %v2159, %v1825
      %v2164 = vmul.f32 %v2160, %v1826
      %v2165 = vmul.f32 %v2161, %v1827
      %v2166 = vmul.f32 %v2162, %v1828
      %v2167 = vadd.f32 %v2150, %v2163
      %v2168 = vadd.f32 %v2151, %v2164
      %v2169 = vadd.f32 %v2152, %v2165
      %v2170 = vadd.f32 %v2153, %v2166
      %v2171 = vrot.slane %v1549, 6
      %v2173 = vsub.f32 %v1549, %v2171
      %v2174 = vrcp.pop %v2173
      %v2175 = vmul.f32 %v2173, %v2174
      %v2176 = vsub.f32 1.0, %v2175
      %v2177 = vmul.f32 %v2174, %v2176
      %v2178 = vadd.f32 %v2174, %v2177
      %vm2179 = vweird.f32 %v2173
      %vm2180 = vweird.f32 %v2174
      %vm2181 = vmor %vm2179, %vm2180
      %v2182 = vsel %vm2181, %v2174, %v2178
      %v2183 = vand.u32 2147483647, %v2173
      %vm2184 = vcmp.eq.f32.partialorder %v2183, 8.507059e+37
      %v2185 = vand.u32 %v2173, 2147483648
      %v2186 = vor.u32 1.1754944e-38, %v2185
      %v2187 = vsel %vm2184, %v2186, %v2182
      %v2188 = vperm.slane %v2187, 2
      %v2189 = vmul.f32 %v1847, %v2188
      %v2190 = vmul.f32 %v1848, %v2188
      %v2191 = vmul.f32 %v1849, %v2188
      %v2192 = vmul.f32 %v1850, %v2188
      %v2193 = vmul.f32 %v2189, %v1873
      %v2194 = vmul.f32 %v2190, %v1874
      %v2195 = vmul.f32 %v2191, %v1875
      %v2196 = vmul.f32 %v2192, %v1876
      %v2197 = vperm.slane %v2187, 3
      %v2198 = vmul.f32 %v1889, %v2197
      %v2199 = vmul.f32 %v1890, %v2197
      %v2200 = vmul.f32 %v1891, %v2197
      %v2201 = vmul.f32 %v1892, %v2197
      %v2202 = vmul.f32 %v2198, %v1902
      %v2203 = vmul.f32 %v2199, %v1903
      %v2204 = vmul.f32 %v2200, %v1904
      %v2205 = vmul.f32 %v2201, %v1905
      %v2206 = vadd.f32 %v2193, %v2202
      %v2207 = vadd.f32 %v2194, %v2203
      %v2208 = vadd.f32 %v2195, %v2204
      %v2209 = vadd.f32 %v2196, %v2205
      %v2210 = vmul.f32 %v1877, %v2197
      %v2211 = vmul.f32 %v1878, %v2197
      %v2212 = vmul.f32 %v1879, %v2197
      %v2213 = vmul.f32 %v1880, %v2197
      %v2214 = vmul.f32 %v2210, %v1902
      %v2215 = vmul.f32 %v2211, %v1903
      %v2216 = vmul.f32 %v2212, %v1904
      %v2217 = vmul.f32 %v2213, %v1905
      %v2218 = vperm.slane %v2187, 4
      %v2219 = vmul.f32 %v1918, %v2218
      %v2220 = vmul.f32 %v1919, %v2218
      %v2221 = vmul.f32 %v1920, %v2218
      %v2222 = vmul.f32 %v1921, %v2218
      %v2223 = vmul.f32 %v2219, %v1931
      %v2224 = vmul.f32 %v2220, %v1932
      %v2225 = vmul.f32 %v2221, %v1933
      %v2226 = vmul.f32 %v2222, %v1934
      %v2227 = vadd.f32 %v2214, %v2223
      %v2228 = vadd.f32 %v2215, %v2224
      %v2229 = vadd.f32 %v2216, %v2225
      %v2230 = vadd.f32 %v2217, %v2226
      %v2231 = vmul.f32 %v1906, %v2218
      %v2232 = vmul.f32 %v1907, %v2218
      %v2233 = vmul.f32 %v1908, %v2218
      %v2234 = vmul.f32 %v1909, %v2218
      %v2235 = vmul.f32 %v2231, %v1931
      %v2236 = vmul.f32 %v2232, %v1932
      %v2237 = vmul.f32 %v2233, %v1933
      %v2238 = vmul.f32 %v2234, %v1934
      %v2239 = vperm.slane %v2187, 5
      %v2240 = vmul.f32 %v1947, %v2239
      %v2241 = vmul.f32 %v1948, %v2239
      %v2242 = vmul.f32 %v1949, %v2239
      %v2243 = vmul.f32 %v1950, %v2239
      %v2244 = vmul.f32 %v2240, %v1960
      %v2245 = vmul.f32 %v2241, %v1961
      %v2246 = vmul.f32 %v2242, %v1962
      %v2247 = vmul.f32 %v2243, %v1963
      %v2248 = vadd.f32 %v2235, %v2244
      %v2249 = vadd.f32 %v2236, %v2245
      %v2250 = vadd.f32 %v2237, %v2246
      %v2251 = vadd.f32 %v2238, %v2247
      %v2252 = vmul.f32 %v1935, %v2239
      %v2253 = vmul.f32 %v1936, %v2239
      %v2254 = vmul.f32 %v1937, %v2239
      %v2255 = vmul.f32 %v1938, %v2239
      %v2256 = vmul.f32 %v2252, %v1960
      %v2257 = vmul.f32 %v2253, %v1961
      %v2258 = vmul.f32 %v2254, %v1962
      %v2259 = vmul.f32 %v2255, %v1963
      %v2260 = vperm.slane %v2187, 6
      %v2261 = vmul.f32 %v1976, %v2260
      %v2262 = vmul.f32 %v1977, %v2260
      %v2263 = vmul.f32 %v1978, %v2260
      %v2264 = vmul.f32 %v1979, %v2260
      %v2265 = vmul.f32 %v2261, %v1989
      %v2266 = vmul.f32 %v2262, %v1990
      %v2267 = vmul.f32 %v2263, %v1991
      %v2268 = vmul.f32 %v2264, %v1992
      %v2269 = vadd.f32 %v2256, %v2265
      %v2270 = vadd.f32 %v2257, %v2266
      %v2271 = vadd.f32 %v2258, %v2267
      %v2272 = vadd.f32 %v2259, %v2268
      %v2273 = vmul.f32 %v1964, %v2260
      %v2274 = vmul.f32 %v1965, %v2260
      %v2275 = vmul.f32 %v1966, %v2260
      %v2276 = vmul.f32 %v1967, %v2260
      %v2277 = vmul.f32 %v2273, %v1989
      %v2278 = vmul.f32 %v2274, %v1990
      %v2279 = vmul.f32 %v2275, %v1991
      %v2280 = vmul.f32 %v2276, %v1992
      %v2281 = vperm.slane %v2187, 7
      %v2282 = vmul.f32 %v2005, %v2281
      %v2283 = vmul.f32 %v2006, %v2281
      %v2284 = vmul.f32 %v2007, %v2281
      %v2285 = vmul.f32 %v2008, %v2281
      %v2286 = vmul.f32 %v2282, %v2018
      %v2287 = vmul.f32 %v2283, %v2019
      %v2288 = vmul.f32 %v2284, %v2020
      %v2289 = vmul.f32 %v2285, %v2021
      %v2290 = vadd.f32 %v2277, %v2286
      %v2291 = vadd.f32 %v2278, %v2287
      %v2292 = vadd.f32 %v2279, %v2288
      %v2293 = vadd.f32 %v2280, %v2289
      %v2294 = vsub.f32 %v1550, %v2171
      %v2295 = vrcp.pop %v2294
      %v2296 = vmul.f32 %v2294, %v2295
      %v2297 = vsub.f32 1.0, %v2296
      %v2298 = vmul.f32 %v2295, %v2297
      %v2299 = vadd.f32 %v2295, %v2298
      %vm2300 = vweird.f32 %v2294
      %vm2301 = vweird.f32 %v2295
      %vm2302 = vmor %vm2300, %vm2301
      %v2303 = vsel %vm2302, %v2295, %v2299
      %v2304 = vand.u32 2147483647, %v2294
      %vm2305 = vcmp.eq.f32.partialorder %v2304, 8.507059e+37
      %v2306 = vand.u32 %v2294, 2147483648
      %v2307 = vor.u32 1.1754944e-38, %v2306
      %v2308 = vsel %vm2305, %v2307, %v2303
      %v2309 = vmul.f32 %v1993, %v2281
      %v2310 = vmul.f32 %v1994, %v2281
      %v2311 = vmul.f32 %v1995, %v2281
      %v2312 = vmul.f32 %v1996, %v2281
      %v2313 = vmul.f32 %v2309, %v2018
      %v2314 = vmul.f32 %v2310, %v2019
      %v2315 = vmul.f32 %v2311, %v2020
      %v2316 = vmul.f32 %v2312, %v2021
      %v2317 = vperm.slane %v2308, 0
      %v2318 = vmul.f32 %v2049, %v2317
      %v2319 = vmul.f32 %v2050, %v2317
      %v2320 = vmul.f32 %v2051, %v2317
      %v2321 = vmul.f32 %v2052, %v2317
      %v2322 = vmul.f32 %v2318, %v2062
      %v2323 = vmul.f32 %v2319, %v2063
      %v2324 = vmul.f32 %v2320, %v2064
      %v2325 = vmul.f32 %v2321, %v2065
      %v2326 = vadd.f32 %v2313, %v2322
      %v2327 = vadd.f32 %v2314, %v2323
      %v2328 = vadd.f32 %v2315, %v2324
      %v2329 = vadd.f32 %v2316, %v2325
      %v2330 = vmul.f32 %v2037, %v2317
      %v2331 = vmul.f32 %v2038, %v2317
      %v2332 = vmul.f32 %v2039, %v2317
      %v2333 = vmul.f32 %v2040, %v2317
      %v2334 = vmul.f32 %v2330, %v2062
      %v2335 = vmul.f32 %v2331, %v2063
      %v2336 = vmul.f32 %v2332, %v2064
      %v2337 = vmul.f32 %v2333, %v2065
      %v2338 = vperm.slane %v2308, 1
      %v2339 = vmul.f32 %v2096, %v2338
      %v2340 = vmul.f32 %v2097, %v2338
      %v2341 = vmul.f32 %v2098, %v2338
      %v2342 = vmul.f32 %v2099, %v2338
      %v2343 = vmul.f32 %v2339, %v2109
      %v2344 = vmul.f32 %v2340, %v2110
      %v2345 = vmul.f32 %v2341, %v2111
      %v2346 = vmul.f32 %v2342, %v2112
      %v2347 = vadd.f32 %v2334, %v2343
      %v2348 = vadd.f32 %v2335, %v2344
      %v2349 = vadd.f32 %v2336, %v2345
      %v2350 = vadd.f32 %v2337, %v2346
      %v2351 = vrot.slane %v1550, 6
      %v2353 = vsub.f32 %v1550, %v2351
      %v2354 = vrcp.pop %v2353
      %v2355 = vmul.f32 %v2353, %v2354
      %v2356 = vsub.f32 1.0, %v2355
      %v2357 = vmul.f32 %v2354, %v2356
      %v2358 = vadd.f32 %v2354, %v2357
      %vm2359 = vweird.f32 %v2353
      %vm2360 = vweird.f32 %v2354
      %vm2361 = vmor %vm2359, %vm2360
      %v2362 = vsel %vm2361, %v2354, %v2358
      %v2363 = vand.u32 2147483647, %v2353
      %vm2364 = vcmp.eq.f32.partialorder %v2363, 8.507059e+37
      %v2365 = vand.u32 %v2353, 2147483648
      %v2366 = vor.u32 1.1754944e-38, %v2365
      %v2367 = vsel %vm2364, %v2366, %v2362
      %v2368 = vmul.f32 %v2084, %v2338
      %v2369 = vmul.f32 %v2085, %v2338
      %v2370 = vmul.f32 %v2086, %v2338
      %v2371 = vmul.f32 %v2087, %v2338
      %v2372 = vmul.f32 %v2368, %v2109
      %v2373 = vmul.f32 %v2369, %v2110
      %v2374 = vmul.f32 %v2370, %v2111
      %v2375 = vmul.f32 %v2371, %v2112
      %v2376 = vperm.slane %v2367, 2
      %v2377 = vmul.f32 %v2125, %v2376
      %v2378 = vmul.f32 %v2126, %v2376
      %v2379 = vmul.f32 %v2127, %v2376
      %v2380 = vmul.f32 %v2128, %v2376
      %v2381 = vmul.f32 %v2377, %v2138
      %v2382 = vmul.f32 %v2378, %v2139
      %v2383 = vmul.f32 %v2379, %v2140
      %v2384 = vmul.f32 %v2380, %v2141
      %v2385 = vadd.f32 %v2372, %v2381
      %v2386 = vadd.f32 %v2373, %v2382
      %v2387 = vadd.f32 %v2374, %v2383
      %v2388 = vadd.f32 %v2375, %v2384
      %v2389 = vmul.f32 %v2113, %v2376
      %v2390 = vmul.f32 %v2114, %v2376
      %v2391 = vmul.f32 %v2115, %v2376
      %v2392 = vmul.f32 %v2116, %v2376
      %v2393 = vmul.f32 %v2389, %v2138
      %v2394 = vmul.f32 %v2390, %v2139
      %v2395 = vmul.f32 %v2391, %v2140
      %v2396 = vmul.f32 %v2392, %v2141
      %v2397 = vperm.slane %v2367, 3
      %v2398 = vmul.f32 %v2154, %v2397
      %v2399 = vmul.f32 %v2155, %v2397
      %v2400 = vmul.f32 %v2156, %v2397
      %v2401 = vmul.f32 %v2157, %v2397
      %v2402 = vmul.f32 %v2398, %v2167
      %v2403 = vmul.f32 %v2399, %v2168
      %v2404 = vmul.f32 %v2400, %v2169
      %v2405 = vmul.f32 %v2401, %v2170
      %v2406 = vadd.f32 %v2393, %v2402
      %v2407 = vadd.f32 %v2394, %v2403
      %v2408 = vadd.f32 %v2395, %v2404
      %v2409 = vadd.f32 %v2396, %v2405
      %v2410 = vrot.slane %v1549, 5
      %v2412 = vsub.f32 %v1549, %v2410
      %v2413 = vrcp.pop %v2412
      %v2414 = vmul.f32 %v2412, %v2413
      %v2415 = vsub.f32 1.0, %v2414
      %v2416 = vmul.f32 %v2413, %v2415
      %v2417 = vadd.f32 %v2413, %v2416
      %vm2418 = vweird.f32 %v2412
      %vm2419 = vweird.f32 %v2413
      %vm2420 = vmor %vm2418, %vm2419
      %v2421 = vsel %vm2420, %v2413, %v2417
      %v2422 = vand.u32 2147483647, %v2412
      %vm2423 = vcmp.eq.f32.partialorder %v2422, 8.507059e+37
      %v2424 = vand.u32 %v2412, 2147483648
      %v2425 = vor.u32 1.1754944e-38, %v2424
      %v2426 = vsel %vm2423, %v2425, %v2421
      %v2427 = vperm.slane %v2426, 3
      %v2428 = vmul.f32 %v1847, %v2427
      %v2429 = vmul.f32 %v1848, %v2427
      %v2430 = vmul.f32 %v1849, %v2427
      %v2431 = vmul.f32 %v1850, %v2427
      %v2432 = vmul.f32 %v2428, %v2206
      %v2433 = vmul.f32 %v2429, %v2207
      %v2434 = vmul.f32 %v2430, %v2208
      %v2435 = vmul.f32 %v2431, %v2209
      %v2436 = vperm.slane %v2426, 4
      %v2437 = vmul.f32 %v1918, %v2436
      %v2438 = vmul.f32 %v1919, %v2436
      %v2439 = vmul.f32 %v1920, %v2436
      %v2440 = vmul.f32 %v1921, %v2436
      %v2441 = vmul.f32 %v2437, %v2227
      %v2442 = vmul.f32 %v2438, %v2228
      %v2443 = vmul.f32 %v2439, %v2229
      %v2444 = vmul.f32 %v2440, %v2230
      %v2445 = vadd.f32 %v2432, %v2441
      %v2446 = vadd.f32 %v2433, %v2442
      %v2447 = vadd.f32 %v2434, %v2443
      %v2448 = vadd.f32 %v2435, %v2444
      %v2449 = vmul.f32 %v1877, %v2436
      %v2450 = vmul.f32 %v1878, %v2436
      %v2451 = vmul.f32 %v1879, %v2436
      %v2452 = vmul.f32 %v1880, %v2436
      %v2453 = vmul.f32 %v2449, %v2227
      %v2454 = vmul.f32 %v2450, %v2228
      %v2455 = vmul.f32 %v2451, %v2229
      %v2456 = vmul.f32 %v2452, %v2230
      %v2457 = vperm.slane %v2426, 5
      %v2458 = vmul.f32 %v1947, %v2457
      %v2459 = vmul.f32 %v1948, %v2457
      %v2460 = vmul.f32 %v1949, %v2457
      %v2461 = vmul.f32 %v1950, %v2457
      %v2462 = vmul.f32 %v2458, %v2248
      %v2463 = vmul.f32 %v2459, %v2249
      %v2464 = vmul.f32 %v2460, %v2250
      %v2465 = vmul.f32 %v2461, %v2251
      %v2466 = vadd.f32 %v2453, %v2462
      %v2467 = vadd.f32 %v2454, %v2463
      %v2468 = vadd.f32 %v2455, %v2464
      %v2469 = vadd.f32 %v2456, %v2465
      %v2470 = vmul.f32 %v1906, %v2457
      %v2471 = vmul.f32 %v1907, %v2457
      %v2472 = vmul.f32 %v1908, %v2457
      %v2473 = vmul.f32 %v1909, %v2457
      %v2474 = vmul.f32 %v2470, %v2248
      %v2475 = vmul.f32 %v2471, %v2249
      %v2476 = vmul.f32 %v2472, %v2250
      %v2477 = vmul.f32 %v2473, %v2251
      %v2478 = vperm.slane %v2426, 6
      %v2479 = vmul.f32 %v1976, %v2478
      %v2480 = vmul.f32 %v1977, %v2478
      %v2481 = vmul.f32 %v1978, %v2478
      %v2482 = vmul.f32 %v1979, %v2478
      %v2483 = vmul.f32 %v2479, %v2269
      %v2484 = vmul.f32 %v2480, %v2270
      %v2485 = vmul.f32 %v2481, %v2271
      %v2486 = vmul.f32 %v2482, %v2272
      %v2487 = vadd.f32 %v2474, %v2483
      %v2488 = vadd.f32 %v2475, %v2484
      %v2489 = vadd.f32 %v2476, %v2485
      %v2490 = vadd.f32 %v2477, %v2486
      %v2491 = vmul.f32 %v1935, %v2478
      %v2492 = vmul.f32 %v1936, %v2478
      %v2493 = vmul.f32 %v1937, %v2478
      %v2494 = vmul.f32 %v1938, %v2478
      %v2495 = vmul.f32 %v2491, %v2269
      %v2496 = vmul.f32 %v2492, %v2270
      %v2497 = vmul.f32 %v2493, %v2271
      %v2498 = vmul.f32 %v2494, %v2272
      %v2499 = vperm.slane %v2426, 7
      %v2500 = vmul.f32 %v2005, %v2499
      %v2501 = vmul.f32 %v2006, %v2499
      %v2502 = vmul.f32 %v2007, %v2499
      %v2503 = vmul.f32 %v2008, %v2499
      %v2504 = vmul.f32 %v2500, %v2290
      %v2505 = vmul.f32 %v2501, %v2291
      %v2506 = vmul.f32 %v2502, %v2292
      %v2507 = vmul.f32 %v2503, %v2293
      %v2508 = vadd.f32 %v2495, %v2504
      %v2509 = vadd.f32 %v2496, %v2505
      %v2510 = vadd.f32 %v2497, %v2506
      %v2511 = vadd.f32 %v2498, %v2507
      %v2512 = vsub.f32 %v1550, %v2410
      %v2513 = vrcp.pop %v2512
      %v2514 = vmul.f32 %v2512, %v2513
      %v2515 = vsub.f32 1.0, %v2514
      %v2516 = vmul.f32 %v2513, %v2515
      %v2517 = vadd.f32 %v2513, %v2516
      %vm2518 = vweird.f32 %v2512
      %vm2519 = vweird.f32 %v2513
      %vm2520 = vmor %vm2518, %vm2519
      %v2521 = vsel %vm2520, %v2513, %v2517
      %v2522 = vand.u32 2147483647, %v2512
      %vm2523 = vcmp.eq.f32.partialorder %v2522, 8.507059e+37
      %v2524 = vand.u32 %v2512, 2147483648
      %v2525 = vor.u32 1.1754944e-38, %v2524
      %v2526 = vsel %vm2523, %v2525, %v2521
      %v2527 = vmul.f32 %v1964, %v2499
      %v2528 = vmul.f32 %v1965, %v2499
      %v2529 = vmul.f32 %v1966, %v2499
      %v2530 = vmul.f32 %v1967, %v2499
      %v2531 = vmul.f32 %v2527, %v2290
      %v2532 = vmul.f32 %v2528, %v2291
      %v2533 = vmul.f32 %v2529, %v2292
      %v2534 = vmul.f32 %v2530, %v2293
      %v2535 = vperm.slane %v2526, 0
      %v2536 = vmul.f32 %v2049, %v2535
      %v2537 = vmul.f32 %v2050, %v2535
      %v2538 = vmul.f32 %v2051, %v2535
      %v2539 = vmul.f32 %v2052, %v2535
      %v2540 = vmul.f32 %v2536, %v2326
      %v2541 = vmul.f32 %v2537, %v2327
      %v2542 = vmul.f32 %v2538, %v2328
      %v2543 = vmul.f32 %v2539, %v2329
      %v2544 = vadd.f32 %v2531, %v2540
      %v2545 = vadd.f32 %v2532, %v2541
      %v2546 = vadd.f32 %v2533, %v2542
      %v2547 = vadd.f32 %v2534, %v2543
      %v2548 = vmul.f32 %v1993, %v2535
      %v2549 = vmul.f32 %v1994, %v2535
      %v2550 = vmul.f32 %v1995, %v2535
      %v2551 = vmul.f32 %v1996, %v2535
      %v2552 = vmul.f32 %v2548, %v2326
      %v2553 = vmul.f32 %v2549, %v2327
      %v2554 = vmul.f32 %v2550, %v2328
      %v2555 = vmul.f32 %v2551, %v2329
      %v2556 = vperm.slane %v2526, 1
      %v2557 = vmul.f32 %v2096, %v2556
      %v2558 = vmul.f32 %v2097, %v2556
      %v2559 = vmul.f32 %v2098, %v2556
      %v2560 = vmul.f32 %v2099, %v2556
      %v2561 = vmul.f32 %v2557, %v2347
      %v2562 = vmul.f32 %v2558, %v2348
      %v2563 = vmul.f32 %v2559, %v2349
      %v2564 = vmul.f32 %v2560, %v2350
      %v2565 = vadd.f32 %v2552, %v2561
      %v2566 = vadd.f32 %v2553, %v2562
      %v2567 = vadd.f32 %v2554, %v2563
      %v2568 = vadd.f32 %v2555, %v2564
      %v2569 = vmul.f32 %v2037, %v2556
      %v2570 = vmul.f32 %v2038, %v2556
      %v2571 = vmul.f32 %v2039, %v2556
      %v2572 = vmul.f32 %v2040, %v2556
      %v2573 = vmul.f32 %v2569, %v2347
      %v2574 = vmul.f32 %v2570, %v2348
      %v2575 = vmul.f32 %v2571, %v2349
      %v2576 = vmul.f32 %v2572, %v2350
      %v2577 = vperm.slane %v2526, 2
      %v2578 = vmul.f32 %v2125, %v2577
      %v2579 = vmul.f32 %v2126, %v2577
      %v2580 = vmul.f32 %v2127, %v2577
      %v2581 = vmul.f32 %v2128, %v2577
      %v2582 = vmul.f32 %v2578, %v2385
      %v2583 = vmul.f32 %v2579, %v2386
      %v2584 = vmul.f32 %v2580, %v2387
      %v2585 = vmul.f32 %v2581, %v2388
      %v2586 = vadd.f32 %v2573, %v2582
      %v2587 = vadd.f32 %v2574, %v2583
      %v2588 = vadd.f32 %v2575, %v2584
      %v2589 = vadd.f32 %v2576, %v2585
      %v2590 = vrot.slane %v1550, 5
      %v2592 = vsub.f32 %v1550, %v2590
      %v2593 = vrcp.pop %v2592
      %v2594 = vmul.f32 %v2592, %v2593
      %v2595 = vsub.f32 1.0, %v2594
      %v2596 = vmul.f32 %v2593, %v2595
      %v2597 = vadd.f32 %v2593, %v2596
      %vm2598 = vweird.f32 %v2592
      %vm2599 = vweird.f32 %v2593
      %vm2600 = vmor %vm2598, %vm2599
      %v2601 = vsel %vm2600, %v2593, %v2597
      %v2602 = vand.u32 2147483647, %v2592
      %vm2603 = vcmp.eq.f32.partialorder %v2602, 8.507059e+37
      %v2604 = vand.u32 %v2592, 2147483648
      %v2605 = vor.u32 1.1754944e-38, %v2604
      %v2606 = vsel %vm2603, %v2605, %v2601
      %v2607 = vmul.f32 %v2084, %v2577
      %v2608 = vmul.f32 %v2085, %v2577
      %v2609 = vmul.f32 %v2086, %v2577
      %v2610 = vmul.f32 %v2087, %v2577
      %v2611 = vmul.f32 %v2607, %v2385
      %v2612 = vmul.f32 %v2608, %v2386
      %v2613 = vmul.f32 %v2609, %v2387
      %v2614 = vmul.f32 %v2610, %v2388
      %v2615 = vperm.slane %v2606, 3
      %v2616 = vmul.f32 %v2154, %v2615
      %v2617 = vmul.f32 %v2155, %v2615
      %v2618 = vmul.f32 %v2156, %v2615
      %v2619 = vmul.f32 %v2157, %v2615
      %v2620 = vmul.f32 %v2616, %v2406
      %v2621 = vmul.f32 %v2617, %v2407
      %v2622 = vmul.f32 %v2618, %v2408
      %v2623 = vmul.f32 %v2619, %v2409
      %v2624 = vadd.f32 %v2611, %v2620
      %v2625 = vadd.f32 %v2612, %v2621
      %v2626 = vadd.f32 %v2613, %v2622
      %v2627 = vadd.f32 %v2614, %v2623
      %v2628 = vperm.slane %v1551, 0
      %v2629 = vmul.f32 %v2628, %v2445
      %v2630 = vmul.f32 %v2628, %v2446
      %v2631 = vmul.f32 %v2628, %v2447
      %v2632 = vmul.f32 %v2628, %v2448
      %v2633 = vperm.slane %v1551, 1
      %v2634 = vmul.f32 %v2633, %v2466
      %v2635 = vmul.f32 %v2633, %v2467
      %v2636 = vmul.f32 %v2633, %v2468
      %v2637 = vmul.f32 %v2633, %v2469
      %v2638 = vadd.f32 %v2629, %v2634
      %v2639 = vadd.f32 %v2630, %v2635
      %v2640 = vadd.f32 %v2631, %v2636
      %v2641 = vadd.f32 %v2632, %v2637
      %v2642 = vperm.slane %v1551, 2
      %v2643 = vmul.f32 %v2642, %v2487
      %v2644 = vmul.f32 %v2642, %v2488
      %v2645 = vmul.f32 %v2642, %v2489
      %v2646 = vmul.f32 %v2642, %v2490
      %v2647 = vadd.f32 %v2638, %v2643
      %v2648 = vadd.f32 %v2639, %v2644
      %v2649 = vadd.f32 %v2640, %v2645
      %v2650 = vadd.f32 %v2641, %v2646
      %v2651 = vperm.slane %v1551, 3
      %v2652 = vmul.f32 %v2651, %v2508
      %v2653 = vmul.f32 %v2651, %v2509
      %v2654 = vmul.f32 %v2651, %v2510
      %v2655 = vmul.f32 %v2651, %v2511
      %v2656 = vadd.f32 %v2647, %v2652
      %v2657 = vadd.f32 %v2648, %v2653
      %v2658 = vadd.f32 %v2649, %v2654
      %v2659 = vadd.f32 %v2650, %v2655
      %v2660 = vperm.slane %v1551, 4
      %v2661 = vmul.f32 %v2660, %v2544
      %v2662 = vmul.f32 %v2660, %v2545
      %v2663 = vmul.f32 %v2660, %v2546
      %v2664 = vmul.f32 %v2660, %v2547
      %v2665 = vadd.f32 %v2656, %v2661
      %v2666 = vadd.f32 %v2657, %v2662
      %v2667 = vadd.f32 %v2658, %v2663
      %v2668 = vadd.f32 %v2659, %v2664
      %v2669 = vperm.slane %v1551, 5
      %v2670 = vmul.f32 %v2669, %v2565
      %v2671 = vmul.f32 %v2669, %v2566
      %v2672 = vmul.f32 %v2669, %v2567
      %v2673 = vmul.f32 %v2669, %v2568
      %v2674 = vadd.f32 %v2665, %v2670
      %v2675 = vadd.f32 %v2666, %v2671
      %v2676 = vadd.f32 %v2667, %v2672
      %v2677 = vadd.f32 %v2668, %v2673
      %v2678 = vperm.slane %v1551, 6
      %v2679 = vmul.f32 %v2678, %v2586
      %v2680 = vmul.f32 %v2678, %v2587
      %v2681 = vmul.f32 %v2678, %v2588
      %v2682 = vmul.f32 %v2678, %v2589
      %v2683 = vadd.f32 %v2674, %v2679
      %v2684 = vadd.f32 %v2675, %v2680
      %v2685 = vadd.f32 %v2676, %v2681
      %v2686 = vadd.f32 %v2677, %v2682
      %v2687 = vperm.slane %v1551, 7
      %v2688 = vmul.f32 %v2687, %v2624
      %v2689 = vmul.f32 %v2687, %v2625
      %v2690 = vmul.f32 %v2687, %v2626
      %v2691 = vmul.f32 %v2687, %v2627
      %v2692 = vadd.f32 %v2683, %v2688
      %v2693 = vadd.f32 %v2684, %v2689
      %v2694 = vadd.f32 %v2685, %v2690
      %v2695 = vadd.f32 %v2686, %v2691
      %v2696 = vld [vmem:[%s9] sm:$0xff]
      %v2697 = vld [vmem:[%s9 + $0x8] sm:$0xff]
      %v2698 = vld [vmem:[%s9 + $0x10] sm:$0xff]
      %v2699 = vld [vmem:[%s9 + $0x18] sm:$0xff]
      %v2700 = vld [vmem:[%s10] sm:$0x1]
      %v2702 = vperm.slane %v2700, 0
      %v2705 = vsel %vm1555, %v2692, 0
      %v2708 = vsel %vm1555, %v2693, 0
      %v2711 = vsel %vm1555, %v2694, 0
      %v2714 = vsel %vm1555, %v2695, 0
      %2716 = vmatpush.msra.mxu0 0.0
      %2717 = vmatpush.msra.mxu0 0.0
      %2718 = vmatpush.msra.mxu0 0.0
      %2719 = vmatpush.msra.mxu0 0.0
      %2720 = vmatpush.msra.mxu0 0.0
      %2721 = vmatpush.msra.mxu0 0.0
      %2722 = vmatpush.msra.mxu0 0.0
      %2723 = vmatpush.msra.mxu0 0.0
      %2724 = vmatpush.msra.mxu0 0.0
      %2725 = vmatpush.msra.mxu0 0.0
      %2726 = vmatpush.msra.mxu0 0.0
      %2727 = vmatpush.msra.mxu0 0.0
      %2728 = vmatpush.msra.mxu0 %v2699
      %2729 = vmatpush.msra.mxu0 %v2698
      %2730 = vmatpush.msra.mxu0 %v2697
      %2731 = vmatpush.msra.mxu0 %v2696
      %2732 = vmatmul.f32.gmra.mxu0 %v2705
      %v2733 = vpop.f32.mrf.mxu0
      %v2734 = vadd.f32 %v2702, %v2733
      %2735 = vmatmul.f32.gmra.mxu0 %v2708
      %v2736 = vpop.f32.mrf.mxu0
      %v2737 = vadd.f32 %v2702, %v2736
      %2738 = vmatmul.f32.gmra.mxu0 %v2711
      %v2739 = vpop.f32.mrf.mxu0
      %v2740 = vadd.f32 %v2702, %v2739
      %2741 = vmatmul.f32.gmra.mxu0 %v2714
      %v2742 = vpop.f32.mrf.mxu0
      %v2743 = vadd.f32 %v2702, %v2742
      %2744 = vdwg.mxu0
      %vm2745 = vcmask 64512
      %2746 = vst.msk [vmem:[%s388] sm:$0xff] %vm2745, %v2734
      %2747 = vst.msk [vmem:[%s388 + $0x8] sm:$0xff] %vm2745, %v2737
      %2748 = vst.msk [vmem:[%s388 + $0x10] sm:$0xff] %vm2745, %v2740
      %2749 = vst.msk [vmem:[%s388 + $0x18] sm:$0xff] %vm2745, %v2743
      %s2750 = smul.u32 4, %s22
      %p2751 = scmp.lt.s32.totalorder %s2750, 7
      %s2752 = scalar_select %p2751, %s2750, 7
      %s2753 = smul.addr %s2752, 8
      %s2754 = scalar_lea.vmem %s11, %s2753
      // Predicated region
      $region65: #{tpu_custom_call.1} parent=63 // pred_check
        %p2755 = pneg %p276
      $region66: #{tpu_custom_call.1} parent=63 // pred_check_branch
        %2757 = sbr.rel (%p2755) target = $region68
      $region67: #{tpu_custom_call.1} parent=63 // pred_region
        %s2758 = smul.u32 4, %s22
      $region68: #{tpu_custom_call.1} parent=63 // pred_fallthru
        _
    $region64: #{tpu_custom_call.1} parent=5 // pred_fallthru
      _
    %p2759 = scmp.le.s32.totalorder 2, %s17
    // Predicated region
    $region69: #{tpu_custom_call.1} parent=5 // pred_check
      %p2760 = pneg %p2759
    $region70: #{tpu_custom_call.1} parent=5 // pred_check_branch
      %2762 = sbr.rel (%p2760) target = $region72
    $region71: #{tpu_custom_call.1} parent=5 // pred_region
      %s2763 = ssub.s32 %s17, 2
      // Predicated region
      $region73: #{tpu_custom_call.1} parent=71 // pred_check
        %p2764 = pneg %p282
      $region74: #{tpu_custom_call.1} parent=71 // pred_check_branch
        %2766 = sbr.rel (%p2764) target = $region76
      $region75: #{tpu_custom_call.1} parent=71 // pred_region
        %s2767 = smul.u32 4, %s23
        %p2768 = scmp.lt.s32.totalorder %s2767, 7
        %s2769 = scalar_select %p2768, %s2767, 7
        %s2770 = smul.addr %s2769, 8
        %s2771 = scalar_lea.vmem %s11, %s2770
      $region76: #{tpu_custom_call.1} parent=71 // pred_fallthru
        _
    $region72: #{tpu_custom_call.1} parent=5 // pred_fallthru
      _
  $region6: #{tpu_custom_call.1} parent=0 // loop_footer
    %s21 = sadd.s32 1, %s17
  $region7: #{tpu_custom_call.1} parent=0 // loop_footer_branch
    %16 = sbr.rel target = $region3
  $region8: #{tpu_custom_call.1} parent=0 // loop_exit
    _

</llo_original>
